<compile_context>
chip_gen: v6e
topology: v6e:2x2x1
jax: 0.10.0
libtpu: 0.0.40
codegen_flags: <defaults>
</compile_context>

<pallas_src>
import functools

import jax
import jax.numpy as jnp
from jax import lax
from jax.experimental import pallas as pl
from jax.experimental.pallas import tpu as pltpu

_f32 = jnp.float32
VMEM = pltpu.MemorySpace.VMEM


def _vmem_specs(n):
    return [pl.BlockSpec(memory_space=VMEM) for _ in range(n)]


# ------------------------------ fused kernel --------------------------------

def _framework_kernel(
    # graph features / structure
    af_ref, bf_ref, fnf_ref, fef_ref, mf_ref,
    adj_a_ref, adj_m_ref, a2f_ref,
    # atom / motif encoders (LinearBn -> ReLU -> Dropout(eval) -> LinearBn -> ReLU)
    ae_w1, ae_b1, ae_w2, ae_b2,
    me_w1, me_b1, me_w2, me_b2,
    # edge-conditioned MP weights: w3 = [e_in, hid, hid], b2 = [hid, hid]
    amp_w3, amp_b2, mmp_w3, mmp_b2,
    # AttnLocalAugmentation (wkv = wk|wv packed; blk1 = block-diag ones per head)
    la_wq, la_wkv, la_wo, la_bo, blk1_ref,
    # GRU cells (motif, atom)
    gm_wih, gm_whh, gm_bih, gm_bhh,
    ga_wih, ga_whh, ga_bih, ga_bhh,
    # AdaptivePrompter (MLP -> matmul with P.T)
    pr_w1, pr_b1, pr_w2, pr_b2, pr_pt,
    # output: [atom_pred; motif_pred] stacked -> [2, task_num]
    out_ref,
    *, hid, heads, steps, n_motif):

    def dot(a, b):
        return jnp.dot(a, b, preferred_element_type=jnp.float32)

    # ---- encoders ----------------------------------------------------------
    # TODO(synk): LinearBn's BatchNorm is eval-mode identity (mean=0, var=1).
    uaf = jnp.maximum(dot(af_ref[...], ae_w1[...]) + ae_b1[...], 0.0)
    uaf = jnp.maximum(dot(uaf, ae_w2[...]) + ae_b2[...], 0.0)
    ufnf = jnp.maximum(dot(fnf_ref[...], me_w1[...]) + me_b1[...], 0.0)
    ufnf = jnp.maximum(dot(ufnf, me_w2[...]) + me_b2[...], 0.0)

    # ---- loop-invariant edge-conditioned weights (hoisted out of the loop) --
    # TODO(synk): DGLMessagePassingNetwork source not provided; approximated by a
    # graph-level edge-conditioned projection (edge_func of the mean edge feature)
    # + row-normalized adjacency aggregation + residual.
    def dyn_weight(e_ref, w3_ref, b_ref):
        e_mean = jnp.mean(e_ref[...], axis=0, keepdims=True)      # [1, e_in]
        w = b_ref[...]                                            # [hid, hid]
        for e in range(w3_ref.shape[0]):                          # static, tiny
            w = w + e_mean[0:1, e:e + 1] * w3_ref[e]
        return w

    w_dyn_a = dyn_weight(bf_ref, amp_w3, amp_b2)
    w_dyn_m = dyn_weight(fef_ref, mmp_w3, mmp_b2)

    adj_a = adj_a_ref[...]
    adj_m = adj_m_ref[...]
    a2f = a2f_ref[...]
    wq, wkv, wo, bo = la_wq[...], la_wkv[...], la_wo[...], la_bo[...]
    blk1 = blk1_ref[...]
    inv_dk = 1.0 / float(hid // heads)

    gmw = (gm_wih[...], gm_whh[...], gm_bih[...], gm_bhh[...])
    gaw = (ga_wih[...], ga_whh[...], ga_bih[...], ga_bhh[...])

    def gru(x, h, w):
        wih, whh, bih, bhh = w
        gi = dot(x, wih) + bih
        gh = dot(h, whh) + bhh
        r = jax.nn.sigmoid(gi[:, :hid] + gh[:, :hid])
        z = jax.nn.sigmoid(gi[:, hid:2 * hid] + gh[:, hid:2 * hid])
        n = jnp.tanh(gi[:, 2 * hid:] + r * gh[:, 2 * hid:])
        return (1.0 - z) * n + z * h

    nm = n_motif

    # ---- message-passing / attention / GRU step loop (fully unrolled) ------
    def step(_, carry):
        uaf, ufnf = carry
        # message passing with residual
        ufnm = jnp.maximum(dot(dot(adj_m, ufnf), w_dyn_m), 0.0) + ufnf
        uam = jnp.maximum(dot(dot(adj_a, uaf), w_dyn_a), 0.0) + uaf
        # atom -> func_group aggregation (agg_op == 'sum') as a binary matmul
        agg_uam = dot(a2f, uam)

        # AttnLocalAugmentation: per-head softmax over the 2 keys {fine, coarse}
        q = dot(ufnf, wq)
        fc = jnp.concatenate([agg_uam, ufnm], axis=0)             # [2*nm, hid]
        kv = dot(fc, wkv)                                         # [2*nm, 2*hid]
        k1, v1 = kv[:nm, :hid], kv[:nm, hid:]
        k2, v2 = kv[nm:, :hid], kv[nm:, hid:]
        # blk1 = block-diag(ones(d_k,d_k)): broadcasts each head's score to its lanes
        s1 = dot(q * k1, blk1) * inv_dk
        s2 = dot(q * k2, blk1) * inv_dk
        m = jnp.maximum(s1, s2)
        e1 = jnp.exp(s1 - m)
        e2 = jnp.exp(s2 - m)
        ctx = (e1 * v1 + e2 * v2) / (e1 + e2)                     # softmax-weighted V
        ufnm = dot(ctx, wo) + bo

        # GRU updates
        ufnf_n = gru(ufnm, ufnf, gmw)
        uaf_n = gru(uam, uaf, gaw)
        return uaf_n, ufnf_n

    uaf, ufnf = lax.fori_loop(0, steps, step, (uaf, ufnf), unroll=True)

    # ---- readout (sum || max pooling) + mol FP, batched prompter ------------
    # TODO(synk): Readout class source not provided; implemented as sum||max
    # graph pooling (matches the 2*hid_dim width implied by atom_MLP_inDim).
    mf = mf_ref[...]

    def rep(h):
        return jnp.concatenate([jnp.sum(h, axis=0, keepdims=True),
                                jnp.max(h, axis=0, keepdims=True), mf], axis=1)

    atom_rep = rep(uaf)                                           # [1, 2*hid+mol_in]
    motif_rep = rep(ufnf)
    rid = lax.broadcasted_iota(jnp.int32, (2, 1), 0)
    reps = jnp.where(rid == 0, atom_rep, motif_rep)               # [2, mlp_in]

    # TODO(synk): MLP class source not provided; implemented as
    # Linear->ReLU->Dropout(eval)->Linear with num_neurons hidden units.
    hmid = jnp.maximum(dot(reps, pr_w1[...]) + pr_b1[...], 0.0)
    logits = dot(hmid, pr_w2[...]) + pr_b2[...]
    out_ref[...] = dot(logits, pr_pt[...])                        # matmul with P.T


# ------------------------------ model wrapper --------------------------------

def framework_forward(params, feats, graph, cfg):
    af, bf, fnf, fef, mf = feats
    adj_atom, adj_motif, assign_a2f = graph
    hid, heads, steps = cfg["hid_dim"], cfg["heads"], cfg["step"]
    n_motif, task_num = fnf.shape[0], cfg["task_num"]
    p = params
    args = (
        af, bf, fnf, fef, mf, adj_atom, adj_motif, assign_a2f,
        p["atom_enc"]["w1"], p["atom_enc"]["b1"], p["atom_enc"]["w2"], p["atom_enc"]["b2"],
        p["motif_enc"]["w1"], p["motif_enc"]["b1"], p["motif_enc"]["w2"], p["motif_enc"]["b2"],
        p["atom_mp"]["w3"], p["atom_mp"]["b2"], p["motif_mp"]["w3"], p["motif_mp"]["b2"],
        p["LA"]["wq"], p["LA"]["wkv"], p["LA"]["wo"], p["LA"]["bo"], p["LA"]["blk1"],
        p["gru_motif"]["wih"], p["gru_motif"]["whh"], p["gru_motif"]["bih"], p["gru_motif"]["bhh"],
        p["gru_atom"]["wih"], p["gru_atom"]["whh"], p["gru_atom"]["bih"], p["gru_atom"]["bhh"],
        p["prompter"]["w1"], p["prompter"]["b1"], p["prompter"]["w2"], p["prompter"]["b2"],
        p["prompter"]["p_t"],
    )
    preds = pl.pallas_call(
        functools.partial(_framework_kernel, hid=hid, heads=heads,
                          steps=steps, n_motif=n_motif),
        out_shape=jax.ShapeDtypeStruct((2, task_num), _f32),
        in_specs=_vmem_specs(len(args)),
        out_specs=pl.BlockSpec(memory_space=VMEM),
    )(*args)
    return preds[0:1], preds[1:2]     # atom_pred, motif_pred


# ------------------------------ init / graph ---------------------------------

def init_params(key, cfg):
    hid, T, heads = cfg["hid_dim"], cfg["task_num"], cfg["heads"]
    d_k = hid // heads
    mlp_in = 2 * hid + cfg["mol_in_dim"]       # mol_FP == 'both'
    nh = cfg["num_neurons"]
    keys = iter(jax.random.split(key, 64))
    nrm = lambda shape: 0.01 * jax.random.normal(next(keys), shape, _f32)  # init_type='normal'
    zeros = lambda shape: jnp.zeros(shape, _f32)

    wk, wv = nrm((hid, hid)), nrm((hid, hid))
    return {
        "atom_enc": dict(w1=nrm((cfg["atom_in_dim"], hid)), b1=zeros((1, hid)),
                         w2=nrm((hid, hid)), b2=zeros((1, hid))),
        "motif_enc": dict(w1=nrm((cfg["ss_node_in_dim"], hid)), b1=zeros((1, hid)),
                          w2=nrm((hid, hid)), b2=zeros((1, hid))),
        # edge_func Linear(e_in -> hid*hid), pre-reshaped once for the kernel
        "atom_mp": dict(
            w3=nrm((cfg["bond_in_dim"], hid * hid)).reshape(cfg["bond_in_dim"], hid, hid),
            b2=zeros((hid, hid))),
        "motif_mp": dict(
            w3=nrm((cfg["ss_edge_in_dim"], hid * hid)).reshape(cfg["ss_edge_in_dim"], hid, hid),
            b2=zeros((hid, hid))),
        "gru_atom": dict(wih=nrm((hid, 3 * hid)), whh=nrm((hid, 3 * hid)),
                         bih=zeros((1, 3 * hid)), bhh=zeros((1, 3 * hid))),
        "gru_motif": dict(wih=nrm((hid, 3 * hid)), whh=nrm((hid, 3 * hid)),
                          bih=zeros((1, 3 * hid)), bhh=zeros((1, 3 * hid))),
        "LA": dict(wq=nrm((hid, hid)),
                   wkv=jnp.concatenate([wk, wv], axis=1),     # K|V packed (64-lane matmul)
                   wo=nrm((hid, hid)), bo=zeros((1, hid)),
                   blk1=jnp.kron(jnp.eye(heads, dtype=_f32), jnp.ones((d_k, d_k), _f32))),
        # AdaptivePrompter: prompts[i] ~ N(0, 0.01), mapper i -> [i]  =>  P[i] = prompts[i]
        "prompter": dict(w1=nrm((mlp_in, nh)), b1=zeros((1, nh)),
                         w2=nrm((nh, T)), b2=zeros((1, T)),
                         p_t=nrm((T, T)).T),
    }


def ring_adj(n):
    idx = jnp.arange(n)
    adj = jnp.zeros((n, n), _f32)
    adj = adj.at[idx, (idx + 1) % n].set(1.0)
    adj = adj.at[idx, (idx - 1) % n].set(1.0)
    return adj / jnp.sum(adj, axis=1, keepdims=True)


# ----------------------------------- main ------------------------------------

if __name__ == "__main__":
    cfg = dict(hid_dim=32, heads=4, atom_in_dim=16, ss_node_in_dim=12,
               bond_in_dim=8, ss_edge_in_dim=8, mol_in_dim=8,
               num_neurons=32, step=2, task_num=4,
               agg_op="sum", mol_FP="both", residual=True)
    n_atom, n_motif = 16, 8

    key = jax.random.PRNGKey(0)
    k_in, k_p = jax.random.split(key)
    ks = jax.random.split(k_in, 5)
    af = jax.random.normal(ks[0], (n_atom, cfg["atom_in_dim"]), _f32)         # atom node feats
    bf = jax.random.normal(ks[1], (2 * n_atom, cfg["bond_in_dim"]), _f32)     # bond (edge) feats
    fnf = jax.random.normal(ks[2], (n_motif, cfg["ss_node_in_dim"]), _f32)    # motif node feats
    fef = jax.random.normal(ks[3], (2 * n_motif, cfg["ss_edge_in_dim"]), _f32)  # motif edge feats
    mf = jax.random.normal(ks[4], (1, cfg["mol_in_dim"]), _f32)               # molecule feat

    params = init_params(k_p, cfg)

    # deterministic synthetic graph (single molecule): ring graphs + block a2f assignment
    adj_atom = ring_adj(n_atom)
    adj_motif = ring_adj(n_motif)
    atoms_per_motif = n_atom // n_motif
    assign_a2f = (jnp.arange(n_motif)[:, None] ==
                  (jnp.arange(n_atom)[None, :] // atoms_per_motif)).astype(_f32)

    atom_pred, motif_pred = framework_forward(
        params, (af, bf, fnf, fef, mf), (adj_atom, adj_motif, assign_a2f), cfg)
    jax.block_until_ready((atom_pred, motif_pred))

    assert atom_pred.shape == (1, cfg["task_num"])
    assert motif_pred.shape == (1, cfg["task_num"])
    assert jnp.all(jnp.isfinite(atom_pred)) and jnp.all(jnp.isfinite(motif_pred))
    print("KERNEL_OK")
</pallas_src>

<mosaic_0001>
module attributes {stable_mosaic.version = 11 : i64} {
  func.func @_framework_kernel(%arg0: memref<16x16xf32, #tpu.memory_space<vmem>>, %arg1: memref<32x8xf32, #tpu.memory_space<vmem>>, %arg2: memref<8x12xf32, #tpu.memory_space<vmem>>, %arg3: memref<16x8xf32, #tpu.memory_space<vmem>>, %arg4: memref<1x8xf32, #tpu.memory_space<vmem>>, %arg5: memref<16x16xf32, #tpu.memory_space<vmem>>, %arg6: memref<8x8xf32, #tpu.memory_space<vmem>>, %arg7: memref<8x16xf32, #tpu.memory_space<vmem>>, %arg8: memref<16x32xf32, #tpu.memory_space<vmem>>, %arg9: memref<1x32xf32, #tpu.memory_space<vmem>>, %arg10: memref<32x32xf32, #tpu.memory_space<vmem>>, %arg11: memref<1x32xf32, #tpu.memory_space<vmem>>, %arg12: memref<12x32xf32, #tpu.memory_space<vmem>>, %arg13: memref<1x32xf32, #tpu.memory_space<vmem>>, %arg14: memref<32x32xf32, #tpu.memory_space<vmem>>, %arg15: memref<1x32xf32, #tpu.memory_space<vmem>>, %arg16: memref<8x32x32xf32, #tpu.memory_space<vmem>>, %arg17: memref<32x32xf32, #tpu.memory_space<vmem>>, %arg18: memref<8x32x32xf32, #tpu.memory_space<vmem>>, %arg19: memref<32x32xf32, #tpu.memory_space<vmem>>, %arg20: memref<32x32xf32, #tpu.memory_space<vmem>>, %arg21: memref<32x64xf32, #tpu.memory_space<vmem>>, %arg22: memref<32x32xf32, #tpu.memory_space<vmem>>, %arg23: memref<1x32xf32, #tpu.memory_space<vmem>>, %arg24: memref<32x32xf32, #tpu.memory_space<vmem>>, %arg25: memref<32x96xf32, #tpu.memory_space<vmem>>, %arg26: memref<32x96xf32, #tpu.memory_space<vmem>>, %arg27: memref<1x96xf32, #tpu.memory_space<vmem>>, %arg28: memref<1x96xf32, #tpu.memory_space<vmem>>, %arg29: memref<32x96xf32, #tpu.memory_space<vmem>>, %arg30: memref<32x96xf32, #tpu.memory_space<vmem>>, %arg31: memref<1x96xf32, #tpu.memory_space<vmem>>, %arg32: memref<1x96xf32, #tpu.memory_space<vmem>>, %arg33: memref<72x32xf32, #tpu.memory_space<vmem>>, %arg34: memref<1x32xf32, #tpu.memory_space<vmem>>, %arg35: memref<32x4xf32, #tpu.memory_space<vmem>>, %arg36: memref<1x4xf32, #tpu.memory_space<vmem>>, %arg37: memref<4x4xf32, #tpu.memory_space<vmem>>, %arg38: memref<2x4xf32, #tpu.memory_space<vmem>>) attributes {dimension_semantics = [], scalar_prefetch = 0 : i64, scratch_operands = 0 : i64, tpu.core_type = #tpu.core_type<tc>} {
    %c0 = arith.constant 0 : index
    %c0_0 = arith.constant 0 : index
    %0 = vector.load %arg0[%c0, %c0_0] : memref<16x16xf32, #tpu.memory_space<vmem>>, vector<16x16xf32>
    %c0_1 = arith.constant 0 : index
    %c0_2 = arith.constant 0 : index
    %1 = vector.load %arg8[%c0_1, %c0_2] : memref<16x32xf32, #tpu.memory_space<vmem>>, vector<16x32xf32>
    %cst = arith.constant dense<0.000000e+00> : vector<16x32xf32>
    %2 = tpu.matmul %0, %1, %cst {dimension_numbers = #tpu.dot_dimension_numbers<[1], [0], [0], [1], [0, 0, 1, 1], [], []>} : vector<16x16xf32>, vector<16x32xf32>, vector<16x32xf32> -> vector<16x32xf32>
    %c0_3 = arith.constant 0 : index
    %c0_4 = arith.constant 0 : index
    %3 = vector.load %arg9[%c0_3, %c0_4] : memref<1x32xf32, #tpu.memory_space<vmem>>, vector<1x32xf32>
    %4 = vector.broadcast %3 : vector<1x32xf32> to vector<16x32xf32>
    %5 = arith.addf %2, %4 : vector<16x32xf32>
    %cst_5 = arith.constant 0.000000e+00 : f32
    %6 = vector.broadcast %cst_5 : f32 to vector<16x32xf32>
    %7 = arith.maximumf %5, %6 : vector<16x32xf32>
    %c0_6 = arith.constant 0 : index
    %c0_7 = arith.constant 0 : index
    %8 = vector.load %arg10[%c0_6, %c0_7] : memref<32x32xf32, #tpu.memory_space<vmem>>, vector<32x32xf32>
    %cst_8 = arith.constant dense<0.000000e+00> : vector<16x32xf32>
    %9 = tpu.matmul %7, %8, %cst_8 {dimension_numbers = #tpu.dot_dimension_numbers<[1], [0], [0], [1], [0, 0, 1, 1], [], []>} : vector<16x32xf32>, vector<32x32xf32>, vector<16x32xf32> -> vector<16x32xf32>
    %c0_9 = arith.constant 0 : index
    %c0_10 = arith.constant 0 : index
    %10 = vector.load %arg11[%c0_9, %c0_10] : memref<1x32xf32, #tpu.memory_space<vmem>>, vector<1x32xf32>
    %11 = vector.broadcast %10 : vector<1x32xf32> to vector<16x32xf32>
    %12 = arith.addf %9, %11 : vector<16x32xf32>
    %cst_11 = arith.constant 0.000000e+00 : f32
    %13 = vector.broadcast %cst_11 : f32 to vector<16x32xf32>
    %14 = arith.maximumf %12, %13 : vector<16x32xf32>
    %c0_12 = arith.constant 0 : index
    %c0_13 = arith.constant 0 : index
    %15 = vector.load %arg2[%c0_12, %c0_13] : memref<8x12xf32, #tpu.memory_space<vmem>>, vector<8x12xf32>
    %c0_14 = arith.constant 0 : index
    %c0_15 = arith.constant 0 : index
    %16 = vector.load %arg12[%c0_14, %c0_15] : memref<12x32xf32, #tpu.memory_space<vmem>>, vector<12x32xf32>
    %cst_16 = arith.constant dense<0.000000e+00> : vector<8x32xf32>
    %17 = tpu.matmul %15, %16, %cst_16 {dimension_numbers = #tpu.dot_dimension_numbers<[1], [0], [0], [1], [0, 0, 1, 1], [], []>} : vector<8x12xf32>, vector<12x32xf32>, vector<8x32xf32> -> vector<8x32xf32>
    %c0_17 = arith.constant 0 : index
    %c0_18 = arith.constant 0 : index
    %18 = vector.load %arg13[%c0_17, %c0_18] : memref<1x32xf32, #tpu.memory_space<vmem>>, vector<1x32xf32>
    %19 = vector.broadcast %18 : vector<1x32xf32> to vector<8x32xf32>
    %20 = arith.addf %17, %19 : vector<8x32xf32>
    %cst_19 = arith.constant 0.000000e+00 : f32
    %21 = vector.broadcast %cst_19 : f32 to vector<8x32xf32>
    %22 = arith.maximumf %20, %21 : vector<8x32xf32>
    %c0_20 = arith.constant 0 : index
    %c0_21 = arith.constant 0 : index
    %23 = vector.load %arg14[%c0_20, %c0_21] : memref<32x32xf32, #tpu.memory_space<vmem>>, vector<32x32xf32>
    %cst_22 = arith.constant dense<0.000000e+00> : vector<8x32xf32>
    %24 = tpu.matmul %22, %23, %cst_22 {dimension_numbers = #tpu.dot_dimension_numbers<[1], [0], [0], [1], [0, 0, 1, 1], [], []>} : vector<8x32xf32>, vector<32x32xf32>, vector<8x32xf32> -> vector<8x32xf32>
    %c0_23 = arith.constant 0 : index
    %c0_24 = arith.constant 0 : index
    %25 = vector.load %arg15[%c0_23, %c0_24] : memref<1x32xf32, #tpu.memory_space<vmem>>, vector<1x32xf32>
    %26 = vector.broadcast %25 : vector<1x32xf32> to vector<8x32xf32>
    %27 = arith.addf %24, %26 : vector<8x32xf32>
    %cst_25 = arith.constant 0.000000e+00 : f32
    %28 = vector.broadcast %cst_25 : f32 to vector<8x32xf32>
    %29 = arith.maximumf %27, %28 : vector<8x32xf32>
    %c0_26 = arith.constant 0 : index
    %c0_27 = arith.constant 0 : index
    %30 = vector.load %arg1[%c0_26, %c0_27] : memref<32x8xf32, #tpu.memory_space<vmem>>, vector<32x8xf32>
    %cst_28 = arith.constant dense<0.000000e+00> : vector<8xf32>
    %31 = vector.multi_reduction <add>, %30, %cst_28 [0] : vector<32x8xf32> to vector<8xf32>
    %32 = vector.shape_cast %31 : vector<8xf32> to vector<1x8xf32>
    %cst_29 = arith.constant 3.200000e+01 : f32
    %33 = vector.broadcast %cst_29 : f32 to vector<1x8xf32>
    %34 = arith.divf %32, %33 : vector<1x8xf32>
    %c0_30 = arith.constant 0 : index
    %c0_31 = arith.constant 0 : index
    %35 = vector.load %arg17[%c0_30, %c0_31] : memref<32x32xf32, #tpu.memory_space<vmem>>, vector<32x32xf32>
    %36 = vector.extract_strided_slice %34 {offsets = [0, 0], sizes = [1, 1], strides = [1, 1]} : vector<1x8xf32> to vector<1x1xf32>
    %c0_32 = arith.constant 0 : index
    %c0_33 = arith.constant 0 : index
    %c0_34 = arith.constant 0 : index
    %37 = vector.load %arg16[%c0_32, %c0_33, %c0_34] : memref<8x32x32xf32, #tpu.memory_space<vmem>>, vector<1x32x32xf32>
    %38 = vector.shape_cast %37 : vector<1x32x32xf32> to vector<32x32xf32>
    %39 = vector.broadcast %36 : vector<1x1xf32> to vector<32x32xf32>
    %40 = arith.mulf %39, %38 : vector<32x32xf32>
    %41 = arith.addf %35, %40 : vector<32x32xf32>
    %42 = vector.extract_strided_slice %34 {offsets = [0, 1], sizes = [1, 1], strides = [1, 1]} : vector<1x8xf32> to vector<1x1xf32>
    %c1 = arith.constant 1 : index
    %c0_35 = arith.constant 0 : index
    %c0_36 = arith.constant 0 : index
    %43 = vector.load %arg16[%c1, %c0_35, %c0_36] : memref<8x32x32xf32, #tpu.memory_space<vmem>>, vector<1x32x32xf32>
    %44 = vector.shape_cast %43 : vector<1x32x32xf32> to vector<32x32xf32>
    %45 = vector.broadcast %42 : vector<1x1xf32> to vector<32x32xf32>
    %46 = arith.mulf %45, %44 : vector<32x32xf32>
    %47 = arith.addf %41, %46 : vector<32x32xf32>
    %48 = vector.extract_strided_slice %34 {offsets = [0, 2], sizes = [1, 1], strides = [1, 1]} : vector<1x8xf32> to vector<1x1xf32>
    %c2 = arith.constant 2 : index
    %c0_37 = arith.constant 0 : index
    %c0_38 = arith.constant 0 : index
    %49 = vector.load %arg16[%c2, %c0_37, %c0_38] : memref<8x32x32xf32, #tpu.memory_space<vmem>>, vector<1x32x32xf32>
    %50 = vector.shape_cast %49 : vector<1x32x32xf32> to vector<32x32xf32>
    %51 = vector.broadcast %48 : vector<1x1xf32> to vector<32x32xf32>
    %52 = arith.mulf %51, %50 : vector<32x32xf32>
    %53 = arith.addf %47, %52 : vector<32x32xf32>
    %54 = vector.extract_strided_slice %34 {offsets = [0, 3], sizes = [1, 1], strides = [1, 1]} : vector<1x8xf32> to vector<1x1xf32>
    %c3 = arith.constant 3 : index
    %c0_39 = arith.constant 0 : index
    %c0_40 = arith.constant 0 : index
    %55 = vector.load %arg16[%c3, %c0_39, %c0_40] : memref<8x32x32xf32, #tpu.memory_space<vmem>>, vector<1x32x32xf32>
    %56 = vector.shape_cast %55 : vector<1x32x32xf32> to vector<32x32xf32>
    %57 = vector.broadcast %54 : vector<1x1xf32> to vector<32x32xf32>
    %58 = arith.mulf %57, %56 : vector<32x32xf32>
    %59 = arith.addf %53, %58 : vector<32x32xf32>
    %60 = vector.extract_strided_slice %34 {offsets = [0, 4], sizes = [1, 1], strides = [1, 1]} : vector<1x8xf32> to vector<1x1xf32>
    %c4 = arith.constant 4 : index
    %c0_41 = arith.constant 0 : index
    %c0_42 = arith.constant 0 : index
    %61 = vector.load %arg16[%c4, %c0_41, %c0_42] : memref<8x32x32xf32, #tpu.memory_space<vmem>>, vector<1x32x32xf32>
    %62 = vector.shape_cast %61 : vector<1x32x32xf32> to vector<32x32xf32>
    %63 = vector.broadcast %60 : vector<1x1xf32> to vector<32x32xf32>
    %64 = arith.mulf %63, %62 : vector<32x32xf32>
    %65 = arith.addf %59, %64 : vector<32x32xf32>
    %66 = vector.extract_strided_slice %34 {offsets = [0, 5], sizes = [1, 1], strides = [1, 1]} : vector<1x8xf32> to vector<1x1xf32>
    %c5 = arith.constant 5 : index
    %c0_43 = arith.constant 0 : index
    %c0_44 = arith.constant 0 : index
    %67 = vector.load %arg16[%c5, %c0_43, %c0_44] : memref<8x32x32xf32, #tpu.memory_space<vmem>>, vector<1x32x32xf32>
    %68 = vector.shape_cast %67 : vector<1x32x32xf32> to vector<32x32xf32>
    %69 = vector.broadcast %66 : vector<1x1xf32> to vector<32x32xf32>
    %70 = arith.mulf %69, %68 : vector<32x32xf32>
    %71 = arith.addf %65, %70 : vector<32x32xf32>
    %72 = vector.extract_strided_slice %34 {offsets = [0, 6], sizes = [1, 1], strides = [1, 1]} : vector<1x8xf32> to vector<1x1xf32>
    %c6 = arith.constant 6 : index
    %c0_45 = arith.constant 0 : index
    %c0_46 = arith.constant 0 : index
    %73 = vector.load %arg16[%c6, %c0_45, %c0_46] : memref<8x32x32xf32, #tpu.memory_space<vmem>>, vector<1x32x32xf32>
    %74 = vector.shape_cast %73 : vector<1x32x32xf32> to vector<32x32xf32>
    %75 = vector.broadcast %72 : vector<1x1xf32> to vector<32x32xf32>
    %76 = arith.mulf %75, %74 : vector<32x32xf32>
    %77 = arith.addf %71, %76 : vector<32x32xf32>
    %78 = vector.extract_strided_slice %34 {offsets = [0, 7], sizes = [1, 1], strides = [1, 1]} : vector<1x8xf32> to vector<1x1xf32>
    %c7 = arith.constant 7 : index
    %c0_47 = arith.constant 0 : index
    %c0_48 = arith.constant 0 : index
    %79 = vector.load %arg16[%c7, %c0_47, %c0_48] : memref<8x32x32xf32, #tpu.memory_space<vmem>>, vector<1x32x32xf32>
    %80 = vector.shape_cast %79 : vector<1x32x32xf32> to vector<32x32xf32>
    %81 = vector.broadcast %78 : vector<1x1xf32> to vector<32x32xf32>
    %82 = arith.mulf %81, %80 : vector<32x32xf32>
    %83 = arith.addf %77, %82 : vector<32x32xf32>
    %c0_49 = arith.constant 0 : index
    %c0_50 = arith.constant 0 : index
    %84 = vector.load %arg3[%c0_49, %c0_50] : memref<16x8xf32, #tpu.memory_space<vmem>>, vector<16x8xf32>
    %cst_51 = arith.constant dense<0.000000e+00> : vector<8xf32>
    %85 = vector.multi_reduction <add>, %84, %cst_51 [0] : vector<16x8xf32> to vector<8xf32>
    %86 = vector.shape_cast %85 : vector<8xf32> to vector<1x8xf32>
    %cst_52 = arith.constant 1.600000e+01 : f32
    %87 = vector.broadcast %cst_52 : f32 to vector<1x8xf32>
    %88 = arith.divf %86, %87 : vector<1x8xf32>
    %c0_53 = arith.constant 0 : index
    %c0_54 = arith.constant 0 : index
    %89 = vector.load %arg19[%c0_53, %c0_54] : memref<32x32xf32, #tpu.memory_space<vmem>>, vector<32x32xf32>
    %90 = vector.extract_strided_slice %88 {offsets = [0, 0], sizes = [1, 1], strides = [1, 1]} : vector<1x8xf32> to vector<1x1xf32>
    %c0_55 = arith.constant 0 : index
    %c0_56 = arith.constant 0 : index
    %c0_57 = arith.constant 0 : index
    %91 = vector.load %arg18[%c0_55, %c0_56, %c0_57] : memref<8x32x32xf32, #tpu.memory_space<vmem>>, vector<1x32x32xf32>
    %92 = vector.shape_cast %91 : vector<1x32x32xf32> to vector<32x32xf32>
    %93 = vector.broadcast %90 : vector<1x1xf32> to vector<32x32xf32>
    %94 = arith.mulf %93, %92 : vector<32x32xf32>
    %95 = arith.addf %89, %94 : vector<32x32xf32>
    %96 = vector.extract_strided_slice %88 {offsets = [0, 1], sizes = [1, 1], strides = [1, 1]} : vector<1x8xf32> to vector<1x1xf32>
    %c1_58 = arith.constant 1 : index
    %c0_59 = arith.constant 0 : index
    %c0_60 = arith.constant 0 : index
    %97 = vector.load %arg18[%c1_58, %c0_59, %c0_60] : memref<8x32x32xf32, #tpu.memory_space<vmem>>, vector<1x32x32xf32>
    %98 = vector.shape_cast %97 : vector<1x32x32xf32> to vector<32x32xf32>
    %99 = vector.broadcast %96 : vector<1x1xf32> to vector<32x32xf32>
    %100 = arith.mulf %99, %98 : vector<32x32xf32>
    %101 = arith.addf %95, %100 : vector<32x32xf32>
    %102 = vector.extract_strided_slice %88 {offsets = [0, 2], sizes = [1, 1], strides = [1, 1]} : vector<1x8xf32> to vector<1x1xf32>
    %c2_61 = arith.constant 2 : index
    %c0_62 = arith.constant 0 : index
    %c0_63 = arith.constant 0 : index
    %103 = vector.load %arg18[%c2_61, %c0_62, %c0_63] : memref<8x32x32xf32, #tpu.memory_space<vmem>>, vector<1x32x32xf32>
    %104 = vector.shape_cast %103 : vector<1x32x32xf32> to vector<32x32xf32>
    %105 = vector.broadcast %102 : vector<1x1xf32> to vector<32x32xf32>
    %106 = arith.mulf %105, %104 : vector<32x32xf32>
    %107 = arith.addf %101, %106 : vector<32x32xf32>
    %108 = vector.extract_strided_slice %88 {offsets = [0, 3], sizes = [1, 1], strides = [1, 1]} : vector<1x8xf32> to vector<1x1xf32>
    %c3_64 = arith.constant 3 : index
    %c0_65 = arith.constant 0 : index
    %c0_66 = arith.constant 0 : index
    %109 = vector.load %arg18[%c3_64, %c0_65, %c0_66] : memref<8x32x32xf32, #tpu.memory_space<vmem>>, vector<1x32x32xf32>
    %110 = vector.shape_cast %109 : vector<1x32x32xf32> to vector<32x32xf32>
    %111 = vector.broadcast %108 : vector<1x1xf32> to vector<32x32xf32>
    %112 = arith.mulf %111, %110 : vector<32x32xf32>
    %113 = arith.addf %107, %112 : vector<32x32xf32>
    %114 = vector.extract_strided_slice %88 {offsets = [0, 4], sizes = [1, 1], strides = [1, 1]} : vector<1x8xf32> to vector<1x1xf32>
    %c4_67 = arith.constant 4 : index
    %c0_68 = arith.constant 0 : index
    %c0_69 = arith.constant 0 : index
    %115 = vector.load %arg18[%c4_67, %c0_68, %c0_69] : memref<8x32x32xf32, #tpu.memory_space<vmem>>, vector<1x32x32xf32>
    %116 = vector.shape_cast %115 : vector<1x32x32xf32> to vector<32x32xf32>
    %117 = vector.broadcast %114 : vector<1x1xf32> to vector<32x32xf32>
    %118 = arith.mulf %117, %116 : vector<32x32xf32>
    %119 = arith.addf %113, %118 : vector<32x32xf32>
    %120 = vector.extract_strided_slice %88 {offsets = [0, 5], sizes = [1, 1], strides = [1, 1]} : vector<1x8xf32> to vector<1x1xf32>
    %c5_70 = arith.constant 5 : index
    %c0_71 = arith.constant 0 : index
    %c0_72 = arith.constant 0 : index
    %121 = vector.load %arg18[%c5_70, %c0_71, %c0_72] : memref<8x32x32xf32, #tpu.memory_space<vmem>>, vector<1x32x32xf32>
    %122 = vector.shape_cast %121 : vector<1x32x32xf32> to vector<32x32xf32>
    %123 = vector.broadcast %120 : vector<1x1xf32> to vector<32x32xf32>
    %124 = arith.mulf %123, %122 : vector<32x32xf32>
    %125 = arith.addf %119, %124 : vector<32x32xf32>
    %126 = vector.extract_strided_slice %88 {offsets = [0, 6], sizes = [1, 1], strides = [1, 1]} : vector<1x8xf32> to vector<1x1xf32>
    %c6_73 = arith.constant 6 : index
    %c0_74 = arith.constant 0 : index
    %c0_75 = arith.constant 0 : index
    %127 = vector.load %arg18[%c6_73, %c0_74, %c0_75] : memref<8x32x32xf32, #tpu.memory_space<vmem>>, vector<1x32x32xf32>
    %128 = vector.shape_cast %127 : vector<1x32x32xf32> to vector<32x32xf32>
    %129 = vector.broadcast %126 : vector<1x1xf32> to vector<32x32xf32>
    %130 = arith.mulf %129, %128 : vector<32x32xf32>
    %131 = arith.addf %125, %130 : vector<32x32xf32>
    %132 = vector.extract_strided_slice %88 {offsets = [0, 7], sizes = [1, 1], strides = [1, 1]} : vector<1x8xf32> to vector<1x1xf32>
    %c7_76 = arith.constant 7 : index
    %c0_77 = arith.constant 0 : index
    %c0_78 = arith.constant 0 : index
    %133 = vector.load %arg18[%c7_76, %c0_77, %c0_78] : memref<8x32x32xf32, #tpu.memory_space<vmem>>, vector<1x32x32xf32>
    %134 = vector.shape_cast %133 : vector<1x32x32xf32> to vector<32x32xf32>
    %135 = vector.broadcast %132 : vector<1x1xf32> to vector<32x32xf32>
    %136 = arith.mulf %135, %134 : vector<32x32xf32>
    %137 = arith.addf %131, %136 : vector<32x32xf32>
    %c0_79 = arith.constant 0 : index
    %c0_80 = arith.constant 0 : index
    %138 = vector.load %arg5[%c0_79, %c0_80] : memref<16x16xf32, #tpu.memory_space<vmem>>, vector<16x16xf32>
    %c0_81 = arith.constant 0 : index
    %c0_82 = arith.constant 0 : index
    %139 = vector.load %arg6[%c0_81, %c0_82] : memref<8x8xf32, #tpu.memory_space<vmem>>, vector<8x8xf32>
    %c0_83 = arith.constant 0 : index
    %c0_84 = arith.constant 0 : index
    %140 = vector.load %arg7[%c0_83, %c0_84] : memref<8x16xf32, #tpu.memory_space<vmem>>, vector<8x16xf32>
    %c0_85 = arith.constant 0 : index
    %c0_86 = arith.constant 0 : index
    %141 = vector.load %arg20[%c0_85, %c0_86] : memref<32x32xf32, #tpu.memory_space<vmem>>, vector<32x32xf32>
    %c0_87 = arith.constant 0 : index
    %c0_88 = arith.constant 0 : index
    %142 = vector.load %arg21[%c0_87, %c0_88] : memref<32x64xf32, #tpu.memory_space<vmem>>, vector<32x64xf32>
    %c0_89 = arith.constant 0 : index
    %c0_90 = arith.constant 0 : index
    %143 = vector.load %arg22[%c0_89, %c0_90] : memref<32x32xf32, #tpu.memory_space<vmem>>, vector<32x32xf32>
    %c0_91 = arith.constant 0 : index
    %c0_92 = arith.constant 0 : index
    %144 = vector.load %arg23[%c0_91, %c0_92] : memref<1x32xf32, #tpu.memory_space<vmem>>, vector<1x32xf32>
    %c0_93 = arith.constant 0 : index
    %c0_94 = arith.constant 0 : index
    %145 = vector.load %arg24[%c0_93, %c0_94] : memref<32x32xf32, #tpu.memory_space<vmem>>, vector<32x32xf32>
    %c0_95 = arith.constant 0 : index
    %c0_96 = arith.constant 0 : index
    %146 = vector.load %arg25[%c0_95, %c0_96] : memref<32x96xf32, #tpu.memory_space<vmem>>, vector<32x96xf32>
    %c0_97 = arith.constant 0 : index
    %c0_98 = arith.constant 0 : index
    %147 = vector.load %arg26[%c0_97, %c0_98] : memref<32x96xf32, #tpu.memory_space<vmem>>, vector<32x96xf32>
    %c0_99 = arith.constant 0 : index
    %c0_100 = arith.constant 0 : index
    %148 = vector.load %arg27[%c0_99, %c0_100] : memref<1x96xf32, #tpu.memory_space<vmem>>, vector<1x96xf32>
    %c0_101 = arith.constant 0 : index
    %c0_102 = arith.constant 0 : index
    %149 = vector.load %arg28[%c0_101, %c0_102] : memref<1x96xf32, #tpu.memory_space<vmem>>, vector<1x96xf32>
    %c0_103 = arith.constant 0 : index
    %c0_104 = arith.constant 0 : index
    %150 = vector.load %arg29[%c0_103, %c0_104] : memref<32x96xf32, #tpu.memory_space<vmem>>, vector<32x96xf32>
    %c0_105 = arith.constant 0 : index
    %c0_106 = arith.constant 0 : index
    %151 = vector.load %arg30[%c0_105, %c0_106] : memref<32x96xf32, #tpu.memory_space<vmem>>, vector<32x96xf32>
    %c0_107 = arith.constant 0 : index
    %c0_108 = arith.constant 0 : index
    %152 = vector.load %arg31[%c0_107, %c0_108] : memref<1x96xf32, #tpu.memory_space<vmem>>, vector<1x96xf32>
    %c0_109 = arith.constant 0 : index
    %c0_110 = arith.constant 0 : index
    %153 = vector.load %arg32[%c0_109, %c0_110] : memref<1x96xf32, #tpu.memory_space<vmem>>, vector<1x96xf32>
    %c0_i32 = arith.constant 0 : i32
    %cst_111 = arith.constant dense<0.000000e+00> : vector<8x32xf32>
    %154 = tpu.matmul %139, %29, %cst_111 {dimension_numbers = #tpu.dot_dimension_numbers<[1], [0], [0], [1], [0, 0, 1, 1], [], []>} : vector<8x8xf32>, vector<8x32xf32>, vector<8x32xf32> -> vector<8x32xf32>
    %cst_112 = arith.constant dense<0.000000e+00> : vector<8x32xf32>
    %155 = tpu.matmul %154, %137, %cst_112 {dimension_numbers = #tpu.dot_dimension_numbers<[1], [0], [0], [1], [0, 0, 1, 1], [], []>} : vector<8x32xf32>, vector<32x32xf32>, vector<8x32xf32> -> vector<8x32xf32>
    %cst_113 = arith.constant 0.000000e+00 : f32
    %156 = vector.broadcast %cst_113 : f32 to vector<8x32xf32>
    %157 = arith.maximumf %155, %156 : vector<8x32xf32>
    %158 = arith.addf %157, %29 : vector<8x32xf32>
    %cst_114 = arith.constant dense<0.000000e+00> : vector<16x32xf32>
    %159 = tpu.matmul %138, %14, %cst_114 {dimension_numbers = #tpu.dot_dimension_numbers<[1], [0], [0], [1], [0, 0, 1, 1], [], []>} : vector<16x16xf32>, vector<16x32xf32>, vector<16x32xf32> -> vector<16x32xf32>
    %cst_115 = arith.constant dense<0.000000e+00> : vector<16x32xf32>
    %160 = tpu.matmul %159, %83, %cst_115 {dimension_numbers = #tpu.dot_dimension_numbers<[1], [0], [0], [1], [0, 0, 1, 1], [], []>} : vector<16x32xf32>, vector<32x32xf32>, vector<16x32xf32> -> vector<16x32xf32>
    %cst_116 = arith.constant 0.000000e+00 : f32
    %161 = vector.broadcast %cst_116 : f32 to vector<16x32xf32>
    %162 = arith.maximumf %160, %161 : vector<16x32xf32>
    %163 = arith.addf %162, %14 : vector<16x32xf32>
    %cst_117 = arith.constant dense<0.000000e+00> : vector<8x32xf32>
    %164 = tpu.matmul %140, %163, %cst_117 {dimension_numbers = #tpu.dot_dimension_numbers<[1], [0], [0], [1], [0, 0, 1, 1], [], []>} : vector<8x16xf32>, vector<16x32xf32>, vector<8x32xf32> -> vector<8x32xf32>
    %cst_118 = arith.constant dense<0.000000e+00> : vector<8x32xf32>
    %165 = tpu.matmul %29, %141, %cst_118 {dimension_numbers = #tpu.dot_dimension_numbers<[1], [0], [0], [1], [0, 0, 1, 1], [], []>} : vector<8x32xf32>, vector<32x32xf32>, vector<8x32xf32> -> vector<8x32xf32>
    %166 = tpu.concatenate %164, %158 in 0 : vector<8x32xf32>, vector<8x32xf32> -> vector<16x32xf32>
    %cst_119 = arith.constant dense<0.000000e+00> : vector<16x64xf32>
    %167 = tpu.matmul %166, %142, %cst_119 {dimension_numbers = #tpu.dot_dimension_numbers<[1], [0], [0], [1], [0, 0, 1, 1], [], []>} : vector<16x32xf32>, vector<32x64xf32>, vector<16x64xf32> -> vector<16x64xf32>
    %168 = vector.extract_strided_slice %167 {offsets = [0, 0], sizes = [8, 32], strides = [1, 1]} : vector<16x64xf32> to vector<8x32xf32>
    %169 = vector.extract_strided_slice %167 {offsets = [0, 32], sizes = [8, 32], strides = [1, 1]} : vector<16x64xf32> to vector<8x32xf32>
    %170 = vector.extract_strided_slice %167 {offsets = [8, 0], sizes = [8, 32], strides = [1, 1]} : vector<16x64xf32> to vector<8x32xf32>
    %171 = vector.extract_strided_slice %167 {offsets = [8, 32], sizes = [8, 32], strides = [1, 1]} : vector<16x64xf32> to vector<8x32xf32>
    %172 = arith.mulf %165, %168 : vector<8x32xf32>
    %cst_120 = arith.constant dense<0.000000e+00> : vector<8x32xf32>
    %173 = tpu.matmul %172, %145, %cst_120 {dimension_numbers = #tpu.dot_dimension_numbers<[1], [0], [0], [1], [0, 0, 1, 1], [], []>} : vector<8x32xf32>, vector<32x32xf32>, vector<8x32xf32> -> vector<8x32xf32>
    %cst_121 = arith.constant 1.250000e-01 : f32
    %174 = vector.broadcast %cst_121 : f32 to vector<8x32xf32>
    %175 = arith.mulf %173, %174 : vector<8x32xf32>
    %176 = arith.mulf %165, %170 : vector<8x32xf32>
    %cst_122 = arith.constant dense<0.000000e+00> : vector<8x32xf32>
    %177 = tpu.matmul %176, %145, %cst_122 {dimension_numbers = #tpu.dot_dimension_numbers<[1], [0], [0], [1], [0, 0, 1, 1], [], []>} : vector<8x32xf32>, vector<32x32xf32>, vector<8x32xf32> -> vector<8x32xf32>
    %cst_123 = arith.constant 1.250000e-01 : f32
    %178 = vector.broadcast %cst_123 : f32 to vector<8x32xf32>
    %179 = arith.mulf %177, %178 : vector<8x32xf32>
    %180 = arith.maximumf %175, %179 : vector<8x32xf32>
    %181 = arith.subf %175, %180 : vector<8x32xf32>
    %182 = math.exp %181 : vector<8x32xf32>
    %183 = arith.subf %179, %180 : vector<8x32xf32>
    %184 = math.exp %183 : vector<8x32xf32>
    %185 = arith.mulf %182, %169 : vector<8x32xf32>
    %186 = arith.mulf %184, %171 : vector<8x32xf32>
    %187 = arith.addf %185, %186 : vector<8x32xf32>
    %188 = arith.addf %182, %184 : vector<8x32xf32>
    %189 = arith.divf %187, %188 : vector<8x32xf32>
    %cst_124 = arith.constant dense<0.000000e+00> : vector<8x32xf32>
    %190 = tpu.matmul %189, %143, %cst_124 {dimension_numbers = #tpu.dot_dimension_numbers<[1], [0], [0], [1], [0, 0, 1, 1], [], []>} : vector<8x32xf32>, vector<32x32xf32>, vector<8x32xf32> -> vector<8x32xf32>
    %191 = vector.broadcast %144 : vector<1x32xf32> to vector<8x32xf32>
    %192 = arith.addf %190, %191 : vector<8x32xf32>
    %cst_125 = arith.constant dense<0.000000e+00> : vector<8x96xf32>
    %193 = tpu.matmul %192, %146, %cst_125 {dimension_numbers = #tpu.dot_dimension_numbers<[1], [0], [0], [1], [0, 0, 1, 1], [], []>} : vector<8x32xf32>, vector<32x96xf32>, vector<8x96xf32> -> vector<8x96xf32>
    %194 = vector.broadcast %148 : vector<1x96xf32> to vector<8x96xf32>
    %195 = arith.addf %193, %194 : vector<8x96xf32>
    %cst_126 = arith.constant dense<0.000000e+00> : vector<8x96xf32>
    %196 = tpu.matmul %29, %147, %cst_126 {dimension_numbers = #tpu.dot_dimension_numbers<[1], [0], [0], [1], [0, 0, 1, 1], [], []>} : vector<8x32xf32>, vector<32x96xf32>, vector<8x96xf32> -> vector<8x96xf32>
    %197 = vector.broadcast %149 : vector<1x96xf32> to vector<8x96xf32>
    %198 = arith.addf %196, %197 : vector<8x96xf32>
    %199 = vector.extract_strided_slice %195 {offsets = [0, 0], sizes = [8, 32], strides = [1, 1]} : vector<8x96xf32> to vector<8x32xf32>
    %200 = vector.extract_strided_slice %198 {offsets = [0, 0], sizes = [8, 32], strides = [1, 1]} : vector<8x96xf32> to vector<8x32xf32>
    %201 = arith.addf %199, %200 : vector<8x32xf32>
    %202 = arith.negf %201 : vector<8x32xf32>
    %203 = math.exp %202 : vector<8x32xf32>
    %cst_127 = arith.constant 1.000000e+00 : f32
    %204 = vector.broadcast %cst_127 : f32 to vector<8x32xf32>
    %205 = arith.addf %204, %203 : vector<8x32xf32>
    %206 = arith.divf %204, %205 : vector<8x32xf32>
    %207 = vector.extract_strided_slice %195 {offsets = [0, 32], sizes = [8, 32], strides = [1, 1]} : vector<8x96xf32> to vector<8x32xf32>
    %208 = vector.extract_strided_slice %198 {offsets = [0, 32], sizes = [8, 32], strides = [1, 1]} : vector<8x96xf32> to vector<8x32xf32>
    %209 = arith.addf %207, %208 : vector<8x32xf32>
    %210 = arith.negf %209 : vector<8x32xf32>
    %211 = math.exp %210 : vector<8x32xf32>
    %cst_128 = arith.constant 1.000000e+00 : f32
    %212 = vector.broadcast %cst_128 : f32 to vector<8x32xf32>
    %213 = arith.addf %212, %211 : vector<8x32xf32>
    %214 = arith.divf %212, %213 : vector<8x32xf32>
    %215 = vector.extract_strided_slice %195 {offsets = [0, 64], sizes = [8, 32], strides = [1, 1]} : vector<8x96xf32> to vector<8x32xf32>
    %216 = vector.extract_strided_slice %198 {offsets = [0, 64], sizes = [8, 32], strides = [1, 1]} : vector<8x96xf32> to vector<8x32xf32>
    %217 = arith.mulf %206, %216 : vector<8x32xf32>
    %218 = arith.addf %215, %217 : vector<8x32xf32>
    %219 = math.tanh %218 : vector<8x32xf32>
    %cst_129 = arith.constant 1.000000e+00 : f32
    %220 = vector.broadcast %cst_129 : f32 to vector<8x32xf32>
    %221 = arith.subf %220, %214 : vector<8x32xf32>
    %222 = arith.mulf %221, %219 : vector<8x32xf32>
    %223 = arith.mulf %214, %29 : vector<8x32xf32>
    %224 = arith.addf %222, %223 : vector<8x32xf32>
    %cst_130 = arith.constant dense<0.000000e+00> : vector<16x96xf32>
    %225 = tpu.matmul %163, %150, %cst_130 {dimension_numbers = #tpu.dot_dimension_numbers<[1], [0], [0], [1], [0, 0, 1, 1], [], []>} : vector<16x32xf32>, vector<32x96xf32>, vector<16x96xf32> -> vector<16x96xf32>
    %226 = vector.broadcast %152 : vector<1x96xf32> to vector<16x96xf32>
    %227 = arith.addf %225, %226 : vector<16x96xf32>
    %cst_131 = arith.constant dense<0.000000e+00> : vector<16x96xf32>
    %228 = tpu.matmul %14, %151, %cst_131 {dimension_numbers = #tpu.dot_dimension_numbers<[1], [0], [0], [1], [0, 0, 1, 1], [], []>} : vector<16x32xf32>, vector<32x96xf32>, vector<16x96xf32> -> vector<16x96xf32>
    %229 = vector.broadcast %153 : vector<1x96xf32> to vector<16x96xf32>
    %230 = arith.addf %228, %229 : vector<16x96xf32>
    %231 = vector.extract_strided_slice %227 {offsets = [0, 0], sizes = [16, 32], strides = [1, 1]} : vector<16x96xf32> to vector<16x32xf32>
    %232 = vector.extract_strided_slice %230 {offsets = [0, 0], sizes = [16, 32], strides = [1, 1]} : vector<16x96xf32> to vector<16x32xf32>
    %233 = arith.addf %231, %232 : vector<16x32xf32>
    %234 = arith.negf %233 : vector<16x32xf32>
    %235 = math.exp %234 : vector<16x32xf32>
    %cst_132 = arith.constant 1.000000e+00 : f32
    %236 = vector.broadcast %cst_132 : f32 to vector<16x32xf32>
    %237 = arith.addf %236, %235 : vector<16x32xf32>
    %238 = arith.divf %236, %237 : vector<16x32xf32>
    %239 = vector.extract_strided_slice %227 {offsets = [0, 32], sizes = [16, 32], strides = [1, 1]} : vector<16x96xf32> to vector<16x32xf32>
    %240 = vector.extract_strided_slice %230 {offsets = [0, 32], sizes = [16, 32], strides = [1, 1]} : vector<16x96xf32> to vector<16x32xf32>
    %241 = arith.addf %239, %240 : vector<16x32xf32>
    %242 = arith.negf %241 : vector<16x32xf32>
    %243 = math.exp %242 : vector<16x32xf32>
    %cst_133 = arith.constant 1.000000e+00 : f32
    %244 = vector.broadcast %cst_133 : f32 to vector<16x32xf32>
    %245 = arith.addf %244, %243 : vector<16x32xf32>
    %246 = arith.divf %244, %245 : vector<16x32xf32>
    %247 = vector.extract_strided_slice %227 {offsets = [0, 64], sizes = [16, 32], strides = [1, 1]} : vector<16x96xf32> to vector<16x32xf32>
    %248 = vector.extract_strided_slice %230 {offsets = [0, 64], sizes = [16, 32], strides = [1, 1]} : vector<16x96xf32> to vector<16x32xf32>
    %249 = arith.mulf %238, %248 : vector<16x32xf32>
    %250 = arith.addf %247, %249 : vector<16x32xf32>
    %251 = math.tanh %250 : vector<16x32xf32>
    %cst_134 = arith.constant 1.000000e+00 : f32
    %252 = vector.broadcast %cst_134 : f32 to vector<16x32xf32>
    %253 = arith.subf %252, %246 : vector<16x32xf32>
    %254 = arith.mulf %253, %251 : vector<16x32xf32>
    %255 = arith.mulf %246, %14 : vector<16x32xf32>
    %256 = arith.addf %254, %255 : vector<16x32xf32>
    %c1_i32 = arith.constant 1 : i32
    %cst_135 = arith.constant dense<0.000000e+00> : vector<8x32xf32>
    %257 = tpu.matmul %139, %224, %cst_135 {dimension_numbers = #tpu.dot_dimension_numbers<[1], [0], [0], [1], [0, 0, 1, 1], [], []>} : vector<8x8xf32>, vector<8x32xf32>, vector<8x32xf32> -> vector<8x32xf32>
    %cst_136 = arith.constant dense<0.000000e+00> : vector<8x32xf32>
    %258 = tpu.matmul %257, %137, %cst_136 {dimension_numbers = #tpu.dot_dimension_numbers<[1], [0], [0], [1], [0, 0, 1, 1], [], []>} : vector<8x32xf32>, vector<32x32xf32>, vector<8x32xf32> -> vector<8x32xf32>
    %cst_137 = arith.constant 0.000000e+00 : f32
    %259 = vector.broadcast %cst_137 : f32 to vector<8x32xf32>
    %260 = arith.maximumf %258, %259 : vector<8x32xf32>
    %261 = arith.addf %260, %224 : vector<8x32xf32>
    %cst_138 = arith.constant dense<0.000000e+00> : vector<16x32xf32>
    %262 = tpu.matmul %138, %256, %cst_138 {dimension_numbers = #tpu.dot_dimension_numbers<[1], [0], [0], [1], [0, 0, 1, 1], [], []>} : vector<16x16xf32>, vector<16x32xf32>, vector<16x32xf32> -> vector<16x32xf32>
    %cst_139 = arith.constant dense<0.000000e+00> : vector<16x32xf32>
    %263 = tpu.matmul %262, %83, %cst_139 {dimension_numbers = #tpu.dot_dimension_numbers<[1], [0], [0], [1], [0, 0, 1, 1], [], []>} : vector<16x32xf32>, vector<32x32xf32>, vector<16x32xf32> -> vector<16x32xf32>
    %cst_140 = arith.constant 0.000000e+00 : f32
    %264 = vector.broadcast %cst_140 : f32 to vector<16x32xf32>
    %265 = arith.maximumf %263, %264 : vector<16x32xf32>
    %266 = arith.addf %265, %256 : vector<16x32xf32>
    %cst_141 = arith.constant dense<0.000000e+00> : vector<8x32xf32>
    %267 = tpu.matmul %140, %266, %cst_141 {dimension_numbers = #tpu.dot_dimension_numbers<[1], [0], [0], [1], [0, 0, 1, 1], [], []>} : vector<8x16xf32>, vector<16x32xf32>, vector<8x32xf32> -> vector<8x32xf32>
    %cst_142 = arith.constant dense<0.000000e+00> : vector<8x32xf32>
    %268 = tpu.matmul %224, %141, %cst_142 {dimension_numbers = #tpu.dot_dimension_numbers<[1], [0], [0], [1], [0, 0, 1, 1], [], []>} : vector<8x32xf32>, vector<32x32xf32>, vector<8x32xf32> -> vector<8x32xf32>
    %269 = tpu.concatenate %267, %261 in 0 : vector<8x32xf32>, vector<8x32xf32> -> vector<16x32xf32>
    %cst_143 = arith.constant dense<0.000000e+00> : vector<16x64xf32>
    %270 = tpu.matmul %269, %142, %cst_143 {dimension_numbers = #tpu.dot_dimension_numbers<[1], [0], [0], [1], [0, 0, 1, 1], [], []>} : vector<16x32xf32>, vector<32x64xf32>, vector<16x64xf32> -> vector<16x64xf32>
    %271 = vector.extract_strided_slice %270 {offsets = [0, 0], sizes = [8, 32], strides = [1, 1]} : vector<16x64xf32> to vector<8x32xf32>
    %272 = vector.extract_strided_slice %270 {offsets = [0, 32], sizes = [8, 32], strides = [1, 1]} : vector<16x64xf32> to vector<8x32xf32>
    %273 = vector.extract_strided_slice %270 {offsets = [8, 0], sizes = [8, 32], strides = [1, 1]} : vector<16x64xf32> to vector<8x32xf32>
    %274 = vector.extract_strided_slice %270 {offsets = [8, 32], sizes = [8, 32], strides = [1, 1]} : vector<16x64xf32> to vector<8x32xf32>
    %275 = arith.mulf %268, %271 : vector<8x32xf32>
    %cst_144 = arith.constant dense<0.000000e+00> : vector<8x32xf32>
    %276 = tpu.matmul %275, %145, %cst_144 {dimension_numbers = #tpu.dot_dimension_numbers<[1], [0], [0], [1], [0, 0, 1, 1], [], []>} : vector<8x32xf32>, vector<32x32xf32>, vector<8x32xf32> -> vector<8x32xf32>
    %cst_145 = arith.constant 1.250000e-01 : f32
    %277 = vector.broadcast %cst_145 : f32 to vector<8x32xf32>
    %278 = arith.mulf %276, %277 : vector<8x32xf32>
    %279 = arith.mulf %268, %273 : vector<8x32xf32>
    %cst_146 = arith.constant dense<0.000000e+00> : vector<8x32xf32>
    %280 = tpu.matmul %279, %145, %cst_146 {dimension_numbers = #tpu.dot_dimension_numbers<[1], [0], [0], [1], [0, 0, 1, 1], [], []>} : vector<8x32xf32>, vector<32x32xf32>, vector<8x32xf32> -> vector<8x32xf32>
    %cst_147 = arith.constant 1.250000e-01 : f32
    %281 = vector.broadcast %cst_147 : f32 to vector<8x32xf32>
    %282 = arith.mulf %280, %281 : vector<8x32xf32>
    %283 = arith.maximumf %278, %282 : vector<8x32xf32>
    %284 = arith.subf %278, %283 : vector<8x32xf32>
    %285 = math.exp %284 : vector<8x32xf32>
    %286 = arith.subf %282, %283 : vector<8x32xf32>
    %287 = math.exp %286 : vector<8x32xf32>
    %288 = arith.mulf %285, %272 : vector<8x32xf32>
    %289 = arith.mulf %287, %274 : vector<8x32xf32>
    %290 = arith.addf %288, %289 : vector<8x32xf32>
    %291 = arith.addf %285, %287 : vector<8x32xf32>
    %292 = arith.divf %290, %291 : vector<8x32xf32>
    %cst_148 = arith.constant dense<0.000000e+00> : vector<8x32xf32>
    %293 = tpu.matmul %292, %143, %cst_148 {dimension_numbers = #tpu.dot_dimension_numbers<[1], [0], [0], [1], [0, 0, 1, 1], [], []>} : vector<8x32xf32>, vector<32x32xf32>, vector<8x32xf32> -> vector<8x32xf32>
    %294 = vector.broadcast %144 : vector<1x32xf32> to vector<8x32xf32>
    %295 = arith.addf %293, %294 : vector<8x32xf32>
    %cst_149 = arith.constant dense<0.000000e+00> : vector<8x96xf32>
    %296 = tpu.matmul %295, %146, %cst_149 {dimension_numbers = #tpu.dot_dimension_numbers<[1], [0], [0], [1], [0, 0, 1, 1], [], []>} : vector<8x32xf32>, vector<32x96xf32>, vector<8x96xf32> -> vector<8x96xf32>
    %297 = vector.broadcast %148 : vector<1x96xf32> to vector<8x96xf32>
    %298 = arith.addf %296, %297 : vector<8x96xf32>
    %cst_150 = arith.constant dense<0.000000e+00> : vector<8x96xf32>
    %299 = tpu.matmul %224, %147, %cst_150 {dimension_numbers = #tpu.dot_dimension_numbers<[1], [0], [0], [1], [0, 0, 1, 1], [], []>} : vector<8x32xf32>, vector<32x96xf32>, vector<8x96xf32> -> vector<8x96xf32>
    %300 = vector.broadcast %149 : vector<1x96xf32> to vector<8x96xf32>
    %301 = arith.addf %299, %300 : vector<8x96xf32>
    %302 = vector.extract_strided_slice %298 {offsets = [0, 0], sizes = [8, 32], strides = [1, 1]} : vector<8x96xf32> to vector<8x32xf32>
    %303 = vector.extract_strided_slice %301 {offsets = [0, 0], sizes = [8, 32], strides = [1, 1]} : vector<8x96xf32> to vector<8x32xf32>
    %304 = arith.addf %302, %303 : vector<8x32xf32>
    %305 = arith.negf %304 : vector<8x32xf32>
    %306 = math.exp %305 : vector<8x32xf32>
    %cst_151 = arith.constant 1.000000e+00 : f32
    %307 = vector.broadcast %cst_151 : f32 to vector<8x32xf32>
    %308 = arith.addf %307, %306 : vector<8x32xf32>
    %309 = arith.divf %307, %308 : vector<8x32xf32>
    %310 = vector.extract_strided_slice %298 {offsets = [0, 32], sizes = [8, 32], strides = [1, 1]} : vector<8x96xf32> to vector<8x32xf32>
    %311 = vector.extract_strided_slice %301 {offsets = [0, 32], sizes = [8, 32], strides = [1, 1]} : vector<8x96xf32> to vector<8x32xf32>
    %312 = arith.addf %310, %311 : vector<8x32xf32>
    %313 = arith.negf %312 : vector<8x32xf32>
    %314 = math.exp %313 : vector<8x32xf32>
    %cst_152 = arith.constant 1.000000e+00 : f32
    %315 = vector.broadcast %cst_152 : f32 to vector<8x32xf32>
    %316 = arith.addf %315, %314 : vector<8x32xf32>
    %317 = arith.divf %315, %316 : vector<8x32xf32>
    %318 = vector.extract_strided_slice %298 {offsets = [0, 64], sizes = [8, 32], strides = [1, 1]} : vector<8x96xf32> to vector<8x32xf32>
    %319 = vector.extract_strided_slice %301 {offsets = [0, 64], sizes = [8, 32], strides = [1, 1]} : vector<8x96xf32> to vector<8x32xf32>
    %320 = arith.mulf %309, %319 : vector<8x32xf32>
    %321 = arith.addf %318, %320 : vector<8x32xf32>
    %322 = math.tanh %321 : vector<8x32xf32>
    %cst_153 = arith.constant 1.000000e+00 : f32
    %323 = vector.broadcast %cst_153 : f32 to vector<8x32xf32>
    %324 = arith.subf %323, %317 : vector<8x32xf32>
    %325 = arith.mulf %324, %322 : vector<8x32xf32>
    %326 = arith.mulf %317, %224 : vector<8x32xf32>
    %327 = arith.addf %325, %326 : vector<8x32xf32>
    %cst_154 = arith.constant dense<0.000000e+00> : vector<16x96xf32>
    %328 = tpu.matmul %266, %150, %cst_154 {dimension_numbers = #tpu.dot_dimension_numbers<[1], [0], [0], [1], [0, 0, 1, 1], [], []>} : vector<16x32xf32>, vector<32x96xf32>, vector<16x96xf32> -> vector<16x96xf32>
    %329 = vector.broadcast %152 : vector<1x96xf32> to vector<16x96xf32>
    %330 = arith.addf %328, %329 : vector<16x96xf32>
    %cst_155 = arith.constant dense<0.000000e+00> : vector<16x96xf32>
    %331 = tpu.matmul %256, %151, %cst_155 {dimension_numbers = #tpu.dot_dimension_numbers<[1], [0], [0], [1], [0, 0, 1, 1], [], []>} : vector<16x32xf32>, vector<32x96xf32>, vector<16x96xf32> -> vector<16x96xf32>
    %332 = vector.broadcast %153 : vector<1x96xf32> to vector<16x96xf32>
    %333 = arith.addf %331, %332 : vector<16x96xf32>
    %334 = vector.extract_strided_slice %330 {offsets = [0, 0], sizes = [16, 32], strides = [1, 1]} : vector<16x96xf32> to vector<16x32xf32>
    %335 = vector.extract_strided_slice %333 {offsets = [0, 0], sizes = [16, 32], strides = [1, 1]} : vector<16x96xf32> to vector<16x32xf32>
    %336 = arith.addf %334, %335 : vector<16x32xf32>
    %337 = arith.negf %336 : vector<16x32xf32>
    %338 = math.exp %337 : vector<16x32xf32>
    %cst_156 = arith.constant 1.000000e+00 : f32
    %339 = vector.broadcast %cst_156 : f32 to vector<16x32xf32>
    %340 = arith.addf %339, %338 : vector<16x32xf32>
    %341 = arith.divf %339, %340 : vector<16x32xf32>
    %342 = vector.extract_strided_slice %330 {offsets = [0, 32], sizes = [16, 32], strides = [1, 1]} : vector<16x96xf32> to vector<16x32xf32>
    %343 = vector.extract_strided_slice %333 {offsets = [0, 32], sizes = [16, 32], strides = [1, 1]} : vector<16x96xf32> to vector<16x32xf32>
    %344 = arith.addf %342, %343 : vector<16x32xf32>
    %345 = arith.negf %344 : vector<16x32xf32>
    %346 = math.exp %345 : vector<16x32xf32>
    %cst_157 = arith.constant 1.000000e+00 : f32
    %347 = vector.broadcast %cst_157 : f32 to vector<16x32xf32>
    %348 = arith.addf %347, %346 : vector<16x32xf32>
    %349 = arith.divf %347, %348 : vector<16x32xf32>
    %350 = vector.extract_strided_slice %330 {offsets = [0, 64], sizes = [16, 32], strides = [1, 1]} : vector<16x96xf32> to vector<16x32xf32>
    %351 = vector.extract_strided_slice %333 {offsets = [0, 64], sizes = [16, 32], strides = [1, 1]} : vector<16x96xf32> to vector<16x32xf32>
    %352 = arith.mulf %341, %351 : vector<16x32xf32>
    %353 = arith.addf %350, %352 : vector<16x32xf32>
    %354 = math.tanh %353 : vector<16x32xf32>
    %cst_158 = arith.constant 1.000000e+00 : f32
    %355 = vector.broadcast %cst_158 : f32 to vector<16x32xf32>
    %356 = arith.subf %355, %349 : vector<16x32xf32>
    %357 = arith.mulf %356, %354 : vector<16x32xf32>
    %358 = arith.mulf %349, %256 : vector<16x32xf32>
    %359 = arith.addf %357, %358 : vector<16x32xf32>
    %c0_159 = arith.constant 0 : index
    %c0_160 = arith.constant 0 : index
    %360 = vector.load %arg4[%c0_159, %c0_160] : memref<1x8xf32, #tpu.memory_space<vmem>>, vector<1x8xf32>
    %cst_161 = arith.constant dense<0.000000e+00> : vector<32xf32>
    %361 = vector.multi_reduction <add>, %359, %cst_161 [0] : vector<16x32xf32> to vector<32xf32>
    %362 = vector.shape_cast %361 : vector<32xf32> to vector<1x32xf32>
    %cst_162 = arith.constant dense<0xFF800000> : vector<32xf32>
    %363 = vector.multi_reduction <maximumf>, %359, %cst_162 [0] : vector<16x32xf32> to vector<32xf32>
    %364 = vector.shape_cast %363 : vector<32xf32> to vector<1x32xf32>
    %365 = tpu.concatenate %362, %364, %360 in 1 : vector<1x32xf32>, vector<1x32xf32>, vector<1x8xf32> -> vector<1x72xf32>
    %cst_163 = arith.constant dense<0.000000e+00> : vector<32xf32>
    %366 = vector.multi_reduction <add>, %327, %cst_163 [0] : vector<8x32xf32> to vector<32xf32>
    %367 = vector.shape_cast %366 : vector<32xf32> to vector<1x32xf32>
    %cst_164 = arith.constant dense<0xFF800000> : vector<32xf32>
    %368 = vector.multi_reduction <maximumf>, %327, %cst_164 [0] : vector<8x32xf32> to vector<32xf32>
    %369 = vector.shape_cast %368 : vector<32xf32> to vector<1x32xf32>
    %370 = tpu.concatenate %367, %369, %360 in 1 : vector<1x32xf32>, vector<1x32xf32>, vector<1x8xf32> -> vector<1x72xf32>
    %371 = tpu.iota {dimensions = array<i32: 0>} : vector<2x1xi32>
    %c0_i32_165 = arith.constant 0 : i32
    %372 = vector.broadcast %c0_i32_165 : i32 to vector<2x1xi32>
    %373 = arith.cmpi eq, %371, %372 : vector<2x1xi32>
    %374 = vector.shape_cast %373 : vector<2x1xi1> to vector<2x1xi1>
    %375 = vector.broadcast %374 : vector<2x1xi1> to vector<2x72xi1>
    %376 = vector.shape_cast %365 : vector<1x72xf32> to vector<1x72xf32>
    %377 = vector.broadcast %376 : vector<1x72xf32> to vector<2x72xf32>
    %378 = vector.shape_cast %370 : vector<1x72xf32> to vector<1x72xf32>
    %379 = vector.broadcast %378 : vector<1x72xf32> to vector<2x72xf32>
    %380 = arith.select %375, %377, %379 : vector<2x72xi1>, vector<2x72xf32>
    %c0_166 = arith.constant 0 : index
    %c0_167 = arith.constant 0 : index
    %381 = vector.load %arg33[%c0_166, %c0_167] : memref<72x32xf32, #tpu.memory_space<vmem>>, vector<72x32xf32>
    %cst_168 = arith.constant dense<0.000000e+00> : vector<2x32xf32>
    %382 = tpu.matmul %380, %381, %cst_168 {dimension_numbers = #tpu.dot_dimension_numbers<[1], [0], [0], [1], [0, 0, 1, 1], [], []>} : vector<2x72xf32>, vector<72x32xf32>, vector<2x32xf32> -> vector<2x32xf32>
    %c0_169 = arith.constant 0 : index
    %c0_170 = arith.constant 0 : index
    %383 = vector.load %arg34[%c0_169, %c0_170] : memref<1x32xf32, #tpu.memory_space<vmem>>, vector<1x32xf32>
    %384 = vector.broadcast %383 : vector<1x32xf32> to vector<2x32xf32>
    %385 = arith.addf %382, %384 : vector<2x32xf32>
    %cst_171 = arith.constant 0.000000e+00 : f32
    %386 = vector.broadcast %cst_171 : f32 to vector<2x32xf32>
    %387 = arith.maximumf %385, %386 : vector<2x32xf32>
    %c0_172 = arith.constant 0 : index
    %c0_173 = arith.constant 0 : index
    %388 = vector.load %arg35[%c0_172, %c0_173] : memref<32x4xf32, #tpu.memory_space<vmem>>, vector<32x4xf32>
    %cst_174 = arith.constant dense<0.000000e+00> : vector<2x4xf32>
    %389 = tpu.matmul %387, %388, %cst_174 {dimension_numbers = #tpu.dot_dimension_numbers<[1], [0], [0], [1], [0, 0, 1, 1], [], []>} : vector<2x32xf32>, vector<32x4xf32>, vector<2x4xf32> -> vector<2x4xf32>
    %c0_175 = arith.constant 0 : index
    %c0_176 = arith.constant 0 : index
    %390 = vector.load %arg36[%c0_175, %c0_176] : memref<1x4xf32, #tpu.memory_space<vmem>>, vector<1x4xf32>
    %391 = vector.broadcast %390 : vector<1x4xf32> to vector<2x4xf32>
    %392 = arith.addf %389, %391 : vector<2x4xf32>
    %c0_177 = arith.constant 0 : index
    %c0_178 = arith.constant 0 : index
    %393 = vector.load %arg37[%c0_177, %c0_178] : memref<4x4xf32, #tpu.memory_space<vmem>>, vector<4x4xf32>
    %cst_179 = arith.constant dense<0.000000e+00> : vector<2x4xf32>
    %394 = tpu.matmul %392, %393, %cst_179 {dimension_numbers = #tpu.dot_dimension_numbers<[1], [0], [0], [1], [0, 0, 1, 1], [], []>} : vector<2x4xf32>, vector<4x4xf32>, vector<2x4xf32> -> vector<2x4xf32>
    %c0_180 = arith.constant 0 : index
    %c0_181 = arith.constant 0 : index
    %395 = vector.load %arg38[%c0_180, %c0_181] : memref<2x4xf32, #tpu.memory_space<vmem>>, vector<2x4xf32>
    tpu.vector_store %arg38[%c0_180, %c0_181], %394 {strides = array<i32>} : memref<2x4xf32, #tpu.memory_space<vmem>>, vector<2x4xf32>,
    return
  }
}

</mosaic_0001>

<llo_original>
// kernel: tpu_custom_call.1
$region0: #{tpu_custom_call.1}
  #allocation0 [shape = 'u32[]', space=smem, size = 0x4, offset = 0x4, fixed_abs, tag = 'smem constant byte address 0x4 - core index']
  #allocation1 [shape = 'u32[144,128]{1,0:T(1,128)}', space=vmem, size = 0x12000, scoped, tag = 'internal scratch']
  %s0 = inlined_call_operand.smem [shape: u32[39], index: -1, kind: input, shape index: {}]
  %s1 = sld [smem:[%s0]]
  %s2 = scalar_lea.smem %s0, 1
  %s3 = sld [smem:[%s2]]
  %s4 = scalar_lea.smem %s0, 2
  %s5 = sld [smem:[%s4]]
  %s6 = scalar_lea.smem %s0, 3
  %s7 = sld [smem:[%s6]]
  %s8 = scalar_lea.smem %s0, 4
  %s9 = sld [smem:[%s8]]
  %s10 = scalar_lea.smem %s0, 5
  %s11 = sld [smem:[%s10]]
  %s12 = scalar_lea.smem %s0, 6
  %s13 = sld [smem:[%s12]]
  %s14 = scalar_lea.smem %s0, 7
  %s15 = sld [smem:[%s14]]
  %s16 = scalar_lea.smem %s0, 8
  %s17 = sld [smem:[%s16]]
  %s18 = scalar_lea.smem %s0, 9
  %s19 = sld [smem:[%s18]]
  %s20 = scalar_lea.smem %s0, 10
  %s21 = sld [smem:[%s20]]
  %s22 = scalar_lea.smem %s0, 11
  %s23 = sld [smem:[%s22]]
  %s24 = scalar_lea.smem %s0, 12
  %s25 = sld [smem:[%s24]]
  %s26 = scalar_lea.smem %s0, 13
  %s27 = sld [smem:[%s26]]
  %s28 = scalar_lea.smem %s0, 14
  %s29 = sld [smem:[%s28]]
  %s30 = scalar_lea.smem %s0, 15
  %s31 = sld [smem:[%s30]]
  %s32 = scalar_lea.smem %s0, 16
  %s33 = sld [smem:[%s32]]
  %s34 = scalar_lea.smem %s0, 17
  %s35 = sld [smem:[%s34]]
  %s36 = scalar_lea.smem %s0, 18
  %s37 = sld [smem:[%s36]]
  %s38 = scalar_lea.smem %s0, 19
  %s39 = sld [smem:[%s38]]
  %s40 = scalar_lea.smem %s0, 20
  %s41 = sld [smem:[%s40]]
  %s42 = scalar_lea.smem %s0, 21
  %s43 = sld [smem:[%s42]]
  %s44 = scalar_lea.smem %s0, 22
  %s45 = sld [smem:[%s44]]
  %s46 = scalar_lea.smem %s0, 23
  %s47 = sld [smem:[%s46]]
  %s48 = scalar_lea.smem %s0, 24
  %s49 = sld [smem:[%s48]]
  %s50 = scalar_lea.smem %s0, 25
  %s51 = sld [smem:[%s50]]
  %s52 = scalar_lea.smem %s0, 26
  %s53 = sld [smem:[%s52]]
  %s54 = scalar_lea.smem %s0, 27
  %s55 = sld [smem:[%s54]]
  %s56 = scalar_lea.smem %s0, 28
  %s57 = sld [smem:[%s56]]
  %s58 = scalar_lea.smem %s0, 29
  %s59 = sld [smem:[%s58]]
  %s60 = scalar_lea.smem %s0, 30
  %s61 = sld [smem:[%s60]]
  %s62 = scalar_lea.smem %s0, 31
  %s63 = sld [smem:[%s62]]
  %s64 = scalar_lea.smem %s0, 32
  %s65 = sld [smem:[%s64]]
  %s66 = scalar_lea.smem %s0, 33
  %s67 = sld [smem:[%s66]]
  %s68 = scalar_lea.smem %s0, 34
  %s69 = sld [smem:[%s68]]
  %s70 = scalar_lea.smem %s0, 35
  %s71 = sld [smem:[%s70]]
  %s72 = scalar_lea.smem %s0, 36
  %s73 = sld [smem:[%s72]]
  %s74 = scalar_lea.smem %s0, 37
  %s75 = sld [smem:[%s74]]
  %s76 = scalar_lea.smem %s0, 38
  %s77 = sld [smem:[%s76]]
  %s78 = sld [smem:[#allocation0]]
  $region258: #{tpu_custom_call.1} parent=0
    _
  %s80 = ssub.s32 1, %s78
  %s81 = scalar_select 0, %s80, %s78
  $region1: #{tpu_custom_call.1} parent=0
    #allocation2 [shape = 'u8[8192]{0}', space=vmem, size = 0x2000, scoped, tag = 'input window, operand 0, single buffered']
    #allocation3 [shape = 's32[1]{0}', space=sflag, size = 0x4, scoped, tag = 'scoped memory for tpu_custom_call.1']
    #allocation4 [shape = 's32[1]{0}', space=sflag, size = 0x4, scoped, tag = 'scoped memory for tpu_custom_call.1']
    #allocation5 [shape = 'u8[4096]{0}', space=vmem, size = 0x1000, scoped, tag = 'input window, operand 2, single buffered']
    #allocation6 [shape = 's32[1]{0}', space=sflag, size = 0x4, scoped, tag = 'scoped memory for tpu_custom_call.1']
    #allocation7 [shape = 'u8[512]{0}', space=vmem, size = 0x400, scoped, tag = 'input window, operand 4, single buffered']
    #allocation8 [shape = 'u8[8192]{0}', space=vmem, size = 0x2000, scoped, tag = 'input window, operand 5, single buffered']
    #allocation9 [shape = 's32[1]{0}', space=sflag, size = 0x4, scoped, tag = 'scoped memory for tpu_custom_call.1']
    #allocation10 [shape = 'u8[4096]{0}', space=vmem, size = 0x1000, scoped, tag = 'input window, operand 6, single buffered']
    #allocation11 [shape = 'u8[4096]{0}', space=vmem, size = 0x1000, scoped, tag = 'input window, operand 7, single buffered']
    #allocation12 [shape = 's32[1]{0}', space=sflag, size = 0x4, scoped, tag = 'scoped memory for tpu_custom_call.1']
    #allocation13 [shape = 'u8[8192]{0}', space=vmem, size = 0x2000, scoped, tag = 'input window, operand 8, single buffered']
    #allocation14 [shape = 'u8[512]{0}', space=vmem, size = 0x400, scoped, tag = 'input window, operand 9, single buffered']
    #allocation15 [shape = 's32[1]{0}', space=sflag, size = 0x4, scoped, tag = 'scoped memory for tpu_custom_call.1']
    #allocation16 [shape = 'u8[512]{0}', space=vmem, size = 0x400, scoped, tag = 'input window, operand 11, single buffered']
    #allocation17 [shape = 'u8[8192]{0}', space=vmem, size = 0x2000, scoped, tag = 'input window, operand 12, single buffered']
    #allocation18 [shape = 's32[1]{0}', space=sflag, size = 0x4, scoped, tag = 'scoped memory for tpu_custom_call.1']
    #allocation19 [shape = 'u8[512]{0}', space=vmem, size = 0x400, scoped, tag = 'input window, operand 13, single buffered']
    #allocation20 [shape = 'u8[512]{0}', space=vmem, size = 0x400, scoped, tag = 'input window, operand 15, single buffered']
    #allocation21 [shape = 's32[1]{0}', space=sflag, size = 0x4, scoped, tag = 'scoped memory for tpu_custom_call.1']
    #allocation22 [shape = 'u8[131072]{0}', space=vmem, size = 0x20000, scoped, tag = 'input window, operand 16, single buffered']
    #allocation23 [shape = 'u8[131072]{0}', space=vmem, size = 0x20000, scoped, tag = 'input window, operand 18, single buffered']
    #allocation24 [shape = 's32[1]{0}', space=sflag, size = 0x4, scoped, tag = 'scoped memory for tpu_custom_call.1']
    #allocation25 [shape = 'u8[16384]{0}', space=vmem, size = 0x4000, scoped, tag = 'input window, operand 22, single buffered']
    #allocation26 [shape = 'u8[512]{0}', space=vmem, size = 0x400, scoped, tag = 'input window, operand 23, single buffered']
    #allocation27 [shape = 's32[1]{0}', space=sflag, size = 0x4, scoped, tag = 'scoped memory for tpu_custom_call.1']
    #allocation28 [shape = 'u8[16384]{0}', space=vmem, size = 0x4000, scoped, tag = 'input window, operand 24, single buffered']
    #allocation29 [shape = 'u8[16384]{0}', space=vmem, size = 0x4000, scoped, tag = 'input window, operand 25, single buffered']
    #allocation30 [shape = 's32[1]{0}', space=sflag, size = 0x4, scoped, tag = 'scoped memory for tpu_custom_call.1']
    #allocation31 [shape = 'u8[16384]{0}', space=vmem, size = 0x4000, scoped, tag = 'input window, operand 26, single buffered']
    #allocation32 [shape = 'u8[512]{0}', space=vmem, size = 0x400, scoped, tag = 'input window, operand 27, single buffered']
    #allocation33 [shape = 's32[1]{0}', space=sflag, size = 0x4, scoped, tag = 'scoped memory for tpu_custom_call.1']
    #allocation34 [shape = 'u8[512]{0}', space=vmem, size = 0x400, scoped, tag = 'input window, operand 28, single buffered']
    #allocation35 [shape = 'u8[16384]{0}', space=vmem, size = 0x4000, scoped, tag = 'input window, operand 29, single buffered']
    #allocation36 [shape = 's32[1]{0}', space=sflag, size = 0x4, scoped, tag = 'scoped memory for tpu_custom_call.1']
    #allocation37 [shape = 'u8[512]{0}', space=vmem, size = 0x400, scoped, tag = 'input window, operand 31, single buffered']
    #allocation38 [shape = 'u8[512]{0}', space=vmem, size = 0x400, scoped, tag = 'input window, operand 32, single buffered']
    #allocation39 [shape = 's32[1]{0}', space=sflag, size = 0x4, scoped, tag = 'scoped memory for tpu_custom_call.1']
    #allocation40 [shape = 'u8[1024]{0}', space=vmem, size = 0x400, scoped, tag = 'output window, operand 0, single buffered']
    %82 = vsyncpa [#allocation3], 0
    %83 = vsyncpa [#allocation6], 0
    %84 = vsyncpa [#allocation9], 0
    %85 = vsyncpa [#allocation12], 0
    %86 = vsyncpa [#allocation15], 0
    %87 = vsyncpa [#allocation18], 0
    %88 = vsyncpa [#allocation21], 0
    %89 = vsyncpa [#allocation24], 0
    %90 = vsyncpa [#allocation27], 0
    %91 = vsyncpa [#allocation30], 0
    %92 = vsyncpa [#allocation33], 0
    %93 = vsyncpa [#allocation36], 0
    %94 = vsyncpa [#allocation39], 0
    %95 = vsyncpa [#allocation4], 0
    // Predicated region
    $region2: #{tpu_custom_call.1} parent=1 // pred_check
      _
    $region3: #{tpu_custom_call.1} parent=1 // pred_check_branch
      %97 = sbr.rel (0) target = $region5
    $region4: #{tpu_custom_call.1} parent=1 // pred_region
      %s99 = ssub.s32 256, 256
      %100 = vsyncadd [#allocation3], %s99
      %s101 = sshll.u32 [#allocation2], 4
      %s102 = int_to_ptr.vmem [resolvable:$true] %s101
      %107 = dma.hbm_to_vmem [thread:$0]  %s1, 256, %s102, [#allocation3], 128, 128, 8
    $region5: #{tpu_custom_call.1} parent=1 // pred_fallthru
      _
    // Predicated region
    $region6: #{tpu_custom_call.1} parent=1 // pred_check
      _
    $region7: #{tpu_custom_call.1} parent=1 // pred_check_branch
      %109 = sbr.rel (0) target = $region9
    $region8: #{tpu_custom_call.1} parent=1 // pred_region
      _
    $region9: #{tpu_custom_call.1} parent=1 // pred_fallthru
      _
    // Predicated region
    $region10: #{tpu_custom_call.1} parent=1 // pred_check
      _
    $region11: #{tpu_custom_call.1} parent=1 // pred_check_branch
      %111 = sbr.rel (0) target = $region13
    $region12: #{tpu_custom_call.1} parent=1 // pred_region
      %s113 = ssub.s32 128, 128
      %114 = vsyncadd [#allocation6], %s113
      %s116 = sshll.u32 [#allocation5], 4
      %s117 = int_to_ptr.vmem [resolvable:$true] %s116
      %119 = dma.hbm_to_vmem [thread:$0]  %s5, 128, %s117, [#allocation6]
    $region13: #{tpu_custom_call.1} parent=1 // pred_fallthru
      _
    // Predicated region
    $region14: #{tpu_custom_call.1} parent=1 // pred_check
      _
    $region15: #{tpu_custom_call.1} parent=1 // pred_check_branch
      %121 = sbr.rel (0) target = $region17
    $region16: #{tpu_custom_call.1} parent=1 // pred_region
      _
    $region17: #{tpu_custom_call.1} parent=1 // pred_fallthru
      _
    // Predicated region
    $region18: #{tpu_custom_call.1} parent=1 // pred_check
      _
    $region19: #{tpu_custom_call.1} parent=1 // pred_check_branch
      %123 = sbr.rel (0) target = $region21
    $region20: #{tpu_custom_call.1} parent=1 // pred_region
      %s125 = ssub.s32 16, 16
      %126 = vsyncadd [#allocation6], %s125
      %s128 = sshll.u32 [#allocation7], 4
      %s129 = int_to_ptr.vmem [resolvable:$true] %s128
      %131 = dma.hbm_to_vmem [thread:$0]  %s9, 16, %s129, [#allocation6]
    $region21: #{tpu_custom_call.1} parent=1 // pred_fallthru
      _
    // Predicated region
    $region22: #{tpu_custom_call.1} parent=1 // pred_check
      _
    $region23: #{tpu_custom_call.1} parent=1 // pred_check_branch
      %133 = sbr.rel (0) target = $region25
    $region24: #{tpu_custom_call.1} parent=1 // pred_region
      %s135 = ssub.s32 256, 256
      %136 = vsyncadd [#allocation9], %s135
      %s137 = sshll.u32 [#allocation8], 4
      %s138 = int_to_ptr.vmem [resolvable:$true] %s137
      %143 = dma.hbm_to_vmem [thread:$0]  %s11, 256, %s138, [#allocation9], 128, 128, 8
    $region25: #{tpu_custom_call.1} parent=1 // pred_fallthru
      _
    // Predicated region
    $region26: #{tpu_custom_call.1} parent=1 // pred_check
      _
    $region27: #{tpu_custom_call.1} parent=1 // pred_check_branch
      %145 = sbr.rel (0) target = $region29
    $region28: #{tpu_custom_call.1} parent=1 // pred_region
      %s147 = ssub.s32 128, 128
      %148 = vsyncadd [#allocation9], %s147
      %s150 = sshll.u32 [#allocation10], 4
      %s151 = int_to_ptr.vmem [resolvable:$true] %s150
      %153 = dma.hbm_to_vmem [thread:$0]  %s13, 128, %s151, [#allocation9]
    $region29: #{tpu_custom_call.1} parent=1 // pred_fallthru
      _
    // Predicated region
    $region30: #{tpu_custom_call.1} parent=1 // pred_check
      _
    $region31: #{tpu_custom_call.1} parent=1 // pred_check_branch
      %155 = sbr.rel (0) target = $region33
    $region32: #{tpu_custom_call.1} parent=1 // pred_region
      %s157 = ssub.s32 128, 128
      %158 = vsyncadd [#allocation12], %s157
      %s160 = sshll.u32 [#allocation11], 4
      %s161 = int_to_ptr.vmem [resolvable:$true] %s160
      %163 = dma.hbm_to_vmem [thread:$0]  %s15, 128, %s161, [#allocation12]
    $region33: #{tpu_custom_call.1} parent=1 // pred_fallthru
      _
    // Predicated region
    $region34: #{tpu_custom_call.1} parent=1 // pred_check
      _
    $region35: #{tpu_custom_call.1} parent=1 // pred_check_branch
      %165 = sbr.rel (0) target = $region37
    $region36: #{tpu_custom_call.1} parent=1 // pred_region
      %s167 = ssub.s32 256, 256
      %168 = vsyncadd [#allocation12], %s167
      %s169 = sshll.u32 [#allocation13], 4
      %s170 = int_to_ptr.vmem [resolvable:$true] %s169
      %175 = dma.hbm_to_vmem [thread:$0]  %s17, 256, %s170, [#allocation12], 128, 128, 8
    $region37: #{tpu_custom_call.1} parent=1 // pred_fallthru
      _
    // Predicated region
    $region38: #{tpu_custom_call.1} parent=1 // pred_check
      _
    $region39: #{tpu_custom_call.1} parent=1 // pred_check_branch
      %177 = sbr.rel (0) target = $region41
    $region40: #{tpu_custom_call.1} parent=1 // pred_region
      %s179 = ssub.s32 16, 16
      %180 = vsyncadd [#allocation15], %s179
      %s182 = sshll.u32 [#allocation14], 4
      %s183 = int_to_ptr.vmem [resolvable:$true] %s182
      %185 = dma.hbm_to_vmem [thread:$0]  %s19, 16, %s183, [#allocation15]
    $region41: #{tpu_custom_call.1} parent=1 // pred_fallthru
      _
    // Predicated region
    $region42: #{tpu_custom_call.1} parent=1 // pred_check
      _
    $region43: #{tpu_custom_call.1} parent=1 // pred_check_branch
      %187 = sbr.rel (0) target = $region45
    $region44: #{tpu_custom_call.1} parent=1 // pred_region
      _
    $region45: #{tpu_custom_call.1} parent=1 // pred_fallthru
      _
    // Predicated region
    $region46: #{tpu_custom_call.1} parent=1 // pred_check
      _
    $region47: #{tpu_custom_call.1} parent=1 // pred_check_branch
      %189 = sbr.rel (0) target = $region49
    $region48: #{tpu_custom_call.1} parent=1 // pred_region
      %s191 = ssub.s32 16, 16
      %192 = vsyncadd [#allocation15], %s191
      %s194 = sshll.u32 [#allocation16], 4
      %s195 = int_to_ptr.vmem [resolvable:$true] %s194
      %197 = dma.hbm_to_vmem [thread:$0]  %s23, 16, %s195, [#allocation15]
    $region49: #{tpu_custom_call.1} parent=1 // pred_fallthru
      _
    // Predicated region
    $region50: #{tpu_custom_call.1} parent=1 // pred_check
      _
    $region51: #{tpu_custom_call.1} parent=1 // pred_check_branch
      %199 = sbr.rel (0) target = $region53
    $region52: #{tpu_custom_call.1} parent=1 // pred_region
      %s201 = ssub.s32 256, 256
      %202 = vsyncadd [#allocation18], %s201
      %s203 = sshll.u32 [#allocation17], 4
      %s204 = int_to_ptr.vmem [resolvable:$true] %s203
      %209 = dma.hbm_to_vmem [thread:$0]  %s25, 256, %s204, [#allocation18], 128, 128, 8
    $region53: #{tpu_custom_call.1} parent=1 // pred_fallthru
      _
    // Predicated region
    $region54: #{tpu_custom_call.1} parent=1 // pred_check
      _
    $region55: #{tpu_custom_call.1} parent=1 // pred_check_branch
      %211 = sbr.rel (0) target = $region57
    $region56: #{tpu_custom_call.1} parent=1 // pred_region
      %s213 = ssub.s32 16, 16
      %214 = vsyncadd [#allocation18], %s213
      %s216 = sshll.u32 [#allocation19], 4
      %s217 = int_to_ptr.vmem [resolvable:$true] %s216
      %219 = dma.hbm_to_vmem [thread:$0]  %s27, 16, %s217, [#allocation18]
    $region57: #{tpu_custom_call.1} parent=1 // pred_fallthru
      _
    // Predicated region
    $region58: #{tpu_custom_call.1} parent=1 // pred_check
      _
    $region59: #{tpu_custom_call.1} parent=1 // pred_check_branch
      %221 = sbr.rel (0) target = $region61
    $region60: #{tpu_custom_call.1} parent=1 // pred_region
      _
    $region61: #{tpu_custom_call.1} parent=1 // pred_fallthru
      _
    // Predicated region
    $region62: #{tpu_custom_call.1} parent=1 // pred_check
      _
    $region63: #{tpu_custom_call.1} parent=1 // pred_check_branch
      %223 = sbr.rel (0) target = $region65
    $region64: #{tpu_custom_call.1} parent=1 // pred_region
      %s225 = ssub.s32 16, 16
      %226 = vsyncadd [#allocation21], %s225
      %s228 = sshll.u32 [#allocation20], 4
      %s229 = int_to_ptr.vmem [resolvable:$true] %s228
      %231 = dma.hbm_to_vmem [thread:$0]  %s31, 16, %s229, [#allocation21]
    $region65: #{tpu_custom_call.1} parent=1 // pred_fallthru
      _
    // Predicated region
    $region66: #{tpu_custom_call.1} parent=1 // pred_check
      _
    $region67: #{tpu_custom_call.1} parent=1 // pred_check_branch
      %233 = sbr.rel (0) target = $region69
    $region68: #{tpu_custom_call.1} parent=1 // pred_region
      %s235 = ssub.s32 4096, 4096
      %236 = vsyncadd [#allocation21], %s235
      %s237 = sshll.u32 [#allocation22], 4
      %s238 = int_to_ptr.vmem [resolvable:$true] %s237
      %243 = dma.hbm_to_vmem [thread:$0]  %s33, 4096, %s238, [#allocation21], 128, 128, 8
    $region69: #{tpu_custom_call.1} parent=1 // pred_fallthru
      _
    // Predicated region
    $region70: #{tpu_custom_call.1} parent=1 // pred_check
      _
    $region71: #{tpu_custom_call.1} parent=1 // pred_check_branch
      %245 = sbr.rel (0) target = $region73
    $region72: #{tpu_custom_call.1} parent=1 // pred_region
      _
    $region73: #{tpu_custom_call.1} parent=1 // pred_fallthru
      _
    // Predicated region
    $region74: #{tpu_custom_call.1} parent=1 // pred_check
      _
    $region75: #{tpu_custom_call.1} parent=1 // pred_check_branch
      %247 = sbr.rel (0) target = $region77
    $region76: #{tpu_custom_call.1} parent=1 // pred_region
      %s249 = ssub.s32 4096, 4096
      %250 = vsyncadd [#allocation24], %s249
      %s251 = sshll.u32 [#allocation23], 4
      %s252 = int_to_ptr.vmem [resolvable:$true] %s251
      %257 = dma.hbm_to_vmem [thread:$0]  %s37, 4096, %s252, [#allocation24], 128, 128, 8
    $region77: #{tpu_custom_call.1} parent=1 // pred_fallthru
      _
    // Predicated region
    $region78: #{tpu_custom_call.1} parent=1 // pred_check
      _
    $region79: #{tpu_custom_call.1} parent=1 // pred_check_branch
      %259 = sbr.rel (0) target = $region81
    $region80: #{tpu_custom_call.1} parent=1 // pred_region
      _
    $region81: #{tpu_custom_call.1} parent=1 // pred_fallthru
      _
    // Predicated region
    $region82: #{tpu_custom_call.1} parent=1 // pred_check
      _
    $region83: #{tpu_custom_call.1} parent=1 // pred_check_branch
      %261 = sbr.rel (0) target = $region85
    $region84: #{tpu_custom_call.1} parent=1 // pred_region
      _
    $region85: #{tpu_custom_call.1} parent=1 // pred_fallthru
      _
    // Predicated region
    $region86: #{tpu_custom_call.1} parent=1 // pred_check
      _
    $region87: #{tpu_custom_call.1} parent=1 // pred_check_branch
      %263 = sbr.rel (0) target = $region89
    $region88: #{tpu_custom_call.1} parent=1 // pred_region
      _
    $region89: #{tpu_custom_call.1} parent=1 // pred_fallthru
      _
    // Predicated region
    $region90: #{tpu_custom_call.1} parent=1 // pred_check
      _
    $region91: #{tpu_custom_call.1} parent=1 // pred_check_branch
      %265 = sbr.rel (0) target = $region93
    $region92: #{tpu_custom_call.1} parent=1 // pred_region
      %s267 = ssub.s32 512, 512
      %268 = vsyncadd [#allocation24], %s267
      %s269 = sshll.u32 [#allocation25], 4
      %s270 = int_to_ptr.vmem [resolvable:$true] %s269
      %275 = dma.hbm_to_vmem [thread:$0]  %s45, 512, %s270, [#allocation24], 128, 128, 8
    $region93: #{tpu_custom_call.1} parent=1 // pred_fallthru
      _
    // Predicated region
    $region94: #{tpu_custom_call.1} parent=1 // pred_check
      _
    $region95: #{tpu_custom_call.1} parent=1 // pred_check_branch
      %277 = sbr.rel (0) target = $region97
    $region96: #{tpu_custom_call.1} parent=1 // pred_region
      %s279 = ssub.s32 16, 16
      %280 = vsyncadd [#allocation27], %s279
      %s282 = sshll.u32 [#allocation26], 4
      %s283 = int_to_ptr.vmem [resolvable:$true] %s282
      %285 = dma.hbm_to_vmem [thread:$0]  %s47, 16, %s283, [#allocation27]
    $region97: #{tpu_custom_call.1} parent=1 // pred_fallthru
      _
    // Predicated region
    $region98: #{tpu_custom_call.1} parent=1 // pred_check
      _
    $region99: #{tpu_custom_call.1} parent=1 // pred_check_branch
      %287 = sbr.rel (0) target = $region101
    $region100: #{tpu_custom_call.1} parent=1 // pred_region
      %s289 = ssub.s32 512, 512
      %290 = vsyncadd [#allocation27], %s289
      %s291 = sshll.u32 [#allocation28], 4
      %s292 = int_to_ptr.vmem [resolvable:$true] %s291
      %297 = dma.hbm_to_vmem [thread:$0]  %s49, 512, %s292, [#allocation27], 128, 128, 8
    $region101: #{tpu_custom_call.1} parent=1 // pred_fallthru
      _
    // Predicated region
    $region102: #{tpu_custom_call.1} parent=1 // pred_check
      _
    $region103: #{tpu_custom_call.1} parent=1 // pred_check_branch
      %299 = sbr.rel (0) target = $region105
    $region104: #{tpu_custom_call.1} parent=1 // pred_region
      %s301 = ssub.s32 512, 512
      %302 = vsyncadd [#allocation30], %s301
      %s303 = sshll.u32 [#allocation29], 4
      %s304 = int_to_ptr.vmem [resolvable:$true] %s303
      %309 = dma.hbm_to_vmem [thread:$0]  %s51, 512, %s304, [#allocation30], 128, 128, 8
    $region105: #{tpu_custom_call.1} parent=1 // pred_fallthru
      _
    // Predicated region
    $region106: #{tpu_custom_call.1} parent=1 // pred_check
      _
    $region107: #{tpu_custom_call.1} parent=1 // pred_check_branch
      %311 = sbr.rel (0) target = $region109
    $region108: #{tpu_custom_call.1} parent=1 // pred_region
      %s313 = ssub.s32 512, 512
      %314 = vsyncadd [#allocation30], %s313
      %s315 = sshll.u32 [#allocation31], 4
      %s316 = int_to_ptr.vmem [resolvable:$true] %s315
      %321 = dma.hbm_to_vmem [thread:$0]  %s53, 512, %s316, [#allocation30], 128, 128, 8
    $region109: #{tpu_custom_call.1} parent=1 // pred_fallthru
      _
    // Predicated region
    $region110: #{tpu_custom_call.1} parent=1 // pred_check
      _
    $region111: #{tpu_custom_call.1} parent=1 // pred_check_branch
      %323 = sbr.rel (0) target = $region113
    $region112: #{tpu_custom_call.1} parent=1 // pred_region
      %s325 = ssub.s32 16, 16
      %326 = vsyncadd [#allocation33], %s325
      %s328 = sshll.u32 [#allocation32], 4
      %s329 = int_to_ptr.vmem [resolvable:$true] %s328
      %331 = dma.hbm_to_vmem [thread:$0]  %s55, 16, %s329, [#allocation33]
    $region113: #{tpu_custom_call.1} parent=1 // pred_fallthru
      _
    // Predicated region
    $region114: #{tpu_custom_call.1} parent=1 // pred_check
      _
    $region115: #{tpu_custom_call.1} parent=1 // pred_check_branch
      %333 = sbr.rel (0) target = $region117
    $region116: #{tpu_custom_call.1} parent=1 // pred_region
      %s335 = ssub.s32 16, 16
      %336 = vsyncadd [#allocation33], %s335
      %s338 = sshll.u32 [#allocation34], 4
      %s339 = int_to_ptr.vmem [resolvable:$true] %s338
      %341 = dma.hbm_to_vmem [thread:$0]  %s57, 16, %s339, [#allocation33]
    $region117: #{tpu_custom_call.1} parent=1 // pred_fallthru
      _
    // Predicated region
    $region118: #{tpu_custom_call.1} parent=1 // pred_check
      _
    $region119: #{tpu_custom_call.1} parent=1 // pred_check_branch
      %343 = sbr.rel (0) target = $region121
    $region120: #{tpu_custom_call.1} parent=1 // pred_region
      %s345 = ssub.s32 512, 512
      %346 = vsyncadd [#allocation36], %s345
      %s347 = sshll.u32 [#allocation35], 4
      %s348 = int_to_ptr.vmem [resolvable:$true] %s347
      %353 = dma.hbm_to_vmem [thread:$0]  %s59, 512, %s348, [#allocation36], 128, 128, 8
    $region121: #{tpu_custom_call.1} parent=1 // pred_fallthru
      _
    // Predicated region
    $region122: #{tpu_custom_call.1} parent=1 // pred_check
      _
    $region123: #{tpu_custom_call.1} parent=1 // pred_check_branch
      %355 = sbr.rel (0) target = $region125
    $region124: #{tpu_custom_call.1} parent=1 // pred_region
      _
    $region125: #{tpu_custom_call.1} parent=1 // pred_fallthru
      _
    // Predicated region
    $region126: #{tpu_custom_call.1} parent=1 // pred_check
      _
    $region127: #{tpu_custom_call.1} parent=1 // pred_check_branch
      %357 = sbr.rel (0) target = $region129
    $region128: #{tpu_custom_call.1} parent=1 // pred_region
      %s359 = ssub.s32 16, 16
      %360 = vsyncadd [#allocation36], %s359
      %s362 = sshll.u32 [#allocation37], 4
      %s363 = int_to_ptr.vmem [resolvable:$true] %s362
      %365 = dma.hbm_to_vmem [thread:$0]  %s63, 16, %s363, [#allocation36]
    $region129: #{tpu_custom_call.1} parent=1 // pred_fallthru
      _
    // Predicated region
    $region130: #{tpu_custom_call.1} parent=1 // pred_check
      _
    $region131: #{tpu_custom_call.1} parent=1 // pred_check_branch
      %367 = sbr.rel (0) target = $region133
    $region132: #{tpu_custom_call.1} parent=1 // pred_region
      %s369 = ssub.s32 16, 16
      %370 = vsyncadd [#allocation39], %s369
      %s372 = sshll.u32 [#allocation38], 4
      %s373 = int_to_ptr.vmem [resolvable:$true] %s372
      %375 = dma.hbm_to_vmem [thread:$0]  %s65, 16, %s373, [#allocation39]
    $region133: #{tpu_custom_call.1} parent=1 // pred_fallthru
      _
    // Predicated region
    $region134: #{tpu_custom_call.1} parent=1 // pred_check
      _
    $region135: #{tpu_custom_call.1} parent=1 // pred_check_branch
      %377 = sbr.rel (0) target = $region137
    $region136: #{tpu_custom_call.1} parent=1 // pred_region
      _
    $region137: #{tpu_custom_call.1} parent=1 // pred_fallthru
      _
    // Predicated region
    $region138: #{tpu_custom_call.1} parent=1 // pred_check
      _
    $region139: #{tpu_custom_call.1} parent=1 // pred_check_branch
      %379 = sbr.rel (0) target = $region141
    $region140: #{tpu_custom_call.1} parent=1 // pred_region
      _
    $region141: #{tpu_custom_call.1} parent=1 // pred_fallthru
      _
    // Predicated region
    $region142: #{tpu_custom_call.1} parent=1 // pred_check
      _
    $region143: #{tpu_custom_call.1} parent=1 // pred_check_branch
      %381 = sbr.rel (0) target = $region145
    $region144: #{tpu_custom_call.1} parent=1 // pred_region
      _
    $region145: #{tpu_custom_call.1} parent=1 // pred_fallthru
      _
    // Predicated region
    $region146: #{tpu_custom_call.1} parent=1 // pred_check
      _
    $region147: #{tpu_custom_call.1} parent=1 // pred_check_branch
      %383 = sbr.rel (0) target = $region149
    $region148: #{tpu_custom_call.1} parent=1 // pred_region
      _
    $region149: #{tpu_custom_call.1} parent=1 // pred_fallthru
      _
    // Predicated region
    $region150: #{tpu_custom_call.1} parent=1 // pred_check
      _
    $region151: #{tpu_custom_call.1} parent=1 // pred_check_branch
      %385 = sbr.rel (0) target = $region153
    $region152: #{tpu_custom_call.1} parent=1 // pred_region
      _
    $region153: #{tpu_custom_call.1} parent=1 // pred_fallthru
      _
    // Predicated region
    $region154: #{tpu_custom_call.1} parent=1 // pred_check
      _
    $region155: #{tpu_custom_call.1} parent=1 // pred_check_branch
      %387 = sbr.rel (0) target = $region157
    $region156: #{tpu_custom_call.1} parent=1 // pred_region
      %388 = dma.done [#allocation3], 256
    $region157: #{tpu_custom_call.1} parent=1 // pred_fallthru
      _
    // Predicated region
    $region158: #{tpu_custom_call.1} parent=1 // pred_check
      _
    $region159: #{tpu_custom_call.1} parent=1 // pred_check_branch
      %390 = sbr.rel (0) target = $region161
    $region160: #{tpu_custom_call.1} parent=1 // pred_region
      %391 = dma.done [#allocation6], 128
    $region161: #{tpu_custom_call.1} parent=1 // pred_fallthru
      _
    // Predicated region
    $region162: #{tpu_custom_call.1} parent=1 // pred_check
      _
    $region163: #{tpu_custom_call.1} parent=1 // pred_check_branch
      %393 = sbr.rel (0) target = $region165
    $region164: #{tpu_custom_call.1} parent=1 // pred_region
      %394 = dma.done [#allocation6], 16
    $region165: #{tpu_custom_call.1} parent=1 // pred_fallthru
      _
    // Predicated region
    $region166: #{tpu_custom_call.1} parent=1 // pred_check
      _
    $region167: #{tpu_custom_call.1} parent=1 // pred_check_branch
      %396 = sbr.rel (0) target = $region169
    $region168: #{tpu_custom_call.1} parent=1 // pred_region
      %397 = dma.done [#allocation9], 256
    $region169: #{tpu_custom_call.1} parent=1 // pred_fallthru
      _
    // Predicated region
    $region170: #{tpu_custom_call.1} parent=1 // pred_check
      _
    $region171: #{tpu_custom_call.1} parent=1 // pred_check_branch
      %399 = sbr.rel (0) target = $region173
    $region172: #{tpu_custom_call.1} parent=1 // pred_region
      %400 = dma.done [#allocation9], 128
    $region173: #{tpu_custom_call.1} parent=1 // pred_fallthru
      _
    // Predicated region
    $region174: #{tpu_custom_call.1} parent=1 // pred_check
      _
    $region175: #{tpu_custom_call.1} parent=1 // pred_check_branch
      %402 = sbr.rel (0) target = $region177
    $region176: #{tpu_custom_call.1} parent=1 // pred_region
      %403 = dma.done [#allocation12], 128
    $region177: #{tpu_custom_call.1} parent=1 // pred_fallthru
      _
    // Predicated region
    $region178: #{tpu_custom_call.1} parent=1 // pred_check
      _
    $region179: #{tpu_custom_call.1} parent=1 // pred_check_branch
      %405 = sbr.rel (0) target = $region181
    $region180: #{tpu_custom_call.1} parent=1 // pred_region
      %406 = dma.done [#allocation12], 256
    $region181: #{tpu_custom_call.1} parent=1 // pred_fallthru
      _
    // Predicated region
    $region182: #{tpu_custom_call.1} parent=1 // pred_check
      _
    $region183: #{tpu_custom_call.1} parent=1 // pred_check_branch
      %408 = sbr.rel (0) target = $region185
    $region184: #{tpu_custom_call.1} parent=1 // pred_region
      %409 = dma.done [#allocation15], 16
    $region185: #{tpu_custom_call.1} parent=1 // pred_fallthru
      _
    // Predicated region
    $region186: #{tpu_custom_call.1} parent=1 // pred_check
      _
    $region187: #{tpu_custom_call.1} parent=1 // pred_check_branch
      %411 = sbr.rel (0) target = $region189
    $region188: #{tpu_custom_call.1} parent=1 // pred_region
      %412 = dma.done [#allocation15], 16
    $region189: #{tpu_custom_call.1} parent=1 // pred_fallthru
      _
    // Predicated region
    $region190: #{tpu_custom_call.1} parent=1 // pred_check
      _
    $region191: #{tpu_custom_call.1} parent=1 // pred_check_branch
      %414 = sbr.rel (0) target = $region193
    $region192: #{tpu_custom_call.1} parent=1 // pred_region
      %415 = dma.done [#allocation18], 256
    $region193: #{tpu_custom_call.1} parent=1 // pred_fallthru
      _
    // Predicated region
    $region194: #{tpu_custom_call.1} parent=1 // pred_check
      _
    $region195: #{tpu_custom_call.1} parent=1 // pred_check_branch
      %417 = sbr.rel (0) target = $region197
    $region196: #{tpu_custom_call.1} parent=1 // pred_region
      %418 = dma.done [#allocation18], 16
    $region197: #{tpu_custom_call.1} parent=1 // pred_fallthru
      _
    // Predicated region
    $region198: #{tpu_custom_call.1} parent=1 // pred_check
      _
    $region199: #{tpu_custom_call.1} parent=1 // pred_check_branch
      %420 = sbr.rel (0) target = $region201
    $region200: #{tpu_custom_call.1} parent=1 // pred_region
      %421 = dma.done [#allocation21], 16
    $region201: #{tpu_custom_call.1} parent=1 // pred_fallthru
      _
    // Predicated region
    $region202: #{tpu_custom_call.1} parent=1 // pred_check
      _
    $region203: #{tpu_custom_call.1} parent=1 // pred_check_branch
      %423 = sbr.rel (0) target = $region205
    $region204: #{tpu_custom_call.1} parent=1 // pred_region
      %424 = dma.done [#allocation21], 4096
    $region205: #{tpu_custom_call.1} parent=1 // pred_fallthru
      _
    // Predicated region
    $region206: #{tpu_custom_call.1} parent=1 // pred_check
      _
    $region207: #{tpu_custom_call.1} parent=1 // pred_check_branch
      %426 = sbr.rel (0) target = $region209
    $region208: #{tpu_custom_call.1} parent=1 // pred_region
      %427 = dma.done [#allocation24], 4096
    $region209: #{tpu_custom_call.1} parent=1 // pred_fallthru
      _
    // Predicated region
    $region210: #{tpu_custom_call.1} parent=1 // pred_check
      _
    $region211: #{tpu_custom_call.1} parent=1 // pred_check_branch
      %429 = sbr.rel (0) target = $region213
    $region212: #{tpu_custom_call.1} parent=1 // pred_region
      %430 = dma.done [#allocation24], 512
    $region213: #{tpu_custom_call.1} parent=1 // pred_fallthru
      _
    // Predicated region
    $region214: #{tpu_custom_call.1} parent=1 // pred_check
      _
    $region215: #{tpu_custom_call.1} parent=1 // pred_check_branch
      %432 = sbr.rel (0) target = $region217
    $region216: #{tpu_custom_call.1} parent=1 // pred_region
      %433 = dma.done [#allocation27], 16
    $region217: #{tpu_custom_call.1} parent=1 // pred_fallthru
      _
    // Predicated region
    $region218: #{tpu_custom_call.1} parent=1 // pred_check
      _
    $region219: #{tpu_custom_call.1} parent=1 // pred_check_branch
      %435 = sbr.rel (0) target = $region221
    $region220: #{tpu_custom_call.1} parent=1 // pred_region
      %436 = dma.done [#allocation27], 512
    $region221: #{tpu_custom_call.1} parent=1 // pred_fallthru
      _
    // Predicated region
    $region222: #{tpu_custom_call.1} parent=1 // pred_check
      _
    $region223: #{tpu_custom_call.1} parent=1 // pred_check_branch
      %438 = sbr.rel (0) target = $region225
    $region224: #{tpu_custom_call.1} parent=1 // pred_region
      %439 = dma.done [#allocation30], 512
    $region225: #{tpu_custom_call.1} parent=1 // pred_fallthru
      _
    // Predicated region
    $region226: #{tpu_custom_call.1} parent=1 // pred_check
      _
    $region227: #{tpu_custom_call.1} parent=1 // pred_check_branch
      %441 = sbr.rel (0) target = $region229
    $region228: #{tpu_custom_call.1} parent=1 // pred_region
      %442 = dma.done [#allocation30], 512
    $region229: #{tpu_custom_call.1} parent=1 // pred_fallthru
      _
    // Predicated region
    $region230: #{tpu_custom_call.1} parent=1 // pred_check
      _
    $region231: #{tpu_custom_call.1} parent=1 // pred_check_branch
      %444 = sbr.rel (0) target = $region233
    $region232: #{tpu_custom_call.1} parent=1 // pred_region
      %445 = dma.done [#allocation33], 16
    $region233: #{tpu_custom_call.1} parent=1 // pred_fallthru
      _
    // Predicated region
    $region234: #{tpu_custom_call.1} parent=1 // pred_check
      _
    $region235: #{tpu_custom_call.1} parent=1 // pred_check_branch
      %447 = sbr.rel (0) target = $region237
    $region236: #{tpu_custom_call.1} parent=1 // pred_region
      %448 = dma.done [#allocation33], 16
    $region237: #{tpu_custom_call.1} parent=1 // pred_fallthru
      _
    // Predicated region
    $region238: #{tpu_custom_call.1} parent=1 // pred_check
      _
    $region239: #{tpu_custom_call.1} parent=1 // pred_check_branch
      %450 = sbr.rel (0) target = $region241
    $region240: #{tpu_custom_call.1} parent=1 // pred_region
      %451 = dma.done [#allocation36], 512
    $region241: #{tpu_custom_call.1} parent=1 // pred_fallthru
      _
    // Predicated region
    $region242: #{tpu_custom_call.1} parent=1 // pred_check
      _
    $region243: #{tpu_custom_call.1} parent=1 // pred_check_branch
      %453 = sbr.rel (0) target = $region245
    $region244: #{tpu_custom_call.1} parent=1 // pred_region
      %454 = dma.done [#allocation36], 16
    $region245: #{tpu_custom_call.1} parent=1 // pred_fallthru
      _
    // Predicated region
    $region246: #{tpu_custom_call.1} parent=1 // pred_check
      _
    $region247: #{tpu_custom_call.1} parent=1 // pred_check_branch
      %456 = sbr.rel (0) target = $region249
    $region248: #{tpu_custom_call.1} parent=1 // pred_region
      %457 = dma.done [#allocation39], 16
    $region249: #{tpu_custom_call.1} parent=1 // pred_fallthru
      _
    %v458 = vld [vmem:[#allocation2] sm:$0xff]
    %v459 = vld [vmem:[#allocation2 + $0x8] sm:$0xff]
    %v460 = vld [vmem:[#allocation13] sm:$0xff]
    %v461 = vld [vmem:[#allocation13 + $0x8] sm:$0xff]
    %v462 = vld [vmem:[#allocation14] sm:$0x1]
    %v464 = vlaneseq
    %v465 = vshrl.u32 %v464, 7
    %v466 = vsub.s32 0, %v465
    %v467 = vrot.slane %v462, %v466
    %vm469 = vcmask 130048
    %v471 = vsel %vm469, %v458, 0
    %v474 = vsel %vm469, %v459, 0
    %476 = vmatprep.subr.mxu0 0.0
    %477 = vmatpush1.msra.mxu0 0.0
    %478 = vmatprep.subr.mxu0 0.0
    %479 = vmatpush1.msra.mxu0 0.0
    %480 = vmatprep.subr.mxu0 0.0
    %481 = vmatpush1.msra.mxu0 0.0
    %482 = vmatprep.subr.mxu0 0.0
    %483 = vmatpush1.msra.mxu0 0.0
    %484 = vmatprep.subr.mxu0 0.0
    %485 = vmatpush1.msra.mxu0 0.0
    %486 = vmatprep.subr.mxu0 0.0
    %487 = vmatpush1.msra.mxu0 0.0
    %488 = vmatprep.subr.mxu0 0.0
    %489 = vmatpush1.msra.mxu0 0.0
    %490 = vmatprep.subr.mxu0 0.0
    %491 = vmatpush1.msra.mxu0 0.0
    %492 = vmatprep.subr.mxu0 0.0
    %493 = vmatpush1.msra.mxu0 0.0
    %494 = vmatprep.subr.mxu0 0.0
    %495 = vmatpush1.msra.mxu0 0.0
    %496 = vmatprep.subr.mxu0 0.0
    %497 = vmatpush1.msra.mxu0 0.0
    %498 = vmatprep.subr.mxu0 0.0
    %499 = vmatpush1.msra.mxu0 0.0
    %500 = vmatprep.subr.mxu0 0.0
    %501 = vmatpush1.msra.mxu0 0.0
    %502 = vmatprep.subr.mxu0 0.0
    %503 = vmatpush1.msra.mxu0 0.0
    %504 = vmatprep.subr.mxu0 0.0
    %505 = vmatpush1.msra.mxu0 %v461
    %506 = vmatprep.subr.mxu0 0.0
    %507 = vmatpush1.msra.mxu0 %v460
    %508 = vmatprep.subr.mxu0 0.0
    %509 = vmatpush2.msra.mxu0 0.0
    %510 = vmatprep.subr.mxu0 0.0
    %511 = vmatpush2.msra.mxu0 0.0
    %512 = vmatprep.subr.mxu0 0.0
    %513 = vmatpush2.msra.mxu0 0.0
    %514 = vmatprep.subr.mxu0 0.0
    %515 = vmatpush2.msra.mxu0 0.0
    %516 = vmatprep.subr.mxu0 0.0
    %517 = vmatpush2.msra.mxu0 0.0
    %518 = vmatprep.subr.mxu0 0.0
    %519 = vmatpush2.msra.mxu0 0.0
    %520 = vmatprep.subr.mxu0 0.0
    %521 = vmatpush2.msra.mxu0 0.0
    %522 = vmatprep.subr.mxu0 0.0
    %523 = vmatpush2.msra.mxu0 0.0
    %524 = vmatprep.subr.mxu0 0.0
    %525 = vmatpush2.msra.mxu0 0.0
    %526 = vmatprep.subr.mxu0 0.0
    %527 = vmatpush2.msra.mxu0 0.0
    %528 = vmatprep.subr.mxu0 0.0
    %529 = vmatpush2.msra.mxu0 0.0
    %530 = vmatprep.subr.mxu0 0.0
    %531 = vmatpush2.msra.mxu0 0.0
    %532 = vmatprep.subr.mxu0 0.0
    %533 = vmatpush2.msra.mxu0 0.0
    %534 = vmatprep.subr.mxu0 0.0
    %535 = vmatpush2.msra.mxu0 0.0
    %536 = vmatprep.subr.mxu0 0.0
    %537 = vmatpush2.msra.mxu0 0.0
    %538 = vmatprep.subr.mxu0 0.0
    %539 = vmatpush2.msra.mxu0 0.0
    %540 = vmatprep.mubr.f32.mxu0 0.0
    %541 = vmatmul.mubr.f32.gmra.mxu0 %v471
    %v542 = vpop.f32.mrf.mxu0
    %v543 = vadd.f32 %v467, %v542
    %v544 = vpop.f32.mrf.mxu0
    %545 = vmatprep.mubr.f32.mxu0 0.0
    %546 = vmatmul.mubr.f32.gmra.mxu0 %v474
    %v547 = vpop.f32.mrf.mxu0
    %v548 = vadd.f32 %v467, %v547
    %v549 = vpop.f32.mrf.mxu0
    %550 = vdwg.mxu0
    %v551 = vmax.f32 %v543, 0.0
    %v552 = vmax.f32 %v548, 0.0
    %v553 = vld [vmem:[%s21] sm:$0xff]
    %v554 = vld [vmem:[%s21 + $0x8] sm:$0xff]
    %v555 = vld [vmem:[%s21 + $0x10] sm:$0xff]
    %v556 = vld [vmem:[%s21 + $0x18] sm:$0xff]
    %v557 = vld [vmem:[#allocation16] sm:$0x1]
    %v559 = vlaneseq
    %v560 = vshrl.u32 %v559, 7
    %v561 = vsub.s32 0, %v560
    %v562 = vrot.slane %v557, %v561
    %vm564 = vcmask 261120
    %v566 = vsel %vm564, %v551, 0
    %v569 = vsel %vm564, %v552, 0
    %571 = vmatprep.subr.mxu0 0.0
    %572 = vmatpush1.msra.mxu0 0.0
    %573 = vmatprep.subr.mxu0 0.0
    %574 = vmatpush1.msra.mxu0 0.0
    %575 = vmatprep.subr.mxu0 0.0
    %576 = vmatpush1.msra.mxu0 0.0
    %577 = vmatprep.subr.mxu0 0.0
    %578 = vmatpush1.msra.mxu0 0.0
    %579 = vmatprep.subr.mxu0 0.0
    %580 = vmatpush1.msra.mxu0 0.0
    %581 = vmatprep.subr.mxu0 0.0
    %582 = vmatpush1.msra.mxu0 0.0
    %583 = vmatprep.subr.mxu0 0.0
    %584 = vmatpush1.msra.mxu0 0.0
    %585 = vmatprep.subr.mxu0 0.0
    %586 = vmatpush1.msra.mxu0 0.0
    %587 = vmatprep.subr.mxu0 0.0
    %588 = vmatpush1.msra.mxu0 0.0
    %589 = vmatprep.subr.mxu0 0.0
    %590 = vmatpush1.msra.mxu0 0.0
    %591 = vmatprep.subr.mxu0 0.0
    %592 = vmatpush1.msra.mxu0 0.0
    %593 = vmatprep.subr.mxu0 0.0
    %594 = vmatpush1.msra.mxu0 0.0
    %595 = vmatprep.subr.mxu0 0.0
    %596 = vmatpush1.msra.mxu0 %v556
    %597 = vmatprep.subr.mxu0 0.0
    %598 = vmatpush1.msra.mxu0 %v555
    %599 = vmatprep.subr.mxu0 0.0
    %600 = vmatpush1.msra.mxu0 %v554
    %601 = vmatprep.subr.mxu0 0.0
    %602 = vmatpush1.msra.mxu0 %v553
    %603 = vmatprep.subr.mxu0 0.0
    %604 = vmatpush2.msra.mxu0 0.0
    %605 = vmatprep.subr.mxu0 0.0
    %606 = vmatpush2.msra.mxu0 0.0
    %607 = vmatprep.subr.mxu0 0.0
    %608 = vmatpush2.msra.mxu0 0.0
    %609 = vmatprep.subr.mxu0 0.0
    %610 = vmatpush2.msra.mxu0 0.0
    %611 = vmatprep.subr.mxu0 0.0
    %612 = vmatpush2.msra.mxu0 0.0
    %613 = vmatprep.subr.mxu0 0.0
    %614 = vmatpush2.msra.mxu0 0.0
    %615 = vmatprep.subr.mxu0 0.0
    %616 = vmatpush2.msra.mxu0 0.0
    %617 = vmatprep.subr.mxu0 0.0
    %618 = vmatpush2.msra.mxu0 0.0
    %619 = vmatprep.subr.mxu0 0.0
    %620 = vmatpush2.msra.mxu0 0.0
    %621 = vmatprep.subr.mxu0 0.0
    %622 = vmatpush2.msra.mxu0 0.0
    %623 = vmatprep.subr.mxu0 0.0
    %624 = vmatpush2.msra.mxu0 0.0
    %625 = vmatprep.subr.mxu0 0.0
    %626 = vmatpush2.msra.mxu0 0.0
    %627 = vmatprep.subr.mxu0 0.0
    %628 = vmatpush2.msra.mxu0 0.0
    %629 = vmatprep.subr.mxu0 0.0
    %630 = vmatpush2.msra.mxu0 0.0
    %631 = vmatprep.subr.mxu0 0.0
    %632 = vmatpush2.msra.mxu0 0.0
    %633 = vmatprep.subr.mxu0 0.0
    %634 = vmatpush2.msra.mxu0 0.0
    %635 = vmatprep.mubr.f32.mxu0 0.0
    %636 = vmatmul.mubr.f32.gmra.mxu0 %v566
    %v637 = vpop.f32.mrf.mxu0
    %v638 = vadd.f32 %v562, %v637
    %v639 = vpop.f32.mrf.mxu0
    %640 = vmatprep.mubr.f32.mxu0 0.0
    %641 = vmatmul.mubr.f32.gmra.mxu0 %v569
    %v642 = vpop.f32.mrf.mxu0
    %v643 = vadd.f32 %v562, %v642
    %v644 = vpop.f32.mrf.mxu0
    %645 = vdwg.mxu0
    %v646 = vmax.f32 %v638, 0.0
    %v647 = vmax.f32 %v643, 0.0
    %v648 = vld [vmem:[#allocation5] sm:$0xff]
    %v649 = vld [vmem:[#allocation17] sm:$0xff]
    %v650 = vld [vmem:[#allocation17 + $0x8] sm:$0xf]
    %v651 = vld [vmem:[#allocation19] sm:$0x1]
    %v653 = vlaneseq
    %v654 = vshrl.u32 %v653, 7
    %v655 = vsub.s32 0, %v654
    %v656 = vrot.slane %v651, %v655
    %vm658 = vcmask 97280
    %v660 = vsel %vm658, %v648, 0
    %vm662 = vcmask 1043456
    %v664 = vsel %vm662, %v650, 0
    %666 = vmatprep.subr.mxu0 0.0
    %667 = vmatpush1.msra.mxu0 0.0
    %668 = vmatprep.subr.mxu0 0.0
    %669 = vmatpush1.msra.mxu0 0.0
    %670 = vmatprep.subr.mxu0 0.0
    %671 = vmatpush1.msra.mxu0 0.0
    %672 = vmatprep.subr.mxu0 0.0
    %673 = vmatpush1.msra.mxu0 0.0
    %674 = vmatprep.subr.mxu0 0.0
    %675 = vmatpush1.msra.mxu0 0.0
    %676 = vmatprep.subr.mxu0 0.0
    %677 = vmatpush1.msra.mxu0 0.0
    %678 = vmatprep.subr.mxu0 0.0
    %679 = vmatpush1.msra.mxu0 0.0
    %680 = vmatprep.subr.mxu0 0.0
    %681 = vmatpush1.msra.mxu0 0.0
    %682 = vmatprep.subr.mxu0 0.0
    %683 = vmatpush1.msra.mxu0 0.0
    %684 = vmatprep.subr.mxu0 0.0
    %685 = vmatpush1.msra.mxu0 0.0
    %686 = vmatprep.subr.mxu0 0.0
    %687 = vmatpush1.msra.mxu0 0.0
    %688 = vmatprep.subr.mxu0 0.0
    %689 = vmatpush1.msra.mxu0 0.0
    %690 = vmatprep.subr.mxu0 0.0
    %691 = vmatpush1.msra.mxu0 0.0
    %692 = vmatprep.subr.mxu0 0.0
    %693 = vmatpush1.msra.mxu0 0.0
    %694 = vmatprep.subr.mxu0 0.0
    %695 = vmatpush1.msra.mxu0 %v664
    %696 = vmatprep.subr.mxu0 0.0
    %697 = vmatpush1.msra.mxu0 %v649
    %698 = vmatprep.subr.mxu0 0.0
    %699 = vmatpush2.msra.mxu0 0.0
    %700 = vmatprep.subr.mxu0 0.0
    %701 = vmatpush2.msra.mxu0 0.0
    %702 = vmatprep.subr.mxu0 0.0
    %703 = vmatpush2.msra.mxu0 0.0
    %704 = vmatprep.subr.mxu0 0.0
    %705 = vmatpush2.msra.mxu0 0.0
    %706 = vmatprep.subr.mxu0 0.0
    %707 = vmatpush2.msra.mxu0 0.0
    %708 = vmatprep.subr.mxu0 0.0
    %709 = vmatpush2.msra.mxu0 0.0
    %710 = vmatprep.subr.mxu0 0.0
    %711 = vmatpush2.msra.mxu0 0.0
    %712 = vmatprep.subr.mxu0 0.0
    %713 = vmatpush2.msra.mxu0 0.0
    %714 = vmatprep.subr.mxu0 0.0
    %715 = vmatpush2.msra.mxu0 0.0
    %716 = vmatprep.subr.mxu0 0.0
    %717 = vmatpush2.msra.mxu0 0.0
    %718 = vmatprep.subr.mxu0 0.0
    %719 = vmatpush2.msra.mxu0 0.0
    %720 = vmatprep.subr.mxu0 0.0
    %721 = vmatpush2.msra.mxu0 0.0
    %722 = vmatprep.subr.mxu0 0.0
    %723 = vmatpush2.msra.mxu0 0.0
    %724 = vmatprep.subr.mxu0 0.0
    %725 = vmatpush2.msra.mxu0 0.0
    %726 = vmatprep.subr.mxu0 0.0
    %727 = vmatpush2.msra.mxu0 0.0
    %728 = vmatprep.subr.mxu0 0.0
    %729 = vmatpush2.msra.mxu0 0.0
    %730 = vmatprep.mubr.f32.mxu0 0.0
    %731 = vmatmul.mubr.f32.gmra.mxu0 %v660
    %v732 = vpop.f32.mrf.mxu0
    %v733 = vadd.f32 %v656, %v732
    %v734 = vpop.f32.mrf.mxu0
    %735 = vdwg.mxu0
    %v736 = vmax.f32 %v733, 0.0
    %v737 = vld [vmem:[%s29] sm:$0xff]
    %v738 = vld [vmem:[%s29 + $0x8] sm:$0xff]
    %v739 = vld [vmem:[%s29 + $0x10] sm:$0xff]
    %v740 = vld [vmem:[%s29 + $0x18] sm:$0xff]
    %v741 = vld [vmem:[#allocation20] sm:$0x1]
    %v743 = vlaneseq
    %v744 = vshrl.u32 %v743, 7
    %v745 = vsub.s32 0, %v744
    %v746 = vrot.slane %v741, %v745
    %v749 = vsel %vm564, %v736, 0
    %751 = vmatprep.subr.mxu0 0.0
    %752 = vmatpush1.msra.mxu0 0.0
    %753 = vmatprep.subr.mxu0 0.0
    %754 = vmatpush1.msra.mxu0 0.0
    %755 = vmatprep.subr.mxu0 0.0
    %756 = vmatpush1.msra.mxu0 0.0
    %757 = vmatprep.subr.mxu0 0.0
    %758 = vmatpush1.msra.mxu0 0.0
    %759 = vmatprep.subr.mxu0 0.0
    %760 = vmatpush1.msra.mxu0 0.0
    %761 = vmatprep.subr.mxu0 0.0
    %762 = vmatpush1.msra.mxu0 0.0
    %763 = vmatprep.subr.mxu0 0.0
    %764 = vmatpush1.msra.mxu0 0.0
    %765 = vmatprep.subr.mxu0 0.0
    %766 = vmatpush1.msra.mxu0 0.0
    %767 = vmatprep.subr.mxu0 0.0
    %768 = vmatpush1.msra.mxu0 0.0
    %769 = vmatprep.subr.mxu0 0.0
    %770 = vmatpush1.msra.mxu0 0.0
    %771 = vmatprep.subr.mxu0 0.0
    %772 = vmatpush1.msra.mxu0 0.0
    %773 = vmatprep.subr.mxu0 0.0
    %774 = vmatpush1.msra.mxu0 0.0
    %775 = vmatprep.subr.mxu0 0.0
    %776 = vmatpush1.msra.mxu0 %v740
    %777 = vmatprep.subr.mxu0 0.0
    %778 = vmatpush1.msra.mxu0 %v739
    %779 = vmatprep.subr.mxu0 0.0
    %780 = vmatpush1.msra.mxu0 %v738
    %781 = vmatprep.subr.mxu0 0.0
    %782 = vmatpush1.msra.mxu0 %v737
    %783 = vmatprep.subr.mxu0 0.0
    %784 = vmatpush2.msra.mxu0 0.0
    %785 = vmatprep.subr.mxu0 0.0
    %786 = vmatpush2.msra.mxu0 0.0
    %787 = vmatprep.subr.mxu0 0.0
    %788 = vmatpush2.msra.mxu0 0.0
    %789 = vmatprep.subr.mxu0 0.0
    %790 = vmatpush2.msra.mxu0 0.0
    %791 = vmatprep.subr.mxu0 0.0
    %792 = vmatpush2.msra.mxu0 0.0
    %793 = vmatprep.subr.mxu0 0.0
    %794 = vmatpush2.msra.mxu0 0.0
    %795 = vmatprep.subr.mxu0 0.0
    %796 = vmatpush2.msra.mxu0 0.0
    %797 = vmatprep.subr.mxu0 0.0
    %798 = vmatpush2.msra.mxu0 0.0
    %799 = vmatprep.subr.mxu0 0.0
    %800 = vmatpush2.msra.mxu0 0.0
    %801 = vmatprep.subr.mxu0 0.0
    %802 = vmatpush2.msra.mxu0 0.0
    %803 = vmatprep.subr.mxu0 0.0
    %804 = vmatpush2.msra.mxu0 0.0
    %805 = vmatprep.subr.mxu0 0.0
    %806 = vmatpush2.msra.mxu0 0.0
    %807 = vmatprep.subr.mxu0 0.0
    %808 = vmatpush2.msra.mxu0 0.0
    %809 = vmatprep.subr.mxu0 0.0
    %810 = vmatpush2.msra.mxu0 0.0
    %811 = vmatprep.subr.mxu0 0.0
    %812 = vmatpush2.msra.mxu0 0.0
    %813 = vmatprep.subr.mxu0 0.0
    %814 = vmatpush2.msra.mxu0 0.0
    %815 = vmatprep.mubr.f32.mxu0 0.0
    %816 = vmatmul.mubr.f32.gmra.mxu0 %v749
    %v817 = vpop.f32.mrf.mxu0
    %v818 = vadd.f32 %v746, %v817
    %v819 = vpop.f32.mrf.mxu0
    %820 = vdwg.mxu0
    %v821 = vmax.f32 %v818, 0.0
    %v822 = vld [vmem:[%s3] sm:$0xff]
    %v823 = vld [vmem:[%s3 + $0x8] sm:$0xff]
    %v824 = vld [vmem:[%s3 + $0x10] sm:$0xff]
    %v825 = vld [vmem:[%s3 + $0x18] sm:$0xff]
    %vm826 = vcmask 64512
    %v827 = vsel %vm826, %v822, 0.0
    %v828 = vsel %vm826, %v823, 0.0
    %v829 = vadd.f32 %v827, %v828
    %v830 = vsel %vm826, %v824, 0.0
    %v831 = vadd.f32 %v829, %v830
    %v832 = vsel %vm826, %v825, 0.0
    %v833 = vadd.f32 %v831, %v832
    %v834 = vrot.slane %v833, 4
    %v835 = vadd.f32 %v833, %v834
    %v836 = vrot.slane %v835, 2
    %v837 = vadd.f32 %v835, %v836
    %v838 = vrot.slane %v837, 1
    %v839 = vadd.f32 %v837, %v838
    %v840 = vrcp.pop 32.0
    %v841 = vmul.f32 %v839, %v840
    %v842 = vld [vmem:[%s35] sm:$0xff]
    %v843 = vld [vmem:[%s35 + $0x8] sm:$0xff]
    %v844 = vld [vmem:[%s35 + $0x10] sm:$0xff]
    %v845 = vld [vmem:[%s35 + $0x18] sm:$0xff]
    %v846 = vld [vmem:[#allocation22] sm:$0xff]
    %v847 = vld [vmem:[#allocation22 + $0x8] sm:$0xff]
    %v848 = vld [vmem:[#allocation22 + $0x10] sm:$0xff]
    %v849 = vld [vmem:[#allocation22 + $0x18] sm:$0xff]
    %851 = vset.pattern.permute.xlu0 0
    %852 = vperm.xlu0 %851, %v841
    %v853 = vpop.permute.xlu0 %852
    %v855 = vmul.f32 %v853, %v846
    %v856 = vmul.f32 %v853, %v847
    %v857 = vmul.f32 %v853, %v848
    %v858 = vmul.f32 %v853, %v849
    %v859 = vadd.f32 %v842, %v855
    %v860 = vadd.f32 %v843, %v856
    %v861 = vadd.f32 %v844, %v857
    %v862 = vadd.f32 %v845, %v858
    %s863 = scalar_lea.vmem [#allocation22], 32
    %v864 = vld [vmem:[%s863] sm:$0xff]
    %v865 = vld [vmem:[%s863 + $0x8] sm:$0xff]
    %v866 = vld [vmem:[%s863 + $0x10] sm:$0xff]
    %v867 = vld [vmem:[%s863 + $0x18] sm:$0xff]
    %868 = vset.pattern.permute.xlu0 1
    %869 = vperm.xlu0 %868, %v841
    %v870 = vpop.permute.xlu0 %869
    %v872 = vmul.f32 %v870, %v864
    %v873 = vmul.f32 %v870, %v865
    %v874 = vmul.f32 %v870, %v866
    %v875 = vmul.f32 %v870, %v867
    %v876 = vadd.f32 %v859, %v872
    %v877 = vadd.f32 %v860, %v873
    %v878 = vadd.f32 %v861, %v874
    %v879 = vadd.f32 %v862, %v875
    %s880 = scalar_lea.vmem [#allocation22], 64
    %v881 = vld [vmem:[%s880] sm:$0xff]
    %v882 = vld [vmem:[%s880 + $0x8] sm:$0xff]
    %v883 = vld [vmem:[%s880 + $0x10] sm:$0xff]
    %v884 = vld [vmem:[%s880 + $0x18] sm:$0xff]
    %885 = vset.pattern.permute.xlu0 2
    %886 = vperm.xlu0 %885, %v841
    %v887 = vpop.permute.xlu0 %886
    %v889 = vmul.f32 %v887, %v881
    %v890 = vmul.f32 %v887, %v882
    %v891 = vmul.f32 %v887, %v883
    %v892 = vmul.f32 %v887, %v884
    %v893 = vadd.f32 %v876, %v889
    %v894 = vadd.f32 %v877, %v890
    %v895 = vadd.f32 %v878, %v891
    %v896 = vadd.f32 %v879, %v892
    %s897 = scalar_lea.vmem [#allocation22], 96
    %v898 = vld [vmem:[%s897] sm:$0xff]
    %v899 = vld [vmem:[%s897 + $0x8] sm:$0xff]
    %v900 = vld [vmem:[%s897 + $0x10] sm:$0xff]
    %v901 = vld [vmem:[%s897 + $0x18] sm:$0xff]
    %902 = vset.pattern.permute.xlu0 3
    %903 = vperm.xlu0 %902, %v841
    %v904 = vpop.permute.xlu0 %903
    %v906 = vmul.f32 %v904, %v898
    %v907 = vmul.f32 %v904, %v899
    %v908 = vmul.f32 %v904, %v900
    %v909 = vmul.f32 %v904, %v901
    %v910 = vadd.f32 %v893, %v906
    %v911 = vadd.f32 %v894, %v907
    %v912 = vadd.f32 %v895, %v908
    %v913 = vadd.f32 %v896, %v909
    %s914 = scalar_lea.vmem [#allocation22], 128
    %v915 = vld [vmem:[%s914] sm:$0xff]
    %v916 = vld [vmem:[%s914 + $0x8] sm:$0xff]
    %v917 = vld [vmem:[%s914 + $0x10] sm:$0xff]
    %v918 = vld [vmem:[%s914 + $0x18] sm:$0xff]
    %919 = vset.pattern.permute.xlu0 4
    %920 = vperm.xlu0 %919, %v841
    %v921 = vpop.permute.xlu0 %920
    %v923 = vmul.f32 %v921, %v915
    %v924 = vmul.f32 %v921, %v916
    %v925 = vmul.f32 %v921, %v917
    %v926 = vmul.f32 %v921, %v918
    %v927 = vadd.f32 %v910, %v923
    %v928 = vadd.f32 %v911, %v924
    %v929 = vadd.f32 %v912, %v925
    %v930 = vadd.f32 %v913, %v926
    %s931 = scalar_lea.vmem [#allocation22], 160
    %v932 = vld [vmem:[%s931] sm:$0xff]
    %v933 = vld [vmem:[%s931 + $0x8] sm:$0xff]
    %v934 = vld [vmem:[%s931 + $0x10] sm:$0xff]
    %v935 = vld [vmem:[%s931 + $0x18] sm:$0xff]
    %936 = vset.pattern.permute.xlu0 5
    %937 = vperm.xlu0 %936, %v841
    %v938 = vpop.permute.xlu0 %937
    %v940 = vmul.f32 %v938, %v932
    %v941 = vmul.f32 %v938, %v933
    %v942 = vmul.f32 %v938, %v934
    %v943 = vmul.f32 %v938, %v935
    %v944 = vadd.f32 %v927, %v940
    %v945 = vadd.f32 %v928, %v941
    %v946 = vadd.f32 %v929, %v942
    %v947 = vadd.f32 %v930, %v943
    %s948 = scalar_lea.vmem [#allocation22], 192
    %v949 = vld [vmem:[%s948] sm:$0xff]
    %v950 = vld [vmem:[%s948 + $0x8] sm:$0xff]
    %v951 = vld [vmem:[%s948 + $0x10] sm:$0xff]
    %v952 = vld [vmem:[%s948 + $0x18] sm:$0xff]
    %953 = vset.pattern.permute.xlu0 6
    %954 = vperm.xlu0 %953, %v841
    %v955 = vpop.permute.xlu0 %954
    %v957 = vmul.f32 %v955, %v949
    %v958 = vmul.f32 %v955, %v950
    %v959 = vmul.f32 %v955, %v951
    %v960 = vmul.f32 %v955, %v952
    %v961 = vadd.f32 %v944, %v957
    %v962 = vadd.f32 %v945, %v958
    %v963 = vadd.f32 %v946, %v959
    %v964 = vadd.f32 %v947, %v960
    %s965 = scalar_lea.vmem [#allocation22], 224
    %v966 = vld [vmem:[%s965] sm:$0xff]
    %v967 = vld [vmem:[%s965 + $0x8] sm:$0xff]
    %v968 = vld [vmem:[%s965 + $0x10] sm:$0xff]
    %v969 = vld [vmem:[%s965 + $0x18] sm:$0xff]
    %970 = vset.pattern.permute.xlu0 7
    %971 = vperm.xlu0 %970, %v841
    %v972 = vpop.permute.xlu0 %971
    %v974 = vmul.f32 %v972, %v966
    %v975 = vmul.f32 %v972, %v967
    %v976 = vmul.f32 %v972, %v968
    %v977 = vmul.f32 %v972, %v969
    %v978 = vadd.f32 %v961, %v974
    %v979 = vadd.f32 %v962, %v975
    %v980 = vadd.f32 %v963, %v976
    %v981 = vadd.f32 %v964, %v977
    %v982 = vld [vmem:[%s7] sm:$0xff]
    %v983 = vld [vmem:[%s7 + $0x8] sm:$0xff]
    %v984 = vsel %vm826, %v982, 0.0
    %v985 = vsel %vm826, %v983, 0.0
    %v986 = vadd.f32 %v984, %v985
    %v987 = vrot.slane %v986, 4
    %v988 = vadd.f32 %v986, %v987
    %v989 = vrot.slane %v988, 2
    %v990 = vadd.f32 %v988, %v989
    %v991 = vrot.slane %v990, 1
    %v992 = vadd.f32 %v990, %v991
    %v993 = vrcp.pop 16.0
    %v994 = vmul.f32 %v992, %v993
    %v995 = vld [vmem:[%s39] sm:$0xff]
    %v996 = vld [vmem:[%s39 + $0x8] sm:$0xff]
    %v997 = vld [vmem:[%s39 + $0x10] sm:$0xff]
    %v998 = vld [vmem:[%s39 + $0x18] sm:$0xff]
    %v999 = vld [vmem:[#allocation23] sm:$0xff]
    %v1000 = vld [vmem:[#allocation23 + $0x8] sm:$0xff]
    %v1001 = vld [vmem:[#allocation23 + $0x10] sm:$0xff]
    %v1002 = vld [vmem:[#allocation23 + $0x18] sm:$0xff]
    %1004 = vset.pattern.permute.xlu0 0
    %1005 = vperm.xlu0 %1004, %v994
    %v1006 = vpop.permute.xlu0 %1005
    %v1008 = vmul.f32 %v1006, %v999
    %v1009 = vmul.f32 %v1006, %v1000
    %v1010 = vmul.f32 %v1006, %v1001
    %v1011 = vmul.f32 %v1006, %v1002
    %v1012 = vadd.f32 %v995, %v1008
    %v1013 = vadd.f32 %v996, %v1009
    %v1014 = vadd.f32 %v997, %v1010
    %v1015 = vadd.f32 %v998, %v1011
    %s1016 = scalar_lea.vmem [#allocation23], 32
    %v1017 = vld [vmem:[%s1016] sm:$0xff]
    %v1018 = vld [vmem:[%s1016 + $0x8] sm:$0xff]
    %v1019 = vld [vmem:[%s1016 + $0x10] sm:$0xff]
    %v1020 = vld [vmem:[%s1016 + $0x18] sm:$0xff]
    %1021 = vset.pattern.permute.xlu0 1
    %1022 = vperm.xlu0 %1021, %v994
    %v1023 = vpop.permute.xlu0 %1022
    %v1025 = vmul.f32 %v1023, %v1017
    %v1026 = vmul.f32 %v1023, %v1018
    %v1027 = vmul.f32 %v1023, %v1019
    %v1028 = vmul.f32 %v1023, %v1020
    %v1029 = vadd.f32 %v1012, %v1025
    %v1030 = vadd.f32 %v1013, %v1026
    %v1031 = vadd.f32 %v1014, %v1027
    %v1032 = vadd.f32 %v1015, %v1028
    %s1033 = scalar_lea.vmem [#allocation23], 64
    %v1034 = vld [vmem:[%s1033] sm:$0xff]
    %v1035 = vld [vmem:[%s1033 + $0x8] sm:$0xff]
    %v1036 = vld [vmem:[%s1033 + $0x10] sm:$0xff]
    %v1037 = vld [vmem:[%s1033 + $0x18] sm:$0xff]
    %1038 = vset.pattern.permute.xlu0 2
    %1039 = vperm.xlu0 %1038, %v994
    %v1040 = vpop.permute.xlu0 %1039
    %v1042 = vmul.f32 %v1040, %v1034
    %v1043 = vmul.f32 %v1040, %v1035
    %v1044 = vmul.f32 %v1040, %v1036
    %v1045 = vmul.f32 %v1040, %v1037
    %v1046 = vadd.f32 %v1029, %v1042
    %v1047 = vadd.f32 %v1030, %v1043
    %v1048 = vadd.f32 %v1031, %v1044
    %v1049 = vadd.f32 %v1032, %v1045
    %s1050 = scalar_lea.vmem [#allocation23], 96
    %v1051 = vld [vmem:[%s1050] sm:$0xff]
    %v1052 = vld [vmem:[%s1050 + $0x8] sm:$0xff]
    %v1053 = vld [vmem:[%s1050 + $0x10] sm:$0xff]
    %v1054 = vld [vmem:[%s1050 + $0x18] sm:$0xff]
    %1055 = vset.pattern.permute.xlu0 3
    %1056 = vperm.xlu0 %1055, %v994
    %v1057 = vpop.permute.xlu0 %1056
    %v1059 = vmul.f32 %v1057, %v1051
    %v1060 = vmul.f32 %v1057, %v1052
    %v1061 = vmul.f32 %v1057, %v1053
    %v1062 = vmul.f32 %v1057, %v1054
    %v1063 = vadd.f32 %v1046, %v1059
    %v1064 = vadd.f32 %v1047, %v1060
    %v1065 = vadd.f32 %v1048, %v1061
    %v1066 = vadd.f32 %v1049, %v1062
    %s1067 = scalar_lea.vmem [#allocation23], 128
    %v1068 = vld [vmem:[%s1067] sm:$0xff]
    %v1069 = vld [vmem:[%s1067 + $0x8] sm:$0xff]
    %v1070 = vld [vmem:[%s1067 + $0x10] sm:$0xff]
    %v1071 = vld [vmem:[%s1067 + $0x18] sm:$0xff]
    %1072 = vset.pattern.permute.xlu0 4
    %1073 = vperm.xlu0 %1072, %v994
    %v1074 = vpop.permute.xlu0 %1073
    %v1076 = vmul.f32 %v1074, %v1068
    %v1077 = vmul.f32 %v1074, %v1069
    %v1078 = vmul.f32 %v1074, %v1070
    %v1079 = vmul.f32 %v1074, %v1071
    %v1080 = vadd.f32 %v1063, %v1076
    %v1081 = vadd.f32 %v1064, %v1077
    %v1082 = vadd.f32 %v1065, %v1078
    %v1083 = vadd.f32 %v1066, %v1079
    %s1084 = scalar_lea.vmem [#allocation23], 160
    %v1085 = vld [vmem:[%s1084] sm:$0xff]
    %v1086 = vld [vmem:[%s1084 + $0x8] sm:$0xff]
    %v1087 = vld [vmem:[%s1084 + $0x10] sm:$0xff]
    %v1088 = vld [vmem:[%s1084 + $0x18] sm:$0xff]
    %1089 = vset.pattern.permute.xlu0 5
    %1090 = vperm.xlu0 %1089, %v994
    %v1091 = vpop.permute.xlu0 %1090
    %v1093 = vmul.f32 %v1091, %v1085
    %v1094 = vmul.f32 %v1091, %v1086
    %v1095 = vmul.f32 %v1091, %v1087
    %v1096 = vmul.f32 %v1091, %v1088
    %v1097 = vadd.f32 %v1080, %v1093
    %v1098 = vadd.f32 %v1081, %v1094
    %v1099 = vadd.f32 %v1082, %v1095
    %v1100 = vadd.f32 %v1083, %v1096
    %s1101 = scalar_lea.vmem [#allocation23], 192
    %v1102 = vld [vmem:[%s1101] sm:$0xff]
    %v1103 = vld [vmem:[%s1101 + $0x8] sm:$0xff]
    %v1104 = vld [vmem:[%s1101 + $0x10] sm:$0xff]
    %v1105 = vld [vmem:[%s1101 + $0x18] sm:$0xff]
    %1106 = vset.pattern.permute.xlu0 6
    %1107 = vperm.xlu0 %1106, %v994
    %v1108 = vpop.permute.xlu0 %1107
    %v1110 = vmul.f32 %v1108, %v1102
    %v1111 = vmul.f32 %v1108, %v1103
    %v1112 = vmul.f32 %v1108, %v1104
    %v1113 = vmul.f32 %v1108, %v1105
    %v1114 = vadd.f32 %v1097, %v1110
    %v1115 = vadd.f32 %v1098, %v1111
    %v1116 = vadd.f32 %v1099, %v1112
    %v1117 = vadd.f32 %v1100, %v1113
    %s1118 = scalar_lea.vmem [#allocation23], 224
    %v1119 = vld [vmem:[%s1118] sm:$0xff]
    %v1120 = vld [vmem:[%s1118 + $0x8] sm:$0xff]
    %v1121 = vld [vmem:[%s1118 + $0x10] sm:$0xff]
    %v1122 = vld [vmem:[%s1118 + $0x18] sm:$0xff]
    %1123 = vset.pattern.permute.xlu0 7
    %1124 = vperm.xlu0 %1123, %v994
    %v1125 = vpop.permute.xlu0 %1124
    %v1127 = vmul.f32 %v1125, %v1119
    %v1128 = vmul.f32 %v1125, %v1120
    %v1129 = vmul.f32 %v1125, %v1121
    %v1130 = vmul.f32 %v1125, %v1122
    %v1131 = vadd.f32 %v1114, %v1127
    %v1132 = vadd.f32 %v1115, %v1128
    %v1133 = vadd.f32 %v1116, %v1129
    %v1134 = vadd.f32 %v1117, %v1130
    %v1135 = vld [vmem:[#allocation8] sm:$0xff]
    %v1136 = vld [vmem:[#allocation8 + $0x8] sm:$0xff]
    %v1137 = vld [vmem:[#allocation10] sm:$0xff]
    %v1138 = vld [vmem:[#allocation11] sm:$0xff]
    %v1139 = vld [vmem:[%s41] sm:$0xff]
    %v1140 = vld [vmem:[%s41 + $0x8] sm:$0xff]
    %v1141 = vld [vmem:[%s41 + $0x10] sm:$0xff]
    %v1142 = vld [vmem:[%s41 + $0x18] sm:$0xff]
    %v1143 = vld [vmem:[%s43] sm:$0xff]
    %v1144 = vld [vmem:[%s43 + $0x8] sm:$0xff]
    %v1145 = vld [vmem:[%s43 + $0x10] sm:$0xff]
    %v1146 = vld [vmem:[%s43 + $0x18] sm:$0xff]
    %v1147 = vld [vmem:[#allocation25] sm:$0xff]
    %v1148 = vld [vmem:[#allocation25 + $0x8] sm:$0xff]
    %v1149 = vld [vmem:[#allocation25 + $0x10] sm:$0xff]
    %v1150 = vld [vmem:[#allocation25 + $0x18] sm:$0xff]
    %v1151 = vld [vmem:[#allocation26] sm:$0x1]
    %v1152 = vld [vmem:[#allocation28] sm:$0xff]
    %v1153 = vld [vmem:[#allocation28 + $0x8] sm:$0xff]
    %v1154 = vld [vmem:[#allocation28 + $0x10] sm:$0xff]
    %v1155 = vld [vmem:[#allocation28 + $0x18] sm:$0xff]
    %v1156 = vld [vmem:[#allocation29] sm:$0xff]
    %v1157 = vld [vmem:[#allocation29 + $0x8] sm:$0xff]
    %v1158 = vld [vmem:[#allocation29 + $0x10] sm:$0xff]
    %v1159 = vld [vmem:[#allocation29 + $0x18] sm:$0xff]
    %v1160 = vld [vmem:[#allocation31] sm:$0xff]
    %v1161 = vld [vmem:[#allocation31 + $0x8] sm:$0xff]
    %v1162 = vld [vmem:[#allocation31 + $0x10] sm:$0xff]
    %v1163 = vld [vmem:[#allocation31 + $0x18] sm:$0xff]
    %v1164 = vld [vmem:[#allocation32] sm:$0x1]
    %v1165 = vld [vmem:[#allocation34] sm:$0x1]
    %v1166 = vld [vmem:[#allocation35] sm:$0xff]
    %v1167 = vld [vmem:[#allocation35 + $0x8] sm:$0xff]
    %v1168 = vld [vmem:[#allocation35 + $0x10] sm:$0xff]
    %v1169 = vld [vmem:[#allocation35 + $0x18] sm:$0xff]
    %v1170 = vld [vmem:[%s61] sm:$0xff]
    %v1171 = vld [vmem:[%s61 + $0x8] sm:$0xff]
    %v1172 = vld [vmem:[%s61 + $0x10] sm:$0xff]
    %v1173 = vld [vmem:[%s61 + $0x18] sm:$0xff]
    %v1174 = vld [vmem:[#allocation37] sm:$0x1]
    %v1175 = vld [vmem:[#allocation38] sm:$0x1]
    %v1177 = vsel %vm826, %v1137, 0
    %1179 = vmatprep.subr.mxu0 0.0
    %1180 = vmatpush1.msra.mxu0 0.0
    %1181 = vmatprep.subr.mxu0 0.0
    %1182 = vmatpush1.msra.mxu0 0.0
    %1183 = vmatprep.subr.mxu0 0.0
    %1184 = vmatpush1.msra.mxu0 0.0
    %1185 = vmatprep.subr.mxu0 0.0
    %1186 = vmatpush1.msra.mxu0 0.0
    %1187 = vmatprep.subr.mxu0 0.0
    %1188 = vmatpush1.msra.mxu0 0.0
    %1189 = vmatprep.subr.mxu0 0.0
    %1190 = vmatpush1.msra.mxu0 0.0
    %1191 = vmatprep.subr.mxu0 0.0
    %1192 = vmatpush1.msra.mxu0 0.0
    %1193 = vmatprep.subr.mxu0 0.0
    %1194 = vmatpush1.msra.mxu0 0.0
    %1195 = vmatprep.subr.mxu0 0.0
    %1196 = vmatpush1.msra.mxu0 0.0
    %1197 = vmatprep.subr.mxu0 0.0
    %1198 = vmatpush1.msra.mxu0 0.0
    %1199 = vmatprep.subr.mxu0 0.0
    %1200 = vmatpush1.msra.mxu0 0.0
    %1201 = vmatprep.subr.mxu0 0.0
    %1202 = vmatpush1.msra.mxu0 0.0
    %1203 = vmatprep.subr.mxu0 0.0
    %1204 = vmatpush1.msra.mxu0 0.0
    %1205 = vmatprep.subr.mxu0 0.0
    %1206 = vmatpush1.msra.mxu0 0.0
    %1207 = vmatprep.subr.mxu0 0.0
    %1208 = vmatpush1.msra.mxu0 0.0
    %1209 = vmatprep.subr.mxu0 0.0
    %1210 = vmatpush1.msra.mxu0 %v821
    %1211 = vmatprep.subr.mxu0 0.0
    %1212 = vmatpush2.msra.mxu0 0.0
    %1213 = vmatprep.subr.mxu0 0.0
    %1214 = vmatpush2.msra.mxu0 0.0
    %1215 = vmatprep.subr.mxu0 0.0
    %1216 = vmatpush2.msra.mxu0 0.0
    %1217 = vmatprep.subr.mxu0 0.0
    %1218 = vmatpush2.msra.mxu0 0.0
    %1219 = vmatprep.subr.mxu0 0.0
    %1220 = vmatpush2.msra.mxu0 0.0
    %1221 = vmatprep.subr.mxu0 0.0
    %1222 = vmatpush2.msra.mxu0 0.0
    %1223 = vmatprep.subr.mxu0 0.0
    %1224 = vmatpush2.msra.mxu0 0.0
    %1225 = vmatprep.subr.mxu0 0.0
    %1226 = vmatpush2.msra.mxu0 0.0
    %1227 = vmatprep.subr.mxu0 0.0
    %1228 = vmatpush2.msra.mxu0 0.0
    %1229 = vmatprep.subr.mxu0 0.0
    %1230 = vmatpush2.msra.mxu0 0.0
    %1231 = vmatprep.subr.mxu0 0.0
    %1232 = vmatpush2.msra.mxu0 0.0
    %1233 = vmatprep.subr.mxu0 0.0
    %1234 = vmatpush2.msra.mxu0 0.0
    %1235 = vmatprep.subr.mxu0 0.0
    %1236 = vmatpush2.msra.mxu0 0.0
    %1237 = vmatprep.subr.mxu0 0.0
    %1238 = vmatpush2.msra.mxu0 0.0
    %1239 = vmatprep.subr.mxu0 0.0
    %1240 = vmatpush2.msra.mxu0 0.0
    %1241 = vmatprep.subr.mxu0 0.0
    %1242 = vmatpush2.msra.mxu0 0.0
    %1243 = vmatprep.mubr.f32.mxu0 0.0
    %1244 = vmatmul.mubr.f32.gmra.mxu0 %v1177
    %v1245 = vpop.f32.mrf.mxu0
    %v1246 = vadd.f32 0.0, %v1245
    %v1247 = vpop.f32.mrf.mxu0
    %1248 = vdwg.mxu0
    %v1250 = vsel %vm564, %v1246, 0
    %1252 = vmatprep.subr.mxu0 0.0
    %1253 = vmatpush1.msra.mxu0 0.0
    %1254 = vmatprep.subr.mxu0 0.0
    %1255 = vmatpush1.msra.mxu0 0.0
    %1256 = vmatprep.subr.mxu0 0.0
    %1257 = vmatpush1.msra.mxu0 0.0
    %1258 = vmatprep.subr.mxu0 0.0
    %1259 = vmatpush1.msra.mxu0 0.0
    %1260 = vmatprep.subr.mxu0 0.0
    %1261 = vmatpush1.msra.mxu0 0.0
    %1262 = vmatprep.subr.mxu0 0.0
    %1263 = vmatpush1.msra.mxu0 0.0
    %1264 = vmatprep.subr.mxu0 0.0
    %1265 = vmatpush1.msra.mxu0 0.0
    %1266 = vmatprep.subr.mxu0 0.0
    %1267 = vmatpush1.msra.mxu0 0.0
    %1268 = vmatprep.subr.mxu0 0.0
    %1269 = vmatpush1.msra.mxu0 0.0
    %1270 = vmatprep.subr.mxu0 0.0
    %1271 = vmatpush1.msra.mxu0 0.0
    %1272 = vmatprep.subr.mxu0 0.0
    %1273 = vmatpush1.msra.mxu0 0.0
    %1274 = vmatprep.subr.mxu0 0.0
    %1275 = vmatpush1.msra.mxu0 0.0
    %1276 = vmatprep.subr.mxu0 0.0
    %1277 = vmatpush1.msra.mxu0 %v1134
    %1278 = vmatprep.subr.mxu0 0.0
    %1279 = vmatpush1.msra.mxu0 %v1133
    %1280 = vmatprep.subr.mxu0 0.0
    %1281 = vmatpush1.msra.mxu0 %v1132
    %1282 = vmatprep.subr.mxu0 0.0
    %1283 = vmatpush1.msra.mxu0 %v1131
    %1284 = vmatprep.subr.mxu0 0.0
    %1285 = vmatpush2.msra.mxu0 0.0
    %1286 = vmatprep.subr.mxu0 0.0
    %1287 = vmatpush2.msra.mxu0 0.0
    %1288 = vmatprep.subr.mxu0 0.0
    %1289 = vmatpush2.msra.mxu0 0.0
    %1290 = vmatprep.subr.mxu0 0.0
    %1291 = vmatpush2.msra.mxu0 0.0
    %1292 = vmatprep.subr.mxu0 0.0
    %1293 = vmatpush2.msra.mxu0 0.0
    %1294 = vmatprep.subr.mxu0 0.0
    %1295 = vmatpush2.msra.mxu0 0.0
    %1296 = vmatprep.subr.mxu0 0.0
    %1297 = vmatpush2.msra.mxu0 0.0
    %1298 = vmatprep.subr.mxu0 0.0
    %1299 = vmatpush2.msra.mxu0 0.0
    %1300 = vmatprep.subr.mxu0 0.0
    %1301 = vmatpush2.msra.mxu0 0.0
    %1302 = vmatprep.subr.mxu0 0.0
    %1303 = vmatpush2.msra.mxu0 0.0
    %1304 = vmatprep.subr.mxu0 0.0
    %1305 = vmatpush2.msra.mxu0 0.0
    %1306 = vmatprep.subr.mxu0 0.0
    %1307 = vmatpush2.msra.mxu0 0.0
    %1308 = vmatprep.subr.mxu0 0.0
    %1309 = vmatpush2.msra.mxu0 0.0
    %1310 = vmatprep.subr.mxu0 0.0
    %1311 = vmatpush2.msra.mxu0 0.0
    %1312 = vmatprep.subr.mxu0 0.0
    %1313 = vmatpush2.msra.mxu0 0.0
    %1314 = vmatprep.subr.mxu0 0.0
    %1315 = vmatpush2.msra.mxu0 0.0
    %1316 = vmatprep.mubr.f32.mxu0 0.0
    %1317 = vmatmul.mubr.f32.gmra.mxu0 %v1250
    %v1318 = vpop.f32.mrf.mxu0
    %v1319 = vadd.f32 0.0, %v1318
    %v1320 = vpop.f32.mrf.mxu0
    %1321 = vdwg.mxu0
    %v1322 = vmax.f32 %v1319, 0.0
    %v1323 = vadd.f32 %v1322, %v821
    %v1325 = vsel %vm469, %v1135, 0
    %v1328 = vsel %vm469, %v1136, 0
    %1330 = vmatprep.subr.mxu0 0.0
    %1331 = vmatpush1.msra.mxu0 0.0
    %1332 = vmatprep.subr.mxu0 0.0
    %1333 = vmatpush1.msra.mxu0 0.0
    %1334 = vmatprep.subr.mxu0 0.0
    %1335 = vmatpush1.msra.mxu0 0.0
    %1336 = vmatprep.subr.mxu0 0.0
    %1337 = vmatpush1.msra.mxu0 0.0
    %1338 = vmatprep.subr.mxu0 0.0
    %1339 = vmatpush1.msra.mxu0 0.0
    %1340 = vmatprep.subr.mxu0 0.0
    %1341 = vmatpush1.msra.mxu0 0.0
    %1342 = vmatprep.subr.mxu0 0.0
    %1343 = vmatpush1.msra.mxu0 0.0
    %1344 = vmatprep.subr.mxu0 0.0
    %1345 = vmatpush1.msra.mxu0 0.0
    %1346 = vmatprep.subr.mxu0 0.0
    %1347 = vmatpush1.msra.mxu0 0.0
    %1348 = vmatprep.subr.mxu0 0.0
    %1349 = vmatpush1.msra.mxu0 0.0
    %1350 = vmatprep.subr.mxu0 0.0
    %1351 = vmatpush1.msra.mxu0 0.0
    %1352 = vmatprep.subr.mxu0 0.0
    %1353 = vmatpush1.msra.mxu0 0.0
    %1354 = vmatprep.subr.mxu0 0.0
    %1355 = vmatpush1.msra.mxu0 0.0
    %1356 = vmatprep.subr.mxu0 0.0
    %1357 = vmatpush1.msra.mxu0 0.0
    %1358 = vmatprep.subr.mxu0 0.0
    %1359 = vmatpush1.msra.mxu0 %v647
    %1360 = vmatprep.subr.mxu0 0.0
    %1361 = vmatpush1.msra.mxu0 %v646
    %1362 = vmatprep.subr.mxu0 0.0
    %1363 = vmatpush2.msra.mxu0 0.0
    %1364 = vmatprep.subr.mxu0 0.0
    %1365 = vmatpush2.msra.mxu0 0.0
    %1366 = vmatprep.subr.mxu0 0.0
    %1367 = vmatpush2.msra.mxu0 0.0
    %1368 = vmatprep.subr.mxu0 0.0
    %1369 = vmatpush2.msra.mxu0 0.0
    %1370 = vmatprep.subr.mxu0 0.0
    %1371 = vmatpush2.msra.mxu0 0.0
    %1372 = vmatprep.subr.mxu0 0.0
    %1373 = vmatpush2.msra.mxu0 0.0
    %1374 = vmatprep.subr.mxu0 0.0
    %1375 = vmatpush2.msra.mxu0 0.0
    %1376 = vmatprep.subr.mxu0 0.0
    %1377 = vmatpush2.msra.mxu0 0.0
    %1378 = vmatprep.subr.mxu0 0.0
    %1379 = vmatpush2.msra.mxu0 0.0
    %1380 = vmatprep.subr.mxu0 0.0
    %1381 = vmatpush2.msra.mxu0 0.0
    %1382 = vmatprep.subr.mxu0 0.0
    %1383 = vmatpush2.msra.mxu0 0.0
    %1384 = vmatprep.subr.mxu0 0.0
    %1385 = vmatpush2.msra.mxu0 0.0
    %1386 = vmatprep.subr.mxu0 0.0
    %1387 = vmatpush2.msra.mxu0 0.0
    %1388 = vmatprep.subr.mxu0 0.0
    %1389 = vmatpush2.msra.mxu0 0.0
    %1390 = vmatprep.subr.mxu0 0.0
    %1391 = vmatpush2.msra.mxu0 0.0
    %1392 = vmatprep.subr.mxu0 0.0
    %1393 = vmatpush2.msra.mxu0 0.0
    %1394 = vmatprep.mubr.f32.mxu0 0.0
    %1395 = vmatmul.mubr.f32.gmra.mxu0 %v1325
    %v1396 = vpop.f32.mrf.mxu0
    %v1397 = vadd.f32 0.0, %v1396
    %v1398 = vpop.f32.mrf.mxu0
    %1399 = vmatprep.mubr.f32.mxu0 0.0
    %1400 = vmatmul.mubr.f32.gmra.mxu0 %v1328
    %v1401 = vpop.f32.mrf.mxu0
    %v1402 = vadd.f32 0.0, %v1401
    %v1403 = vpop.f32.mrf.mxu0
    %1404 = vdwg.mxu0
    %v1406 = vsel %vm564, %v1397, 0
    %v1409 = vsel %vm564, %v1402, 0
    %1411 = vmatprep.subr.mxu0 0.0
    %1412 = vmatpush1.msra.mxu0 0.0
    %1413 = vmatprep.subr.mxu0 0.0
    %1414 = vmatpush1.msra.mxu0 0.0
    %1415 = vmatprep.subr.mxu0 0.0
    %1416 = vmatpush1.msra.mxu0 0.0
    %1417 = vmatprep.subr.mxu0 0.0
    %1418 = vmatpush1.msra.mxu0 0.0
    %1419 = vmatprep.subr.mxu0 0.0
    %1420 = vmatpush1.msra.mxu0 0.0
    %1421 = vmatprep.subr.mxu0 0.0
    %1422 = vmatpush1.msra.mxu0 0.0
    %1423 = vmatprep.subr.mxu0 0.0
    %1424 = vmatpush1.msra.mxu0 0.0
    %1425 = vmatprep.subr.mxu0 0.0
    %1426 = vmatpush1.msra.mxu0 0.0
    %1427 = vmatprep.subr.mxu0 0.0
    %1428 = vmatpush1.msra.mxu0 0.0
    %1429 = vmatprep.subr.mxu0 0.0
    %1430 = vmatpush1.msra.mxu0 0.0
    %1431 = vmatprep.subr.mxu0 0.0
    %1432 = vmatpush1.msra.mxu0 0.0
    %1433 = vmatprep.subr.mxu0 0.0
    %1434 = vmatpush1.msra.mxu0 0.0
    %1435 = vmatprep.subr.mxu0 0.0
    %1436 = vmatpush1.msra.mxu0 %v981
    %1437 = vmatprep.subr.mxu0 0.0
    %1438 = vmatpush1.msra.mxu0 %v980
    %1439 = vmatprep.subr.mxu0 0.0
    %1440 = vmatpush1.msra.mxu0 %v979
    %1441 = vmatprep.subr.mxu0 0.0
    %1442 = vmatpush1.msra.mxu0 %v978
    %1443 = vmatprep.subr.mxu0 0.0
    %1444 = vmatpush2.msra.mxu0 0.0
    %1445 = vmatprep.subr.mxu0 0.0
    %1446 = vmatpush2.msra.mxu0 0.0
    %1447 = vmatprep.subr.mxu0 0.0
    %1448 = vmatpush2.msra.mxu0 0.0
    %1449 = vmatprep.subr.mxu0 0.0
    %1450 = vmatpush2.msra.mxu0 0.0
    %1451 = vmatprep.subr.mxu0 0.0
    %1452 = vmatpush2.msra.mxu0 0.0
    %1453 = vmatprep.subr.mxu0 0.0
    %1454 = vmatpush2.msra.mxu0 0.0
    %1455 = vmatprep.subr.mxu0 0.0
    %1456 = vmatpush2.msra.mxu0 0.0
    %1457 = vmatprep.subr.mxu0 0.0
    %1458 = vmatpush2.msra.mxu0 0.0
    %1459 = vmatprep.subr.mxu0 0.0
    %1460 = vmatpush2.msra.mxu0 0.0
    %1461 = vmatprep.subr.mxu0 0.0
    %1462 = vmatpush2.msra.mxu0 0.0
    %1463 = vmatprep.subr.mxu0 0.0
    %1464 = vmatpush2.msra.mxu0 0.0
    %1465 = vmatprep.subr.mxu0 0.0
    %1466 = vmatpush2.msra.mxu0 0.0
    %1467 = vmatprep.subr.mxu0 0.0
    %1468 = vmatpush2.msra.mxu0 0.0
    %1469 = vmatprep.subr.mxu0 0.0
    %1470 = vmatpush2.msra.mxu0 0.0
    %1471 = vmatprep.subr.mxu0 0.0
    %1472 = vmatpush2.msra.mxu0 0.0
    %1473 = vmatprep.subr.mxu0 0.0
    %1474 = vmatpush2.msra.mxu0 0.0
    %1475 = vmatprep.mubr.f32.mxu0 0.0
    %1476 = vmatmul.mubr.f32.gmra.mxu0 %v1406
    %v1477 = vpop.f32.mrf.mxu0
    %v1478 = vadd.f32 0.0, %v1477
    %v1479 = vpop.f32.mrf.mxu0
    %1480 = vmatprep.mubr.f32.mxu0 0.0
    %1481 = vmatmul.mubr.f32.gmra.mxu0 %v1409
    %v1482 = vpop.f32.mrf.mxu0
    %v1483 = vadd.f32 0.0, %v1482
    %v1484 = vpop.f32.mrf.mxu0
    %1485 = vdwg.mxu0
    %v1486 = vmax.f32 %v1478, 0.0
    %v1487 = vmax.f32 %v1483, 0.0
    %v1488 = vadd.f32 %v1486, %v646
    %v1489 = vadd.f32 %v1487, %v647
    %v1491 = vsel %vm469, %v1138, 0
    %1493 = vmatprep.subr.mxu0 0.0
    %1494 = vmatpush1.msra.mxu0 0.0
    %1495 = vmatprep.subr.mxu0 0.0
    %1496 = vmatpush1.msra.mxu0 0.0
    %1497 = vmatprep.subr.mxu0 0.0
    %1498 = vmatpush1.msra.mxu0 0.0
    %1499 = vmatprep.subr.mxu0 0.0
    %1500 = vmatpush1.msra.mxu0 0.0
    %1501 = vmatprep.subr.mxu0 0.0
    %1502 = vmatpush1.msra.mxu0 0.0
    %1503 = vmatprep.subr.mxu0 0.0
    %1504 = vmatpush1.msra.mxu0 0.0
    %1505 = vmatprep.subr.mxu0 0.0
    %1506 = vmatpush1.msra.mxu0 0.0
    %1507 = vmatprep.subr.mxu0 0.0
    %1508 = vmatpush1.msra.mxu0 0.0
    %1509 = vmatprep.subr.mxu0 0.0
    %1510 = vmatpush1.msra.mxu0 0.0
    %1511 = vmatprep.subr.mxu0 0.0
    %1512 = vmatpush1.msra.mxu0 0.0
    %1513 = vmatprep.subr.mxu0 0.0
    %1514 = vmatpush1.msra.mxu0 0.0
    %1515 = vmatprep.subr.mxu0 0.0
    %1516 = vmatpush1.msra.mxu0 0.0
    %1517 = vmatprep.subr.mxu0 0.0
    %1518 = vmatpush1.msra.mxu0 0.0
    %1519 = vmatprep.subr.mxu0 0.0
    %1520 = vmatpush1.msra.mxu0 0.0
    %1521 = vmatprep.subr.mxu0 0.0
    %1522 = vmatpush1.msra.mxu0 %v1489
    %1523 = vmatprep.subr.mxu0 0.0
    %1524 = vmatpush1.msra.mxu0 %v1488
    %1525 = vmatprep.subr.mxu0 0.0
    %1526 = vmatpush2.msra.mxu0 0.0
    %1527 = vmatprep.subr.mxu0 0.0
    %1528 = vmatpush2.msra.mxu0 0.0
    %1529 = vmatprep.subr.mxu0 0.0
    %1530 = vmatpush2.msra.mxu0 0.0
    %1531 = vmatprep.subr.mxu0 0.0
    %1532 = vmatpush2.msra.mxu0 0.0
    %1533 = vmatprep.subr.mxu0 0.0
    %1534 = vmatpush2.msra.mxu0 0.0
    %1535 = vmatprep.subr.mxu0 0.0
    %1536 = vmatpush2.msra.mxu0 0.0
    %1537 = vmatprep.subr.mxu0 0.0
    %1538 = vmatpush2.msra.mxu0 0.0
    %1539 = vmatprep.subr.mxu0 0.0
    %1540 = vmatpush2.msra.mxu0 0.0
    %1541 = vmatprep.subr.mxu0 0.0
    %1542 = vmatpush2.msra.mxu0 0.0
    %1543 = vmatprep.subr.mxu0 0.0
    %1544 = vmatpush2.msra.mxu0 0.0
    %1545 = vmatprep.subr.mxu0 0.0
    %1546 = vmatpush2.msra.mxu0 0.0
    %1547 = vmatprep.subr.mxu0 0.0
    %1548 = vmatpush2.msra.mxu0 0.0
    %1549 = vmatprep.subr.mxu0 0.0
    %1550 = vmatpush2.msra.mxu0 0.0
    %1551 = vmatprep.subr.mxu0 0.0
    %1552 = vmatpush2.msra.mxu0 0.0
    %1553 = vmatprep.subr.mxu0 0.0
    %1554 = vmatpush2.msra.mxu0 0.0
    %1555 = vmatprep.subr.mxu0 0.0
    %1556 = vmatpush2.msra.mxu0 0.0
    %1557 = vmatprep.mubr.f32.mxu0 0.0
    %1558 = vmatmul.mubr.f32.gmra.mxu0 %v1491
    %v1559 = vpop.f32.mrf.mxu0
    %v1560 = vadd.f32 0.0, %v1559
    %v1561 = vpop.f32.mrf.mxu0
    %1562 = vdwg.mxu0
    %v1564 = vsel %vm564, %v821, 0
    %1566 = vmatprep.subr.mxu0 0.0
    %1567 = vmatpush1.msra.mxu0 0.0
    %1568 = vmatprep.subr.mxu0 0.0
    %1569 = vmatpush1.msra.mxu0 0.0
    %1570 = vmatprep.subr.mxu0 0.0
    %1571 = vmatpush1.msra.mxu0 0.0
    %1572 = vmatprep.subr.mxu0 0.0
    %1573 = vmatpush1.msra.mxu0 0.0
    %1574 = vmatprep.subr.mxu0 0.0
    %1575 = vmatpush1.msra.mxu0 0.0
    %1576 = vmatprep.subr.mxu0 0.0
    %1577 = vmatpush1.msra.mxu0 0.0
    %1578 = vmatprep.subr.mxu0 0.0
    %1579 = vmatpush1.msra.mxu0 0.0
    %1580 = vmatprep.subr.mxu0 0.0
    %1581 = vmatpush1.msra.mxu0 0.0
    %1582 = vmatprep.subr.mxu0 0.0
    %1583 = vmatpush1.msra.mxu0 0.0
    %1584 = vmatprep.subr.mxu0 0.0
    %1585 = vmatpush1.msra.mxu0 0.0
    %1586 = vmatprep.subr.mxu0 0.0
    %1587 = vmatpush1.msra.mxu0 0.0
    %1588 = vmatprep.subr.mxu0 0.0
    %1589 = vmatpush1.msra.mxu0 0.0
    %1590 = vmatprep.subr.mxu0 0.0
    %1591 = vmatpush1.msra.mxu0 %v1142
    %1592 = vmatprep.subr.mxu0 0.0
    %1593 = vmatpush1.msra.mxu0 %v1141
    %1594 = vmatprep.subr.mxu0 0.0
    %1595 = vmatpush1.msra.mxu0 %v1140
    %1596 = vmatprep.subr.mxu0 0.0
    %1597 = vmatpush1.msra.mxu0 %v1139
    %1598 = vmatprep.subr.mxu0 0.0
    %1599 = vmatpush2.msra.mxu0 0.0
    %1600 = vmatprep.subr.mxu0 0.0
    %1601 = vmatpush2.msra.mxu0 0.0
    %1602 = vmatprep.subr.mxu0 0.0
    %1603 = vmatpush2.msra.mxu0 0.0
    %1604 = vmatprep.subr.mxu0 0.0
    %1605 = vmatpush2.msra.mxu0 0.0
    %1606 = vmatprep.subr.mxu0 0.0
    %1607 = vmatpush2.msra.mxu0 0.0
    %1608 = vmatprep.subr.mxu0 0.0
    %1609 = vmatpush2.msra.mxu0 0.0
    %1610 = vmatprep.subr.mxu0 0.0
    %1611 = vmatpush2.msra.mxu0 0.0
    %1612 = vmatprep.subr.mxu0 0.0
    %1613 = vmatpush2.msra.mxu0 0.0
    %1614 = vmatprep.subr.mxu0 0.0
    %1615 = vmatpush2.msra.mxu0 0.0
    %1616 = vmatprep.subr.mxu0 0.0
    %1617 = vmatpush2.msra.mxu0 0.0
    %1618 = vmatprep.subr.mxu0 0.0
    %1619 = vmatpush2.msra.mxu0 0.0
    %1620 = vmatprep.subr.mxu0 0.0
    %1621 = vmatpush2.msra.mxu0 0.0
    %1622 = vmatprep.subr.mxu0 0.0
    %1623 = vmatpush2.msra.mxu0 0.0
    %1624 = vmatprep.subr.mxu0 0.0
    %1625 = vmatpush2.msra.mxu0 0.0
    %1626 = vmatprep.subr.mxu0 0.0
    %1627 = vmatpush2.msra.mxu0 0.0
    %1628 = vmatprep.subr.mxu0 0.0
    %1629 = vmatpush2.msra.mxu0 0.0
    %1630 = vmatprep.mubr.f32.mxu0 0.0
    %1631 = vmatmul.mubr.f32.gmra.mxu0 %v1564
    %v1632 = vpop.f32.mrf.mxu0
    %v1633 = vadd.f32 0.0, %v1632
    %v1634 = vpop.f32.mrf.mxu0
    %1635 = vdwg.mxu0
    %v1637 = vsel %vm564, %v1560, 0
    %v1640 = vsel %vm564, %v1323, 0
    %1642 = vmatprep.subr.mxu0 0.0
    %1643 = vmatpush1.msra.mxu0 0.0
    %1644 = vmatprep.subr.mxu0 0.0
    %1645 = vmatpush1.msra.mxu0 0.0
    %1646 = vmatprep.subr.mxu0 0.0
    %1647 = vmatpush1.msra.mxu0 0.0
    %1648 = vmatprep.subr.mxu0 0.0
    %1649 = vmatpush1.msra.mxu0 0.0
    %1650 = vmatprep.subr.mxu0 0.0
    %1651 = vmatpush1.msra.mxu0 0.0
    %1652 = vmatprep.subr.mxu0 0.0
    %1653 = vmatpush1.msra.mxu0 0.0
    %1654 = vmatprep.subr.mxu0 0.0
    %1655 = vmatpush1.msra.mxu0 0.0
    %1656 = vmatprep.subr.mxu0 0.0
    %1657 = vmatpush1.msra.mxu0 0.0
    %1658 = vmatprep.subr.mxu0 0.0
    %1659 = vmatpush1.msra.mxu0 0.0
    %1660 = vmatprep.subr.mxu0 0.0
    %1661 = vmatpush1.msra.mxu0 0.0
    %1662 = vmatprep.subr.mxu0 0.0
    %1663 = vmatpush1.msra.mxu0 0.0
    %1664 = vmatprep.subr.mxu0 0.0
    %1665 = vmatpush1.msra.mxu0 0.0
    %1666 = vmatprep.subr.mxu0 0.0
    %1667 = vmatpush1.msra.mxu0 %v1146
    %1668 = vmatprep.subr.mxu0 0.0
    %1669 = vmatpush1.msra.mxu0 %v1145
    %1670 = vmatprep.subr.mxu0 0.0
    %1671 = vmatpush1.msra.mxu0 %v1144
    %1672 = vmatprep.subr.mxu0 0.0
    %1673 = vmatpush1.msra.mxu0 %v1143
    %1674 = vmatprep.subr.mxu0 0.0
    %1675 = vmatpush2.msra.mxu0 0.0
    %1676 = vmatprep.subr.mxu0 0.0
    %1677 = vmatpush2.msra.mxu0 0.0
    %1678 = vmatprep.subr.mxu0 0.0
    %1679 = vmatpush2.msra.mxu0 0.0
    %1680 = vmatprep.subr.mxu0 0.0
    %1681 = vmatpush2.msra.mxu0 0.0
    %1682 = vmatprep.subr.mxu0 0.0
    %1683 = vmatpush2.msra.mxu0 0.0
    %1684 = vmatprep.subr.mxu0 0.0
    %1685 = vmatpush2.msra.mxu0 0.0
    %1686 = vmatprep.subr.mxu0 0.0
    %1687 = vmatpush2.msra.mxu0 0.0
    %1688 = vmatprep.subr.mxu0 0.0
    %1689 = vmatpush2.msra.mxu0 0.0
    %1690 = vmatprep.subr.mxu0 0.0
    %1691 = vmatpush2.msra.mxu0 0.0
    %1692 = vmatprep.subr.mxu0 0.0
    %1693 = vmatpush2.msra.mxu0 0.0
    %1694 = vmatprep.subr.mxu0 0.0
    %1695 = vmatpush2.msra.mxu0 0.0
    %1696 = vmatprep.subr.mxu0 0.0
    %1697 = vmatpush2.msra.mxu0 0.0
    %1698 = vmatprep.subr.mxu0 0.0
    %1699 = vmatpush2.msra.mxu0 0.0
    %1700 = vmatprep.subr.mxu0 0.0
    %1701 = vmatpush2.msra.mxu0 0.0
    %1702 = vmatprep.subr.mxu0 0.0
    %1703 = vmatpush2.msra.mxu0 0.0
    %1704 = vmatprep.subr.mxu0 0.0
    %1705 = vmatpush2.msra.mxu0 0.0
    %1706 = vmatprep.mubr.f32.mxu0 0.0
    %1707 = vmatmul.mubr.f32.gmra.mxu0 %v1637
    %v1708 = vpop.f32.mrf.mxu0
    %v1709 = vadd.f32 0.0, %v1708
    %v1710 = vpop.f32.mrf.mxu0
    %1711 = vmatprep.mubr.f32.mxu0 0.0
    %1712 = vmatmul.mubr.f32.gmra.mxu0 %v1640
    %v1713 = vpop.f32.mrf.mxu0
    %v1714 = vadd.f32 0.0, %v1713
    %v1715 = vpop.f32.mrf.mxu0
    %1716 = vdwg.mxu0
    %v1717 = vmul.f32 %v1633, %v1709
    %v1719 = vsel %vm564, %v1717, 0
    %1721 = vmatprep.subr.mxu0 0.0
    %1722 = vmatpush1.msra.mxu0 0.0
    %1723 = vmatprep.subr.mxu0 0.0
    %1724 = vmatpush1.msra.mxu0 0.0
    %1725 = vmatprep.subr.mxu0 0.0
    %1726 = vmatpush1.msra.mxu0 0.0
    %1727 = vmatprep.subr.mxu0 0.0
    %1728 = vmatpush1.msra.mxu0 0.0
    %1729 = vmatprep.subr.mxu0 0.0
    %1730 = vmatpush1.msra.mxu0 0.0
    %1731 = vmatprep.subr.mxu0 0.0
    %1732 = vmatpush1.msra.mxu0 0.0
    %1733 = vmatprep.subr.mxu0 0.0
    %1734 = vmatpush1.msra.mxu0 0.0
    %1735 = vmatprep.subr.mxu0 0.0
    %1736 = vmatpush1.msra.mxu0 0.0
    %1737 = vmatprep.subr.mxu0 0.0
    %1738 = vmatpush1.msra.mxu0 0.0
    %1739 = vmatprep.subr.mxu0 0.0
    %1740 = vmatpush1.msra.mxu0 0.0
    %1741 = vmatprep.subr.mxu0 0.0
    %1742 = vmatpush1.msra.mxu0 0.0
    %1743 = vmatprep.subr.mxu0 0.0
    %1744 = vmatpush1.msra.mxu0 0.0
    %1745 = vmatprep.subr.mxu0 0.0
    %1746 = vmatpush1.msra.mxu0 %v1155
    %1747 = vmatprep.subr.mxu0 0.0
    %1748 = vmatpush1.msra.mxu0 %v1154
    %1749 = vmatprep.subr.mxu0 0.0
    %1750 = vmatpush1.msra.mxu0 %v1153
    %1751 = vmatprep.subr.mxu0 0.0
    %1752 = vmatpush1.msra.mxu0 %v1152
    %1753 = vmatprep.subr.mxu0 0.0
    %1754 = vmatpush2.msra.mxu0 0.0
    %1755 = vmatprep.subr.mxu0 0.0
    %1756 = vmatpush2.msra.mxu0 0.0
    %1757 = vmatprep.subr.mxu0 0.0
    %1758 = vmatpush2.msra.mxu0 0.0
    %1759 = vmatprep.subr.mxu0 0.0
    %1760 = vmatpush2.msra.mxu0 0.0
    %1761 = vmatprep.subr.mxu0 0.0
    %1762 = vmatpush2.msra.mxu0 0.0
    %1763 = vmatprep.subr.mxu0 0.0
    %1764 = vmatpush2.msra.mxu0 0.0
    %1765 = vmatprep.subr.mxu0 0.0
    %1766 = vmatpush2.msra.mxu0 0.0
    %1767 = vmatprep.subr.mxu0 0.0
    %1768 = vmatpush2.msra.mxu0 0.0
    %1769 = vmatprep.subr.mxu0 0.0
    %1770 = vmatpush2.msra.mxu0 0.0
    %1771 = vmatprep.subr.mxu0 0.0
    %1772 = vmatpush2.msra.mxu0 0.0
    %1773 = vmatprep.subr.mxu0 0.0
    %1774 = vmatpush2.msra.mxu0 0.0
    %1775 = vmatprep.subr.mxu0 0.0
    %1776 = vmatpush2.msra.mxu0 0.0
    %1777 = vmatprep.subr.mxu0 0.0
    %1778 = vmatpush2.msra.mxu0 0.0
    %1779 = vmatprep.subr.mxu0 0.0
    %1780 = vmatpush2.msra.mxu0 0.0
    %1781 = vmatprep.subr.mxu0 0.0
    %1782 = vmatpush2.msra.mxu0 0.0
    %1783 = vmatprep.subr.mxu0 0.0
    %1784 = vmatpush2.msra.mxu0 0.0
    %1785 = vmatprep.mubr.f32.mxu0 0.0
    %1786 = vmatmul.mubr.f32.gmra.mxu0 %v1719
    %v1787 = vpop.f32.mrf.mxu0
    %v1788 = vadd.f32 0.0, %v1787
    %v1789 = vpop.f32.mrf.mxu0
    %1790 = vdwg.mxu0
    %v1791 = vmul.f32 %v1788, 0.125
    %v1792 = vmul.f32 %v1633, %v1714
    %v1794 = vsel %vm564, %v1792, 0
    %1796 = vmatprep.subr.mxu0 0.0
    %1797 = vmatpush1.msra.mxu0 0.0
    %1798 = vmatprep.subr.mxu0 0.0
    %1799 = vmatpush1.msra.mxu0 0.0
    %1800 = vmatprep.subr.mxu0 0.0
    %1801 = vmatpush1.msra.mxu0 0.0
    %1802 = vmatprep.subr.mxu0 0.0
    %1803 = vmatpush1.msra.mxu0 0.0
    %1804 = vmatprep.subr.mxu0 0.0
    %1805 = vmatpush1.msra.mxu0 0.0
    %1806 = vmatprep.subr.mxu0 0.0
    %1807 = vmatpush1.msra.mxu0 0.0
    %1808 = vmatprep.subr.mxu0 0.0
    %1809 = vmatpush1.msra.mxu0 0.0
    %1810 = vmatprep.subr.mxu0 0.0
    %1811 = vmatpush1.msra.mxu0 0.0
    %1812 = vmatprep.subr.mxu0 0.0
    %1813 = vmatpush1.msra.mxu0 0.0
    %1814 = vmatprep.subr.mxu0 0.0
    %1815 = vmatpush1.msra.mxu0 0.0
    %1816 = vmatprep.subr.mxu0 0.0
    %1817 = vmatpush1.msra.mxu0 0.0
    %1818 = vmatprep.subr.mxu0 0.0
    %1819 = vmatpush1.msra.mxu0 0.0
    %1820 = vmatprep.subr.mxu0 0.0
    %1821 = vmatpush1.msra.mxu0 %v1155
    %1822 = vmatprep.subr.mxu0 0.0
    %1823 = vmatpush1.msra.mxu0 %v1154
    %1824 = vmatprep.subr.mxu0 0.0
    %1825 = vmatpush1.msra.mxu0 %v1153
    %1826 = vmatprep.subr.mxu0 0.0
    %1827 = vmatpush1.msra.mxu0 %v1152
    %1828 = vmatprep.subr.mxu0 0.0
    %1829 = vmatpush2.msra.mxu0 0.0
    %1830 = vmatprep.subr.mxu0 0.0
    %1831 = vmatpush2.msra.mxu0 0.0
    %1832 = vmatprep.subr.mxu0 0.0
    %1833 = vmatpush2.msra.mxu0 0.0
    %1834 = vmatprep.subr.mxu0 0.0
    %1835 = vmatpush2.msra.mxu0 0.0
    %1836 = vmatprep.subr.mxu0 0.0
    %1837 = vmatpush2.msra.mxu0 0.0
    %1838 = vmatprep.subr.mxu0 0.0
    %1839 = vmatpush2.msra.mxu0 0.0
    %1840 = vmatprep.subr.mxu0 0.0
    %1841 = vmatpush2.msra.mxu0 0.0
    %1842 = vmatprep.subr.mxu0 0.0
    %1843 = vmatpush2.msra.mxu0 0.0
    %1844 = vmatprep.subr.mxu0 0.0
    %1845 = vmatpush2.msra.mxu0 0.0
    %1846 = vmatprep.subr.mxu0 0.0
    %1847 = vmatpush2.msra.mxu0 0.0
    %1848 = vmatprep.subr.mxu0 0.0
    %1849 = vmatpush2.msra.mxu0 0.0
    %1850 = vmatprep.subr.mxu0 0.0
    %1851 = vmatpush2.msra.mxu0 0.0
    %1852 = vmatprep.subr.mxu0 0.0
    %1853 = vmatpush2.msra.mxu0 0.0
    %1854 = vmatprep.subr.mxu0 0.0
    %1855 = vmatpush2.msra.mxu0 0.0
    %1856 = vmatprep.subr.mxu0 0.0
    %1857 = vmatpush2.msra.mxu0 0.0
    %1858 = vmatprep.subr.mxu0 0.0
    %1859 = vmatpush2.msra.mxu0 0.0
    %1860 = vmatprep.mubr.f32.mxu0 0.0
    %1861 = vmatmul.mubr.f32.gmra.mxu0 %v1794
    %v1862 = vpop.f32.mrf.mxu0
    %v1863 = vadd.f32 0.0, %v1862
    %v1864 = vpop.f32.mrf.mxu0
    %1865 = vdwg.mxu0
    %v1866 = vmul.f32 %v1863, 0.125
    %v1867 = vmax.f32 %v1791, %v1866
    %v1868 = vsub.f32 %v1791, %v1867
    %v1869 = vmul.f32 %v1868, 1.442695
    %v1870 = vpow.pop %v1869
    %v1871 = vsub.f32 %v1866, %v1867
    %v1872 = vmul.f32 %v1871, 1.442695
    %v1873 = vpow.pop %v1872
    %1875 = vrot.lane.b32.xlu0 %v1709, 96
    %v1876 = vpop.permute.xlu0 %1875
    %v1878 = vmul.f32 %v1870, %v1876
    %1880 = vrot.lane.b32.xlu0 %v1714, 96
    %v1881 = vpop.permute.xlu0 %1880
    %v1883 = vmul.f32 %v1873, %v1881
    %v1884 = vadd.f32 %v1878, %v1883
    %v1885 = vadd.f32 %v1870, %v1873
    %v1886 = vrcp.pop %v1885
    %v1887 = vmul.f32 %v1884, %v1886
    %v1889 = vlaneseq
    %v1890 = vshrl.u32 %v1889, 7
    %v1891 = vsub.s32 0, %v1890
    %v1892 = vrot.slane %v1151, %v1891
    %v1895 = vsel %vm564, %v1887, 0
    %1897 = vmatprep.subr.mxu0 0.0
    %1898 = vmatpush1.msra.mxu0 0.0
    %1899 = vmatprep.subr.mxu0 0.0
    %1900 = vmatpush1.msra.mxu0 0.0
    %1901 = vmatprep.subr.mxu0 0.0
    %1902 = vmatpush1.msra.mxu0 0.0
    %1903 = vmatprep.subr.mxu0 0.0
    %1904 = vmatpush1.msra.mxu0 0.0
    %1905 = vmatprep.subr.mxu0 0.0
    %1906 = vmatpush1.msra.mxu0 0.0
    %1907 = vmatprep.subr.mxu0 0.0
    %1908 = vmatpush1.msra.mxu0 0.0
    %1909 = vmatprep.subr.mxu0 0.0
    %1910 = vmatpush1.msra.mxu0 0.0
    %1911 = vmatprep.subr.mxu0 0.0
    %1912 = vmatpush1.msra.mxu0 0.0
    %1913 = vmatprep.subr.mxu0 0.0
    %1914 = vmatpush1.msra.mxu0 0.0
    %1915 = vmatprep.subr.mxu0 0.0
    %1916 = vmatpush1.msra.mxu0 0.0
    %1917 = vmatprep.subr.mxu0 0.0
    %1918 = vmatpush1.msra.mxu0 0.0
    %1919 = vmatprep.subr.mxu0 0.0
    %1920 = vmatpush1.msra.mxu0 0.0
    %1921 = vmatprep.subr.mxu0 0.0
    %1922 = vmatpush1.msra.mxu0 %v1150
    %1923 = vmatprep.subr.mxu0 0.0
    %1924 = vmatpush1.msra.mxu0 %v1149
    %1925 = vmatprep.subr.mxu0 0.0
    %1926 = vmatpush1.msra.mxu0 %v1148
    %1927 = vmatprep.subr.mxu0 0.0
    %1928 = vmatpush1.msra.mxu0 %v1147
    %1929 = vmatprep.subr.mxu0 0.0
    %1930 = vmatpush2.msra.mxu0 0.0
    %1931 = vmatprep.subr.mxu0 0.0
    %1932 = vmatpush2.msra.mxu0 0.0
    %1933 = vmatprep.subr.mxu0 0.0
    %1934 = vmatpush2.msra.mxu0 0.0
    %1935 = vmatprep.subr.mxu0 0.0
    %1936 = vmatpush2.msra.mxu0 0.0
    %1937 = vmatprep.subr.mxu0 0.0
    %1938 = vmatpush2.msra.mxu0 0.0
    %1939 = vmatprep.subr.mxu0 0.0
    %1940 = vmatpush2.msra.mxu0 0.0
    %1941 = vmatprep.subr.mxu0 0.0
    %1942 = vmatpush2.msra.mxu0 0.0
    %1943 = vmatprep.subr.mxu0 0.0
    %1944 = vmatpush2.msra.mxu0 0.0
    %1945 = vmatprep.subr.mxu0 0.0
    %1946 = vmatpush2.msra.mxu0 0.0
    %1947 = vmatprep.subr.mxu0 0.0
    %1948 = vmatpush2.msra.mxu0 0.0
    %1949 = vmatprep.subr.mxu0 0.0
    %1950 = vmatpush2.msra.mxu0 0.0
    %1951 = vmatprep.subr.mxu0 0.0
    %1952 = vmatpush2.msra.mxu0 0.0
    %1953 = vmatprep.subr.mxu0 0.0
    %1954 = vmatpush2.msra.mxu0 0.0
    %1955 = vmatprep.subr.mxu0 0.0
    %1956 = vmatpush2.msra.mxu0 0.0
    %1957 = vmatprep.subr.mxu0 0.0
    %1958 = vmatpush2.msra.mxu0 0.0
    %1959 = vmatprep.subr.mxu0 0.0
    %1960 = vmatpush2.msra.mxu0 0.0
    %1961 = vmatprep.mubr.f32.mxu0 0.0
    %1962 = vmatmul.mubr.f32.gmra.mxu0 %v1895
    %v1963 = vpop.f32.mrf.mxu0
    %v1964 = vadd.f32 %v1892, %v1963
    %v1965 = vpop.f32.mrf.mxu0
    %1966 = vdwg.mxu0
    %v1968 = vlaneseq
    %v1969 = vshrl.u32 %v1968, 7
    %v1970 = vsub.s32 0, %v1969
    %v1971 = vrot.slane %v1164, %v1970
    %v1974 = vsel %vm564, %v1964, 0
    %1976 = vmatprep.subr.mxu0 0.0
    %1977 = vmatpush1.msra.mxu0 0.0
    %1978 = vmatprep.subr.mxu0 0.0
    %1979 = vmatpush1.msra.mxu0 0.0
    %1980 = vmatprep.subr.mxu0 0.0
    %1981 = vmatpush1.msra.mxu0 0.0
    %1982 = vmatprep.subr.mxu0 0.0
    %1983 = vmatpush1.msra.mxu0 0.0
    %1984 = vmatprep.subr.mxu0 0.0
    %1985 = vmatpush1.msra.mxu0 0.0
    %1986 = vmatprep.subr.mxu0 0.0
    %1987 = vmatpush1.msra.mxu0 0.0
    %1988 = vmatprep.subr.mxu0 0.0
    %1989 = vmatpush1.msra.mxu0 0.0
    %1990 = vmatprep.subr.mxu0 0.0
    %1991 = vmatpush1.msra.mxu0 0.0
    %1992 = vmatprep.subr.mxu0 0.0
    %1993 = vmatpush1.msra.mxu0 0.0
    %1994 = vmatprep.subr.mxu0 0.0
    %1995 = vmatpush1.msra.mxu0 0.0
    %1996 = vmatprep.subr.mxu0 0.0
    %1997 = vmatpush1.msra.mxu0 0.0
    %1998 = vmatprep.subr.mxu0 0.0
    %1999 = vmatpush1.msra.mxu0 0.0
    %2000 = vmatprep.subr.mxu0 0.0
    %2001 = vmatpush1.msra.mxu0 %v1159
    %2002 = vmatprep.subr.mxu0 0.0
    %2003 = vmatpush1.msra.mxu0 %v1158
    %2004 = vmatprep.subr.mxu0 0.0
    %2005 = vmatpush1.msra.mxu0 %v1157
    %2006 = vmatprep.subr.mxu0 0.0
    %2007 = vmatpush1.msra.mxu0 %v1156
    %2008 = vmatprep.subr.mxu0 0.0
    %2009 = vmatpush2.msra.mxu0 0.0
    %2010 = vmatprep.subr.mxu0 0.0
    %2011 = vmatpush2.msra.mxu0 0.0
    %2012 = vmatprep.subr.mxu0 0.0
    %2013 = vmatpush2.msra.mxu0 0.0
    %2014 = vmatprep.subr.mxu0 0.0
    %2015 = vmatpush2.msra.mxu0 0.0
    %2016 = vmatprep.subr.mxu0 0.0
    %2017 = vmatpush2.msra.mxu0 0.0
    %2018 = vmatprep.subr.mxu0 0.0
    %2019 = vmatpush2.msra.mxu0 0.0
    %2020 = vmatprep.subr.mxu0 0.0
    %2021 = vmatpush2.msra.mxu0 0.0
    %2022 = vmatprep.subr.mxu0 0.0
    %2023 = vmatpush2.msra.mxu0 0.0
    %2024 = vmatprep.subr.mxu0 0.0
    %2025 = vmatpush2.msra.mxu0 0.0
    %2026 = vmatprep.subr.mxu0 0.0
    %2027 = vmatpush2.msra.mxu0 0.0
    %2028 = vmatprep.subr.mxu0 0.0
    %2029 = vmatpush2.msra.mxu0 0.0
    %2030 = vmatprep.subr.mxu0 0.0
    %2031 = vmatpush2.msra.mxu0 0.0
    %2032 = vmatprep.subr.mxu0 0.0
    %2033 = vmatpush2.msra.mxu0 0.0
    %2034 = vmatprep.subr.mxu0 0.0
    %2035 = vmatpush2.msra.mxu0 0.0
    %2036 = vmatprep.subr.mxu0 0.0
    %2037 = vmatpush2.msra.mxu0 0.0
    %2038 = vmatprep.subr.mxu0 0.0
    %2039 = vmatpush2.msra.mxu0 0.0
    %2040 = vmatprep.mubr.f32.mxu0 0.0
    %2041 = vmatmul.mubr.f32.gmra.mxu0 %v1974
    %v2042 = vpop.f32.mrf.mxu0
    %v2043 = vadd.f32 %v1971, %v2042
    %v2044 = vpop.f32.mrf.mxu0
    %2045 = vdwg.mxu0
    %v2047 = vlaneseq
    %v2048 = vshrl.u32 %v2047, 7
    %v2049 = vsub.s32 0, %v2048
    %v2050 = vrot.slane %v1165, %v2049
    %2052 = vmatprep.subr.mxu0 0.0
    %2053 = vmatpush1.msra.mxu0 0.0
    %2054 = vmatprep.subr.mxu0 0.0
    %2055 = vmatpush1.msra.mxu0 0.0
    %2056 = vmatprep.subr.mxu0 0.0
    %2057 = vmatpush1.msra.mxu0 0.0
    %2058 = vmatprep.subr.mxu0 0.0
    %2059 = vmatpush1.msra.mxu0 0.0
    %2060 = vmatprep.subr.mxu0 0.0
    %2061 = vmatpush1.msra.mxu0 0.0
    %2062 = vmatprep.subr.mxu0 0.0
    %2063 = vmatpush1.msra.mxu0 0.0
    %2064 = vmatprep.subr.mxu0 0.0
    %2065 = vmatpush1.msra.mxu0 0.0
    %2066 = vmatprep.subr.mxu0 0.0
    %2067 = vmatpush1.msra.mxu0 0.0
    %2068 = vmatprep.subr.mxu0 0.0
    %2069 = vmatpush1.msra.mxu0 0.0
    %2070 = vmatprep.subr.mxu0 0.0
    %2071 = vmatpush1.msra.mxu0 0.0
    %2072 = vmatprep.subr.mxu0 0.0
    %2073 = vmatpush1.msra.mxu0 0.0
    %2074 = vmatprep.subr.mxu0 0.0
    %2075 = vmatpush1.msra.mxu0 0.0
    %2076 = vmatprep.subr.mxu0 0.0
    %2077 = vmatpush1.msra.mxu0 %v1163
    %2078 = vmatprep.subr.mxu0 0.0
    %2079 = vmatpush1.msra.mxu0 %v1162
    %2080 = vmatprep.subr.mxu0 0.0
    %2081 = vmatpush1.msra.mxu0 %v1161
    %2082 = vmatprep.subr.mxu0 0.0
    %2083 = vmatpush1.msra.mxu0 %v1160
    %2084 = vmatprep.subr.mxu0 0.0
    %2085 = vmatpush2.msra.mxu0 0.0
    %2086 = vmatprep.subr.mxu0 0.0
    %2087 = vmatpush2.msra.mxu0 0.0
    %2088 = vmatprep.subr.mxu0 0.0
    %2089 = vmatpush2.msra.mxu0 0.0
    %2090 = vmatprep.subr.mxu0 0.0
    %2091 = vmatpush2.msra.mxu0 0.0
    %2092 = vmatprep.subr.mxu0 0.0
    %2093 = vmatpush2.msra.mxu0 0.0
    %2094 = vmatprep.subr.mxu0 0.0
    %2095 = vmatpush2.msra.mxu0 0.0
    %2096 = vmatprep.subr.mxu0 0.0
    %2097 = vmatpush2.msra.mxu0 0.0
    %2098 = vmatprep.subr.mxu0 0.0
    %2099 = vmatpush2.msra.mxu0 0.0
    %2100 = vmatprep.subr.mxu0 0.0
    %2101 = vmatpush2.msra.mxu0 0.0
    %2102 = vmatprep.subr.mxu0 0.0
    %2103 = vmatpush2.msra.mxu0 0.0
    %2104 = vmatprep.subr.mxu0 0.0
    %2105 = vmatpush2.msra.mxu0 0.0
    %2106 = vmatprep.subr.mxu0 0.0
    %2107 = vmatpush2.msra.mxu0 0.0
    %2108 = vmatprep.subr.mxu0 0.0
    %2109 = vmatpush2.msra.mxu0 0.0
    %2110 = vmatprep.subr.mxu0 0.0
    %2111 = vmatpush2.msra.mxu0 0.0
    %2112 = vmatprep.subr.mxu0 0.0
    %2113 = vmatpush2.msra.mxu0 0.0
    %2114 = vmatprep.subr.mxu0 0.0
    %2115 = vmatpush2.msra.mxu0 0.0
    %2116 = vmatprep.mubr.f32.mxu0 0.0
    %2117 = vmatmul.mubr.f32.gmra.mxu0 %v1564
    %v2118 = vpop.f32.mrf.mxu0
    %v2119 = vadd.f32 %v2050, %v2118
    %v2120 = vpop.f32.mrf.mxu0
    %2121 = vdwg.mxu0
    %v2122 = vadd.f32 %v2043, %v2119
    %v2123 = vxor.u32 %v2122, 2147483648
    %v2124 = vmul.f32 %v2123, 1.442695
    %v2125 = vpow.pop %v2124
    %v2126 = vadd.f32 %v2125, 1.0
    %v2127 = vrcp.pop %v2126
    %v2128 = vmul.f32 1.0, %v2127
    %2130 = vrot.lane.b32.xlu0 %v2119, 64
    %v2131 = vpop.permute.xlu0 %2130
    %v2133 = vmul.f32 %v2128, %v2131
    %2135 = vrot.lane.b32.xlu0 %v2133, 64
    %v2136 = vpop.permute.xlu0 %2135
    %v2138 = vadd.f32 %v2043, %v2136
    %v2139 = vtanh.pop %v2138
    %v2140 = vsub.f32 1.0, %v2128
    %2142 = vrot.lane.b32.xlu0 %v2139, 96
    %v2143 = vpop.permute.xlu0 %2142
    %v2145 = vmul.f32 %v2140, %v2143
    %2146 = vrot.lane.b32.xlu0 %v821, 32
    %v2147 = vpop.permute.xlu0 %2146
    %v2149 = vmul.f32 %v2128, %v2147
    %v2150 = vadd.f32 %v2145, %v2149
    %v2152 = vlaneseq
    %v2153 = vshrl.u32 %v2152, 7
    %v2154 = vsub.s32 0, %v2153
    %v2155 = vrot.slane %v1174, %v2154
    %v2158 = vsel %vm564, %v1488, 0
    %v2161 = vsel %vm564, %v1489, 0
    %2163 = vmatprep.subr.mxu0 0.0
    %2164 = vmatpush1.msra.mxu0 0.0
    %2165 = vmatprep.subr.mxu0 0.0
    %2166 = vmatpush1.msra.mxu0 0.0
    %2167 = vmatprep.subr.mxu0 0.0
    %2168 = vmatpush1.msra.mxu0 0.0
    %2169 = vmatprep.subr.mxu0 0.0
    %2170 = vmatpush1.msra.mxu0 0.0
    %2171 = vmatprep.subr.mxu0 0.0
    %2172 = vmatpush1.msra.mxu0 0.0
    %2173 = vmatprep.subr.mxu0 0.0
    %2174 = vmatpush1.msra.mxu0 0.0
    %2175 = vmatprep.subr.mxu0 0.0
    %2176 = vmatpush1.msra.mxu0 0.0
    %2177 = vmatprep.subr.mxu0 0.0
    %2178 = vmatpush1.msra.mxu0 0.0
    %2179 = vmatprep.subr.mxu0 0.0
    %2180 = vmatpush1.msra.mxu0 0.0
    %2181 = vmatprep.subr.mxu0 0.0
    %2182 = vmatpush1.msra.mxu0 0.0
    %2183 = vmatprep.subr.mxu0 0.0
    %2184 = vmatpush1.msra.mxu0 0.0
    %2185 = vmatprep.subr.mxu0 0.0
    %2186 = vmatpush1.msra.mxu0 0.0
    %2187 = vmatprep.subr.mxu0 0.0
    %2188 = vmatpush1.msra.mxu0 %v1169
    %2189 = vmatprep.subr.mxu0 0.0
    %2190 = vmatpush1.msra.mxu0 %v1168
    %2191 = vmatprep.subr.mxu0 0.0
    %2192 = vmatpush1.msra.mxu0 %v1167
    %2193 = vmatprep.subr.mxu0 0.0
    %2194 = vmatpush1.msra.mxu0 %v1166
    %2195 = vmatprep.subr.mxu0 0.0
    %2196 = vmatpush2.msra.mxu0 0.0
    %2197 = vmatprep.subr.mxu0 0.0
    %2198 = vmatpush2.msra.mxu0 0.0
    %2199 = vmatprep.subr.mxu0 0.0
    %2200 = vmatpush2.msra.mxu0 0.0
    %2201 = vmatprep.subr.mxu0 0.0
    %2202 = vmatpush2.msra.mxu0 0.0
    %2203 = vmatprep.subr.mxu0 0.0
    %2204 = vmatpush2.msra.mxu0 0.0
    %2205 = vmatprep.subr.mxu0 0.0
    %2206 = vmatpush2.msra.mxu0 0.0
    %2207 = vmatprep.subr.mxu0 0.0
    %2208 = vmatpush2.msra.mxu0 0.0
    %2209 = vmatprep.subr.mxu0 0.0
    %2210 = vmatpush2.msra.mxu0 0.0
    %2211 = vmatprep.subr.mxu0 0.0
    %2212 = vmatpush2.msra.mxu0 0.0
    %2213 = vmatprep.subr.mxu0 0.0
    %2214 = vmatpush2.msra.mxu0 0.0
    %2215 = vmatprep.subr.mxu0 0.0
    %2216 = vmatpush2.msra.mxu0 0.0
    %2217 = vmatprep.subr.mxu0 0.0
    %2218 = vmatpush2.msra.mxu0 0.0
    %2219 = vmatprep.subr.mxu0 0.0
    %2220 = vmatpush2.msra.mxu0 0.0
    %2221 = vmatprep.subr.mxu0 0.0
    %2222 = vmatpush2.msra.mxu0 0.0
    %2223 = vmatprep.subr.mxu0 0.0
    %2224 = vmatpush2.msra.mxu0 0.0
    %2225 = vmatprep.subr.mxu0 0.0
    %2226 = vmatpush2.msra.mxu0 0.0
    %2227 = vmatprep.mubr.f32.mxu0 0.0
    %2228 = vmatmul.mubr.f32.gmra.mxu0 %v2158
    %v2229 = vpop.f32.mrf.mxu0
    %v2230 = vadd.f32 %v2155, %v2229
    %v2231 = vpop.f32.mrf.mxu0
    %2232 = vmatprep.mubr.f32.mxu0 0.0
    %2233 = vmatmul.mubr.f32.gmra.mxu0 %v2161
    %v2234 = vpop.f32.mrf.mxu0
    %v2235 = vadd.f32 %v2155, %v2234
    %v2236 = vpop.f32.mrf.mxu0
    %2237 = vdwg.mxu0
    %v2239 = vlaneseq
    %v2240 = vshrl.u32 %v2239, 7
    %v2241 = vsub.s32 0, %v2240
    %v2242 = vrot.slane %v1175, %v2241
    %v2245 = vsel %vm564, %v646, 0
    %v2248 = vsel %vm564, %v647, 0
    %2250 = vmatprep.subr.mxu0 0.0
    %2251 = vmatpush1.msra.mxu0 0.0
    %2252 = vmatprep.subr.mxu0 0.0
    %2253 = vmatpush1.msra.mxu0 0.0
    %2254 = vmatprep.subr.mxu0 0.0
    %2255 = vmatpush1.msra.mxu0 0.0
    %2256 = vmatprep.subr.mxu0 0.0
    %2257 = vmatpush1.msra.mxu0 0.0
    %2258 = vmatprep.subr.mxu0 0.0
    %2259 = vmatpush1.msra.mxu0 0.0
    %2260 = vmatprep.subr.mxu0 0.0
    %2261 = vmatpush1.msra.mxu0 0.0
    %2262 = vmatprep.subr.mxu0 0.0
    %2263 = vmatpush1.msra.mxu0 0.0
    %2264 = vmatprep.subr.mxu0 0.0
    %2265 = vmatpush1.msra.mxu0 0.0
    %2266 = vmatprep.subr.mxu0 0.0
    %2267 = vmatpush1.msra.mxu0 0.0
    %2268 = vmatprep.subr.mxu0 0.0
    %2269 = vmatpush1.msra.mxu0 0.0
    %2270 = vmatprep.subr.mxu0 0.0
    %2271 = vmatpush1.msra.mxu0 0.0
    %2272 = vmatprep.subr.mxu0 0.0
    %2273 = vmatpush1.msra.mxu0 0.0
    %2274 = vmatprep.subr.mxu0 0.0
    %2275 = vmatpush1.msra.mxu0 %v1173
    %2276 = vmatprep.subr.mxu0 0.0
    %2277 = vmatpush1.msra.mxu0 %v1172
    %2278 = vmatprep.subr.mxu0 0.0
    %2279 = vmatpush1.msra.mxu0 %v1171
    %2280 = vmatprep.subr.mxu0 0.0
    %2281 = vmatpush1.msra.mxu0 %v1170
    %2282 = vmatprep.subr.mxu0 0.0
    %2283 = vmatpush2.msra.mxu0 0.0
    %2284 = vmatprep.subr.mxu0 0.0
    %2285 = vmatpush2.msra.mxu0 0.0
    %2286 = vmatprep.subr.mxu0 0.0
    %2287 = vmatpush2.msra.mxu0 0.0
    %2288 = vmatprep.subr.mxu0 0.0
    %2289 = vmatpush2.msra.mxu0 0.0
    %2290 = vmatprep.subr.mxu0 0.0
    %2291 = vmatpush2.msra.mxu0 0.0
    %2292 = vmatprep.subr.mxu0 0.0
    %2293 = vmatpush2.msra.mxu0 0.0
    %2294 = vmatprep.subr.mxu0 0.0
    %2295 = vmatpush2.msra.mxu0 0.0
    %2296 = vmatprep.subr.mxu0 0.0
    %2297 = vmatpush2.msra.mxu0 0.0
    %2298 = vmatprep.subr.mxu0 0.0
    %2299 = vmatpush2.msra.mxu0 0.0
    %2300 = vmatprep.subr.mxu0 0.0
    %2301 = vmatpush2.msra.mxu0 0.0
    %2302 = vmatprep.subr.mxu0 0.0
    %2303 = vmatpush2.msra.mxu0 0.0
    %2304 = vmatprep.subr.mxu0 0.0
    %2305 = vmatpush2.msra.mxu0 0.0
    %2306 = vmatprep.subr.mxu0 0.0
    %2307 = vmatpush2.msra.mxu0 0.0
    %2308 = vmatprep.subr.mxu0 0.0
    %2309 = vmatpush2.msra.mxu0 0.0
    %2310 = vmatprep.subr.mxu0 0.0
    %2311 = vmatpush2.msra.mxu0 0.0
    %2312 = vmatprep.subr.mxu0 0.0
    %2313 = vmatpush2.msra.mxu0 0.0
    %2314 = vmatprep.mubr.f32.mxu0 0.0
    %2315 = vmatmul.mubr.f32.gmra.mxu0 %v2245
    %v2316 = vpop.f32.mrf.mxu0
    %v2317 = vadd.f32 %v2242, %v2316
    %v2318 = vpop.f32.mrf.mxu0
    %2319 = vmatprep.mubr.f32.mxu0 0.0
    %2320 = vmatmul.mubr.f32.gmra.mxu0 %v2248
    %v2321 = vpop.f32.mrf.mxu0
    %v2322 = vadd.f32 %v2242, %v2321
    %v2323 = vpop.f32.mrf.mxu0
    %2324 = vdwg.mxu0
    %v2325 = vadd.f32 %v2230, %v2317
    %v2326 = vadd.f32 %v2235, %v2322
    %v2327 = vxor.u32 %v2325, 2147483648
    %v2328 = vxor.u32 %v2326, 2147483648
    %v2329 = vmul.f32 %v2327, 1.442695
    %v2330 = vpow.pop %v2329
    %v2331 = vmul.f32 %v2328, 1.442695
    %v2332 = vpow.pop %v2331
    %v2333 = vadd.f32 %v2330, 1.0
    %v2334 = vadd.f32 %v2332, 1.0
    %v2335 = vrcp.pop %v2333
    %v2336 = vmul.f32 1.0, %v2335
    %v2337 = vrcp.pop %v2334
    %v2338 = vmul.f32 1.0, %v2337
    %2341 = vrot.lane.b32.xlu0 %v2317, 64
    %v2342 = vpop.permute.xlu0 %2341
    %2343 = vrot.lane.b32.xlu0 %v2322, 64
    %v2344 = vpop.permute.xlu0 %2343
    %v2347 = vmul.f32 %v2336, %v2342
    %v2348 = vmul.f32 %v2338, %v2344
    %2351 = vrot.lane.b32.xlu0 %v2347, 64
    %v2352 = vpop.permute.xlu0 %2351
    %2353 = vrot.lane.b32.xlu0 %v2348, 64
    %v2354 = vpop.permute.xlu0 %2353
    %v2357 = vadd.f32 %v2230, %v2352
    %v2358 = vadd.f32 %v2235, %v2354
    %v2359 = vtanh.pop %v2357
    %v2360 = vtanh.pop %v2358
    %v2361 = vsub.f32 1.0, %v2336
    %v2362 = vsub.f32 1.0, %v2338
    %2365 = vrot.lane.b32.xlu0 %v2359, 96
    %v2366 = vpop.permute.xlu0 %2365
    %2367 = vrot.lane.b32.xlu0 %v2360, 96
    %v2368 = vpop.permute.xlu0 %2367
    %v2371 = vmul.f32 %v2361, %v2366
    %v2372 = vmul.f32 %v2362, %v2368
    %2373 = vrot.lane.b32.xlu0 %v646, 32
    %v2374 = vpop.permute.xlu0 %2373
    %2375 = vrot.lane.b32.xlu0 %v647, 32
    %v2376 = vpop.permute.xlu0 %2375
    %v2379 = vmul.f32 %v2336, %v2374
    %v2380 = vmul.f32 %v2338, %v2376
    %v2381 = vadd.f32 %v2371, %v2379
    %v2382 = vadd.f32 %v2372, %v2380
    %2384 = vrot.lane.b32.xlu0 %v2150, 96
    %v2385 = vpop.permute.xlu0 %2384
    %2387 = vmatprep.subr.mxu0 0.0
    %2388 = vmatpush1.msra.mxu0 0.0
    %2389 = vmatprep.subr.mxu0 0.0
    %2390 = vmatpush1.msra.mxu0 0.0
    %2391 = vmatprep.subr.mxu0 0.0
    %2392 = vmatpush1.msra.mxu0 0.0
    %2393 = vmatprep.subr.mxu0 0.0
    %2394 = vmatpush1.msra.mxu0 0.0
    %2395 = vmatprep.subr.mxu0 0.0
    %2396 = vmatpush1.msra.mxu0 0.0
    %2397 = vmatprep.subr.mxu0 0.0
    %2398 = vmatpush1.msra.mxu0 0.0
    %2399 = vmatprep.subr.mxu0 0.0
    %2400 = vmatpush1.msra.mxu0 0.0
    %2401 = vmatprep.subr.mxu0 0.0
    %2402 = vmatpush1.msra.mxu0 0.0
    %2403 = vmatprep.subr.mxu0 0.0
    %2404 = vmatpush1.msra.mxu0 0.0
    %2405 = vmatprep.subr.mxu0 0.0
    %2406 = vmatpush1.msra.mxu0 0.0
    %2407 = vmatprep.subr.mxu0 0.0
    %2408 = vmatpush1.msra.mxu0 0.0
    %2409 = vmatprep.subr.mxu0 0.0
    %2410 = vmatpush1.msra.mxu0 0.0
    %2411 = vmatprep.subr.mxu0 0.0
    %2412 = vmatpush1.msra.mxu0 0.0
    %2413 = vmatprep.subr.mxu0 0.0
    %2414 = vmatpush1.msra.mxu0 0.0
    %2415 = vmatprep.subr.mxu0 0.0
    %2416 = vmatpush1.msra.mxu0 0.0
    %2417 = vmatprep.subr.mxu0 0.0
    %2418 = vmatpush1.msra.mxu0 %v2385
    %2419 = vmatprep.subr.mxu0 0.0
    %2420 = vmatpush2.msra.mxu0 0.0
    %2421 = vmatprep.subr.mxu0 0.0
    %2422 = vmatpush2.msra.mxu0 0.0
    %2423 = vmatprep.subr.mxu0 0.0
    %2424 = vmatpush2.msra.mxu0 0.0
    %2425 = vmatprep.subr.mxu0 0.0
    %2426 = vmatpush2.msra.mxu0 0.0
    %2427 = vmatprep.subr.mxu0 0.0
    %2428 = vmatpush2.msra.mxu0 0.0
    %2429 = vmatprep.subr.mxu0 0.0
    %2430 = vmatpush2.msra.mxu0 0.0
    %2431 = vmatprep.subr.mxu0 0.0
    %2432 = vmatpush2.msra.mxu0 0.0
    %2433 = vmatprep.subr.mxu0 0.0
    %2434 = vmatpush2.msra.mxu0 0.0
    %2435 = vmatprep.subr.mxu0 0.0
    %2436 = vmatpush2.msra.mxu0 0.0
    %2437 = vmatprep.subr.mxu0 0.0
    %2438 = vmatpush2.msra.mxu0 0.0
    %2439 = vmatprep.subr.mxu0 0.0
    %2440 = vmatpush2.msra.mxu0 0.0
    %2441 = vmatprep.subr.mxu0 0.0
    %2442 = vmatpush2.msra.mxu0 0.0
    %2443 = vmatprep.subr.mxu0 0.0
    %2444 = vmatpush2.msra.mxu0 0.0
    %2445 = vmatprep.subr.mxu0 0.0
    %2446 = vmatpush2.msra.mxu0 0.0
    %2447 = vmatprep.subr.mxu0 0.0
    %2448 = vmatpush2.msra.mxu0 0.0
    %2449 = vmatprep.subr.mxu0 0.0
    %2450 = vmatpush2.msra.mxu0 0.0
    %2451 = vmatprep.mubr.f32.mxu0 0.0
    %2452 = vmatmul.mubr.f32.gmra.mxu0 %v1177
    %v2453 = vpop.f32.mrf.mxu0
    %v2454 = vadd.f32 0.0, %v2453
    %v2455 = vpop.f32.mrf.mxu0
    %2456 = vdwg.mxu0
    %v2458 = vsel %vm564, %v2454, 0
    %2460 = vmatprep.subr.mxu0 0.0
    %2461 = vmatpush1.msra.mxu0 0.0
    %2462 = vmatprep.subr.mxu0 0.0
    %2463 = vmatpush1.msra.mxu0 0.0
    %2464 = vmatprep.subr.mxu0 0.0
    %2465 = vmatpush1.msra.mxu0 0.0
    %2466 = vmatprep.subr.mxu0 0.0
    %2467 = vmatpush1.msra.mxu0 0.0
    %2468 = vmatprep.subr.mxu0 0.0
    %2469 = vmatpush1.msra.mxu0 0.0
    %2470 = vmatprep.subr.mxu0 0.0
    %2471 = vmatpush1.msra.mxu0 0.0
    %2472 = vmatprep.subr.mxu0 0.0
    %2473 = vmatpush1.msra.mxu0 0.0
    %2474 = vmatprep.subr.mxu0 0.0
    %2475 = vmatpush1.msra.mxu0 0.0
    %2476 = vmatprep.subr.mxu0 0.0
    %2477 = vmatpush1.msra.mxu0 0.0
    %2478 = vmatprep.subr.mxu0 0.0
    %2479 = vmatpush1.msra.mxu0 0.0
    %2480 = vmatprep.subr.mxu0 0.0
    %2481 = vmatpush1.msra.mxu0 0.0
    %2482 = vmatprep.subr.mxu0 0.0
    %2483 = vmatpush1.msra.mxu0 0.0
    %2484 = vmatprep.subr.mxu0 0.0
    %2485 = vmatpush1.msra.mxu0 %v1134
    %2486 = vmatprep.subr.mxu0 0.0
    %2487 = vmatpush1.msra.mxu0 %v1133
    %2488 = vmatprep.subr.mxu0 0.0
    %2489 = vmatpush1.msra.mxu0 %v1132
    %2490 = vmatprep.subr.mxu0 0.0
    %2491 = vmatpush1.msra.mxu0 %v1131
    %2492 = vmatprep.subr.mxu0 0.0
    %2493 = vmatpush2.msra.mxu0 0.0
    %2494 = vmatprep.subr.mxu0 0.0
    %2495 = vmatpush2.msra.mxu0 0.0
    %2496 = vmatprep.subr.mxu0 0.0
    %2497 = vmatpush2.msra.mxu0 0.0
    %2498 = vmatprep.subr.mxu0 0.0
    %2499 = vmatpush2.msra.mxu0 0.0
    %2500 = vmatprep.subr.mxu0 0.0
    %2501 = vmatpush2.msra.mxu0 0.0
    %2502 = vmatprep.subr.mxu0 0.0
    %2503 = vmatpush2.msra.mxu0 0.0
    %2504 = vmatprep.subr.mxu0 0.0
    %2505 = vmatpush2.msra.mxu0 0.0
    %2506 = vmatprep.subr.mxu0 0.0
    %2507 = vmatpush2.msra.mxu0 0.0
    %2508 = vmatprep.subr.mxu0 0.0
    %2509 = vmatpush2.msra.mxu0 0.0
    %2510 = vmatprep.subr.mxu0 0.0
    %2511 = vmatpush2.msra.mxu0 0.0
    %2512 = vmatprep.subr.mxu0 0.0
    %2513 = vmatpush2.msra.mxu0 0.0
    %2514 = vmatprep.subr.mxu0 0.0
    %2515 = vmatpush2.msra.mxu0 0.0
    %2516 = vmatprep.subr.mxu0 0.0
    %2517 = vmatpush2.msra.mxu0 0.0
    %2518 = vmatprep.subr.mxu0 0.0
    %2519 = vmatpush2.msra.mxu0 0.0
    %2520 = vmatprep.subr.mxu0 0.0
    %2521 = vmatpush2.msra.mxu0 0.0
    %2522 = vmatprep.subr.mxu0 0.0
    %2523 = vmatpush2.msra.mxu0 0.0
    %2524 = vmatprep.mubr.f32.mxu0 0.0
    %2525 = vmatmul.mubr.f32.gmra.mxu0 %v2458
    %v2526 = vpop.f32.mrf.mxu0
    %v2527 = vadd.f32 0.0, %v2526
    %v2528 = vpop.f32.mrf.mxu0
    %2529 = vdwg.mxu0
    %v2530 = vmax.f32 %v2527, 0.0
    %v2531 = vadd.f32 %v2530, %v2385
    %2534 = vrot.lane.b32.xlu0 %v2381, 96
    %v2535 = vpop.permute.xlu0 %2534
    %2536 = vrot.lane.b32.xlu0 %v2382, 96
    %v2537 = vpop.permute.xlu0 %2536
    %2540 = vmatprep.subr.mxu0 0.0
    %2541 = vmatpush1.msra.mxu0 0.0
    %2542 = vmatprep.subr.mxu0 0.0
    %2543 = vmatpush1.msra.mxu0 0.0
    %2544 = vmatprep.subr.mxu0 0.0
    %2545 = vmatpush1.msra.mxu0 0.0
    %2546 = vmatprep.subr.mxu0 0.0
    %2547 = vmatpush1.msra.mxu0 0.0
    %2548 = vmatprep.subr.mxu0 0.0
    %2549 = vmatpush1.msra.mxu0 0.0
    %2550 = vmatprep.subr.mxu0 0.0
    %2551 = vmatpush1.msra.mxu0 0.0
    %2552 = vmatprep.subr.mxu0 0.0
    %2553 = vmatpush1.msra.mxu0 0.0
    %2554 = vmatprep.subr.mxu0 0.0
    %2555 = vmatpush1.msra.mxu0 0.0
    %2556 = vmatprep.subr.mxu0 0.0
    %2557 = vmatpush1.msra.mxu0 0.0
    %2558 = vmatprep.subr.mxu0 0.0
    %2559 = vmatpush1.msra.mxu0 0.0
    %2560 = vmatprep.subr.mxu0 0.0
    %2561 = vmatpush1.msra.mxu0 0.0
    %2562 = vmatprep.subr.mxu0 0.0
    %2563 = vmatpush1.msra.mxu0 0.0
    %2564 = vmatprep.subr.mxu0 0.0
    %2565 = vmatpush1.msra.mxu0 0.0
    %2566 = vmatprep.subr.mxu0 0.0
    %2567 = vmatpush1.msra.mxu0 0.0
    %2568 = vmatprep.subr.mxu0 0.0
    %2569 = vmatpush1.msra.mxu0 %v2537
    %2570 = vmatprep.subr.mxu0 0.0
    %2571 = vmatpush1.msra.mxu0 %v2535
    %2572 = vmatprep.subr.mxu0 0.0
    %2573 = vmatpush2.msra.mxu0 0.0
    %2574 = vmatprep.subr.mxu0 0.0
    %2575 = vmatpush2.msra.mxu0 0.0
    %2576 = vmatprep.subr.mxu0 0.0
    %2577 = vmatpush2.msra.mxu0 0.0
    %2578 = vmatprep.subr.mxu0 0.0
    %2579 = vmatpush2.msra.mxu0 0.0
    %2580 = vmatprep.subr.mxu0 0.0
    %2581 = vmatpush2.msra.mxu0 0.0
    %2582 = vmatprep.subr.mxu0 0.0
    %2583 = vmatpush2.msra.mxu0 0.0
    %2584 = vmatprep.subr.mxu0 0.0
    %2585 = vmatpush2.msra.mxu0 0.0
    %2586 = vmatprep.subr.mxu0 0.0
    %2587 = vmatpush2.msra.mxu0 0.0
    %2588 = vmatprep.subr.mxu0 0.0
    %2589 = vmatpush2.msra.mxu0 0.0
    %2590 = vmatprep.subr.mxu0 0.0
    %2591 = vmatpush2.msra.mxu0 0.0
    %2592 = vmatprep.subr.mxu0 0.0
    %2593 = vmatpush2.msra.mxu0 0.0
    %2594 = vmatprep.subr.mxu0 0.0
    %2595 = vmatpush2.msra.mxu0 0.0
    %2596 = vmatprep.subr.mxu0 0.0
    %2597 = vmatpush2.msra.mxu0 0.0
    %2598 = vmatprep.subr.mxu0 0.0
    %2599 = vmatpush2.msra.mxu0 0.0
    %2600 = vmatprep.subr.mxu0 0.0
    %2601 = vmatpush2.msra.mxu0 0.0
    %2602 = vmatprep.subr.mxu0 0.0
    %2603 = vmatpush2.msra.mxu0 0.0
    %2604 = vmatprep.mubr.f32.mxu0 0.0
    %2605 = vmatmul.mubr.f32.gmra.mxu0 %v1325
    %v2606 = vpop.f32.mrf.mxu0
    %v2607 = vadd.f32 0.0, %v2606
    %v2608 = vpop.f32.mrf.mxu0
    %2609 = vmatprep.mubr.f32.mxu0 0.0
    %2610 = vmatmul.mubr.f32.gmra.mxu0 %v1328
    %v2611 = vpop.f32.mrf.mxu0
    %v2612 = vadd.f32 0.0, %v2611
    %v2613 = vpop.f32.mrf.mxu0
    %2614 = vdwg.mxu0
    %v2616 = vsel %vm564, %v2607, 0
    %v2619 = vsel %vm564, %v2612, 0
    %2621 = vmatprep.subr.mxu0 0.0
    %2622 = vmatpush1.msra.mxu0 0.0
    %2623 = vmatprep.subr.mxu0 0.0
    %2624 = vmatpush1.msra.mxu0 0.0
    %2625 = vmatprep.subr.mxu0 0.0
    %2626 = vmatpush1.msra.mxu0 0.0
    %2627 = vmatprep.subr.mxu0 0.0
    %2628 = vmatpush1.msra.mxu0 0.0
    %2629 = vmatprep.subr.mxu0 0.0
    %2630 = vmatpush1.msra.mxu0 0.0
    %2631 = vmatprep.subr.mxu0 0.0
    %2632 = vmatpush1.msra.mxu0 0.0
    %2633 = vmatprep.subr.mxu0 0.0
    %2634 = vmatpush1.msra.mxu0 0.0
    %2635 = vmatprep.subr.mxu0 0.0
    %2636 = vmatpush1.msra.mxu0 0.0
    %2637 = vmatprep.subr.mxu0 0.0
    %2638 = vmatpush1.msra.mxu0 0.0
    %2639 = vmatprep.subr.mxu0 0.0
    %2640 = vmatpush1.msra.mxu0 0.0
    %2641 = vmatprep.subr.mxu0 0.0
    %2642 = vmatpush1.msra.mxu0 0.0
    %2643 = vmatprep.subr.mxu0 0.0
    %2644 = vmatpush1.msra.mxu0 0.0
    %2645 = vmatprep.subr.mxu0 0.0
    %2646 = vmatpush1.msra.mxu0 %v981
    %2647 = vmatprep.subr.mxu0 0.0
    %2648 = vmatpush1.msra.mxu0 %v980
    %2649 = vmatprep.subr.mxu0 0.0
    %2650 = vmatpush1.msra.mxu0 %v979
    %2651 = vmatprep.subr.mxu0 0.0
    %2652 = vmatpush1.msra.mxu0 %v978
    %2653 = vmatprep.subr.mxu0 0.0
    %2654 = vmatpush2.msra.mxu0 0.0
    %2655 = vmatprep.subr.mxu0 0.0
    %2656 = vmatpush2.msra.mxu0 0.0
    %2657 = vmatprep.subr.mxu0 0.0
    %2658 = vmatpush2.msra.mxu0 0.0
    %2659 = vmatprep.subr.mxu0 0.0
    %2660 = vmatpush2.msra.mxu0 0.0
    %2661 = vmatprep.subr.mxu0 0.0
    %2662 = vmatpush2.msra.mxu0 0.0
    %2663 = vmatprep.subr.mxu0 0.0
    %2664 = vmatpush2.msra.mxu0 0.0
    %2665 = vmatprep.subr.mxu0 0.0
    %2666 = vmatpush2.msra.mxu0 0.0
    %2667 = vmatprep.subr.mxu0 0.0
    %2668 = vmatpush2.msra.mxu0 0.0
    %2669 = vmatprep.subr.mxu0 0.0
    %2670 = vmatpush2.msra.mxu0 0.0
    %2671 = vmatprep.subr.mxu0 0.0
    %2672 = vmatpush2.msra.mxu0 0.0
    %2673 = vmatprep.subr.mxu0 0.0
    %2674 = vmatpush2.msra.mxu0 0.0
    %2675 = vmatprep.subr.mxu0 0.0
    %2676 = vmatpush2.msra.mxu0 0.0
    %2677 = vmatprep.subr.mxu0 0.0
    %2678 = vmatpush2.msra.mxu0 0.0
    %2679 = vmatprep.subr.mxu0 0.0
    %2680 = vmatpush2.msra.mxu0 0.0
    %2681 = vmatprep.subr.mxu0 0.0
    %2682 = vmatpush2.msra.mxu0 0.0
    %2683 = vmatprep.subr.mxu0 0.0
    %2684 = vmatpush2.msra.mxu0 0.0
    %2685 = vmatprep.mubr.f32.mxu0 0.0
    %2686 = vmatmul.mubr.f32.gmra.mxu0 %v2616
    %v2687 = vpop.f32.mrf.mxu0
    %v2688 = vadd.f32 0.0, %v2687
    %v2689 = vpop.f32.mrf.mxu0
    %2690 = vmatprep.mubr.f32.mxu0 0.0
    %2691 = vmatmul.mubr.f32.gmra.mxu0 %v2619
    %v2692 = vpop.f32.mrf.mxu0
    %v2693 = vadd.f32 0.0, %v2692
    %v2694 = vpop.f32.mrf.mxu0
    %2695 = vdwg.mxu0
    %v2696 = vmax.f32 %v2688, 0.0
    %v2697 = vmax.f32 %v2693, 0.0
    %v2698 = vadd.f32 %v2696, %v2535
    %v2699 = vadd.f32 %v2697, %v2537
    %2700 = vmatprep.subr.mxu0 0.0
    %2701 = vmatpush1.msra.mxu0 0.0
    %2702 = vmatprep.subr.mxu0 0.0
    %2703 = vmatpush1.msra.mxu0 0.0
    %2704 = vmatprep.subr.mxu0 0.0
    %2705 = vmatpush1.msra.mxu0 0.0
    %2706 = vmatprep.subr.mxu0 0.0
    %2707 = vmatpush1.msra.mxu0 0.0
    %2708 = vmatprep.subr.mxu0 0.0
    %2709 = vmatpush1.msra.mxu0 0.0
    %2710 = vmatprep.subr.mxu0 0.0
    %2711 = vmatpush1.msra.mxu0 0.0
    %2712 = vmatprep.subr.mxu0 0.0
    %2713 = vmatpush1.msra.mxu0 0.0
    %2714 = vmatprep.subr.mxu0 0.0
    %2715 = vmatpush1.msra.mxu0 0.0
    %2716 = vmatprep.subr.mxu0 0.0
    %2717 = vmatpush1.msra.mxu0 0.0
    %2718 = vmatprep.subr.mxu0 0.0
    %2719 = vmatpush1.msra.mxu0 0.0
    %2720 = vmatprep.subr.mxu0 0.0
    %2721 = vmatpush1.msra.mxu0 0.0
    %2722 = vmatprep.subr.mxu0 0.0
    %2723 = vmatpush1.msra.mxu0 0.0
    %2724 = vmatprep.subr.mxu0 0.0
    %2725 = vmatpush1.msra.mxu0 0.0
    %2726 = vmatprep.subr.mxu0 0.0
    %2727 = vmatpush1.msra.mxu0 0.0
    %2728 = vmatprep.subr.mxu0 0.0
    %2729 = vmatpush1.msra.mxu0 %v2699
    %2730 = vmatprep.subr.mxu0 0.0
    %2731 = vmatpush1.msra.mxu0 %v2698
    %2732 = vmatprep.subr.mxu0 0.0
    %2733 = vmatpush2.msra.mxu0 0.0
    %2734 = vmatprep.subr.mxu0 0.0
    %2735 = vmatpush2.msra.mxu0 0.0
    %2736 = vmatprep.subr.mxu0 0.0
    %2737 = vmatpush2.msra.mxu0 0.0
    %2738 = vmatprep.subr.mxu0 0.0
    %2739 = vmatpush2.msra.mxu0 0.0
    %2740 = vmatprep.subr.mxu0 0.0
    %2741 = vmatpush2.msra.mxu0 0.0
    %2742 = vmatprep.subr.mxu0 0.0
    %2743 = vmatpush2.msra.mxu0 0.0
    %2744 = vmatprep.subr.mxu0 0.0
    %2745 = vmatpush2.msra.mxu0 0.0
    %2746 = vmatprep.subr.mxu0 0.0
    %2747 = vmatpush2.msra.mxu0 0.0
    %2748 = vmatprep.subr.mxu0 0.0
    %2749 = vmatpush2.msra.mxu0 0.0
    %2750 = vmatprep.subr.mxu0 0.0
    %2751 = vmatpush2.msra.mxu0 0.0
    %2752 = vmatprep.subr.mxu0 0.0
    %2753 = vmatpush2.msra.mxu0 0.0
    %2754 = vmatprep.subr.mxu0 0.0
    %2755 = vmatpush2.msra.mxu0 0.0
    %2756 = vmatprep.subr.mxu0 0.0
    %2757 = vmatpush2.msra.mxu0 0.0
    %2758 = vmatprep.subr.mxu0 0.0
    %2759 = vmatpush2.msra.mxu0 0.0
    %2760 = vmatprep.subr.mxu0 0.0
    %2761 = vmatpush2.msra.mxu0 0.0
    %2762 = vmatprep.subr.mxu0 0.0
    %2763 = vmatpush2.msra.mxu0 0.0
    %2764 = vmatprep.mubr.f32.mxu0 0.0
    %2765 = vmatmul.mubr.f32.gmra.mxu0 %v1491
    %v2766 = vpop.f32.mrf.mxu0
    %v2767 = vadd.f32 0.0, %v2766
    %v2768 = vpop.f32.mrf.mxu0
    %2769 = vdwg.mxu0
    %v2770 = vsel %vm564, %v2385, 0
    %2772 = vmatprep.subr.mxu0 0.0
    %2773 = vmatpush1.msra.mxu0 0.0
    %2774 = vmatprep.subr.mxu0 0.0
    %2775 = vmatpush1.msra.mxu0 0.0
    %2776 = vmatprep.subr.mxu0 0.0
    %2777 = vmatpush1.msra.mxu0 0.0
    %2778 = vmatprep.subr.mxu0 0.0
    %2779 = vmatpush1.msra.mxu0 0.0
    %2780 = vmatprep.subr.mxu0 0.0
    %2781 = vmatpush1.msra.mxu0 0.0
    %2782 = vmatprep.subr.mxu0 0.0
    %2783 = vmatpush1.msra.mxu0 0.0
    %2784 = vmatprep.subr.mxu0 0.0
    %2785 = vmatpush1.msra.mxu0 0.0
    %2786 = vmatprep.subr.mxu0 0.0
    %2787 = vmatpush1.msra.mxu0 0.0
    %2788 = vmatprep.subr.mxu0 0.0
    %2789 = vmatpush1.msra.mxu0 0.0
    %2790 = vmatprep.subr.mxu0 0.0
    %2791 = vmatpush1.msra.mxu0 0.0
    %2792 = vmatprep.subr.mxu0 0.0
    %2793 = vmatpush1.msra.mxu0 0.0
    %2794 = vmatprep.subr.mxu0 0.0
    %2795 = vmatpush1.msra.mxu0 0.0
    %2796 = vmatprep.subr.mxu0 0.0
    %2797 = vmatpush1.msra.mxu0 %v1142
    %2798 = vmatprep.subr.mxu0 0.0
    %2799 = vmatpush1.msra.mxu0 %v1141
    %2800 = vmatprep.subr.mxu0 0.0
    %2801 = vmatpush1.msra.mxu0 %v1140
    %2802 = vmatprep.subr.mxu0 0.0
    %2803 = vmatpush1.msra.mxu0 %v1139
    %2804 = vmatprep.subr.mxu0 0.0
    %2805 = vmatpush2.msra.mxu0 0.0
    %2806 = vmatprep.subr.mxu0 0.0
    %2807 = vmatpush2.msra.mxu0 0.0
    %2808 = vmatprep.subr.mxu0 0.0
    %2809 = vmatpush2.msra.mxu0 0.0
    %2810 = vmatprep.subr.mxu0 0.0
    %2811 = vmatpush2.msra.mxu0 0.0
    %2812 = vmatprep.subr.mxu0 0.0
    %2813 = vmatpush2.msra.mxu0 0.0
    %2814 = vmatprep.subr.mxu0 0.0
    %2815 = vmatpush2.msra.mxu0 0.0
    %2816 = vmatprep.subr.mxu0 0.0
    %2817 = vmatpush2.msra.mxu0 0.0
    %2818 = vmatprep.subr.mxu0 0.0
    %2819 = vmatpush2.msra.mxu0 0.0
    %2820 = vmatprep.subr.mxu0 0.0
    %2821 = vmatpush2.msra.mxu0 0.0
    %2822 = vmatprep.subr.mxu0 0.0
    %2823 = vmatpush2.msra.mxu0 0.0
    %2824 = vmatprep.subr.mxu0 0.0
    %2825 = vmatpush2.msra.mxu0 0.0
    %2826 = vmatprep.subr.mxu0 0.0
    %2827 = vmatpush2.msra.mxu0 0.0
    %2828 = vmatprep.subr.mxu0 0.0
    %2829 = vmatpush2.msra.mxu0 0.0
    %2830 = vmatprep.subr.mxu0 0.0
    %2831 = vmatpush2.msra.mxu0 0.0
    %2832 = vmatprep.subr.mxu0 0.0
    %2833 = vmatpush2.msra.mxu0 0.0
    %2834 = vmatprep.subr.mxu0 0.0
    %2835 = vmatpush2.msra.mxu0 0.0
    %2836 = vmatprep.mubr.f32.mxu0 0.0
    %2837 = vmatmul.mubr.f32.gmra.mxu0 %v2770
    %v2838 = vpop.f32.mrf.mxu0
    %v2839 = vadd.f32 0.0, %v2838
    %v2840 = vpop.f32.mrf.mxu0
    %2841 = vdwg.mxu0
    %v2843 = vsel %vm564, %v2767, 0
    %v2846 = vsel %vm564, %v2531, 0
    %2848 = vmatprep.subr.mxu0 0.0
    %2849 = vmatpush1.msra.mxu0 0.0
    %2850 = vmatprep.subr.mxu0 0.0
    %2851 = vmatpush1.msra.mxu0 0.0
    %2852 = vmatprep.subr.mxu0 0.0
    %2853 = vmatpush1.msra.mxu0 0.0
    %2854 = vmatprep.subr.mxu0 0.0
    %2855 = vmatpush1.msra.mxu0 0.0
    %2856 = vmatprep.subr.mxu0 0.0
    %2857 = vmatpush1.msra.mxu0 0.0
    %2858 = vmatprep.subr.mxu0 0.0
    %2859 = vmatpush1.msra.mxu0 0.0
    %2860 = vmatprep.subr.mxu0 0.0
    %2861 = vmatpush1.msra.mxu0 0.0
    %2862 = vmatprep.subr.mxu0 0.0
    %2863 = vmatpush1.msra.mxu0 0.0
    %2864 = vmatprep.subr.mxu0 0.0
    %2865 = vmatpush1.msra.mxu0 0.0
    %2866 = vmatprep.subr.mxu0 0.0
    %2867 = vmatpush1.msra.mxu0 0.0
    %2868 = vmatprep.subr.mxu0 0.0
    %2869 = vmatpush1.msra.mxu0 0.0
    %2870 = vmatprep.subr.mxu0 0.0
    %2871 = vmatpush1.msra.mxu0 0.0
    %2872 = vmatprep.subr.mxu0 0.0
    %2873 = vmatpush1.msra.mxu0 %v1146
    %2874 = vmatprep.subr.mxu0 0.0
    %2875 = vmatpush1.msra.mxu0 %v1145
    %2876 = vmatprep.subr.mxu0 0.0
    %2877 = vmatpush1.msra.mxu0 %v1144
    %2878 = vmatprep.subr.mxu0 0.0
    %2879 = vmatpush1.msra.mxu0 %v1143
    %2880 = vmatprep.subr.mxu0 0.0
    %2881 = vmatpush2.msra.mxu0 0.0
    %2882 = vmatprep.subr.mxu0 0.0
    %2883 = vmatpush2.msra.mxu0 0.0
    %2884 = vmatprep.subr.mxu0 0.0
    %2885 = vmatpush2.msra.mxu0 0.0
    %2886 = vmatprep.subr.mxu0 0.0
    %2887 = vmatpush2.msra.mxu0 0.0
    %2888 = vmatprep.subr.mxu0 0.0
    %2889 = vmatpush2.msra.mxu0 0.0
    %2890 = vmatprep.subr.mxu0 0.0
    %2891 = vmatpush2.msra.mxu0 0.0
    %2892 = vmatprep.subr.mxu0 0.0
    %2893 = vmatpush2.msra.mxu0 0.0
    %2894 = vmatprep.subr.mxu0 0.0
    %2895 = vmatpush2.msra.mxu0 0.0
    %2896 = vmatprep.subr.mxu0 0.0
    %2897 = vmatpush2.msra.mxu0 0.0
    %2898 = vmatprep.subr.mxu0 0.0
    %2899 = vmatpush2.msra.mxu0 0.0
    %2900 = vmatprep.subr.mxu0 0.0
    %2901 = vmatpush2.msra.mxu0 0.0
    %2902 = vmatprep.subr.mxu0 0.0
    %2903 = vmatpush2.msra.mxu0 0.0
    %2904 = vmatprep.subr.mxu0 0.0
    %2905 = vmatpush2.msra.mxu0 0.0
    %2906 = vmatprep.subr.mxu0 0.0
    %2907 = vmatpush2.msra.mxu0 0.0
    %2908 = vmatprep.subr.mxu0 0.0
    %2909 = vmatpush2.msra.mxu0 0.0
    %2910 = vmatprep.subr.mxu0 0.0
    %2911 = vmatpush2.msra.mxu0 0.0
    %2912 = vmatprep.mubr.f32.mxu0 0.0
    %2913 = vmatmul.mubr.f32.gmra.mxu0 %v2843
    %v2914 = vpop.f32.mrf.mxu0
    %v2915 = vadd.f32 0.0, %v2914
    %v2916 = vpop.f32.mrf.mxu0
    %2917 = vmatprep.mubr.f32.mxu0 0.0
    %2918 = vmatmul.mubr.f32.gmra.mxu0 %v2846
    %v2919 = vpop.f32.mrf.mxu0
    %v2920 = vadd.f32 0.0, %v2919
    %v2921 = vpop.f32.mrf.mxu0
    %2922 = vdwg.mxu0
    %v2923 = vmul.f32 %v2839, %v2915
    %v2925 = vsel %vm564, %v2923, 0
    %2927 = vmatprep.subr.mxu0 0.0
    %2928 = vmatpush1.msra.mxu0 0.0
    %2929 = vmatprep.subr.mxu0 0.0
    %2930 = vmatpush1.msra.mxu0 0.0
    %2931 = vmatprep.subr.mxu0 0.0
    %2932 = vmatpush1.msra.mxu0 0.0
    %2933 = vmatprep.subr.mxu0 0.0
    %2934 = vmatpush1.msra.mxu0 0.0
    %2935 = vmatprep.subr.mxu0 0.0
    %2936 = vmatpush1.msra.mxu0 0.0
    %2937 = vmatprep.subr.mxu0 0.0
    %2938 = vmatpush1.msra.mxu0 0.0
    %2939 = vmatprep.subr.mxu0 0.0
    %2940 = vmatpush1.msra.mxu0 0.0
    %2941 = vmatprep.subr.mxu0 0.0
    %2942 = vmatpush1.msra.mxu0 0.0
    %2943 = vmatprep.subr.mxu0 0.0
    %2944 = vmatpush1.msra.mxu0 0.0
    %2945 = vmatprep.subr.mxu0 0.0
    %2946 = vmatpush1.msra.mxu0 0.0
    %2947 = vmatprep.subr.mxu0 0.0
    %2948 = vmatpush1.msra.mxu0 0.0
    %2949 = vmatprep.subr.mxu0 0.0
    %2950 = vmatpush1.msra.mxu0 0.0
    %2951 = vmatprep.subr.mxu0 0.0
    %2952 = vmatpush1.msra.mxu0 %v1155
    %2953 = vmatprep.subr.mxu0 0.0
    %2954 = vmatpush1.msra.mxu0 %v1154
    %2955 = vmatprep.subr.mxu0 0.0
    %2956 = vmatpush1.msra.mxu0 %v1153
    %2957 = vmatprep.subr.mxu0 0.0
    %2958 = vmatpush1.msra.mxu0 %v1152
    %2959 = vmatprep.subr.mxu0 0.0
    %2960 = vmatpush2.msra.mxu0 0.0
    %2961 = vmatprep.subr.mxu0 0.0
    %2962 = vmatpush2.msra.mxu0 0.0
    %2963 = vmatprep.subr.mxu0 0.0
    %2964 = vmatpush2.msra.mxu0 0.0
    %2965 = vmatprep.subr.mxu0 0.0
    %2966 = vmatpush2.msra.mxu0 0.0
    %2967 = vmatprep.subr.mxu0 0.0
    %2968 = vmatpush2.msra.mxu0 0.0
    %2969 = vmatprep.subr.mxu0 0.0
    %2970 = vmatpush2.msra.mxu0 0.0
    %2971 = vmatprep.subr.mxu0 0.0
    %2972 = vmatpush2.msra.mxu0 0.0
    %2973 = vmatprep.subr.mxu0 0.0
    %2974 = vmatpush2.msra.mxu0 0.0
    %2975 = vmatprep.subr.mxu0 0.0
    %2976 = vmatpush2.msra.mxu0 0.0
    %2977 = vmatprep.subr.mxu0 0.0
    %2978 = vmatpush2.msra.mxu0 0.0
    %2979 = vmatprep.subr.mxu0 0.0
    %2980 = vmatpush2.msra.mxu0 0.0
    %2981 = vmatprep.subr.mxu0 0.0
    %2982 = vmatpush2.msra.mxu0 0.0
    %2983 = vmatprep.subr.mxu0 0.0
    %2984 = vmatpush2.msra.mxu0 0.0
    %2985 = vmatprep.subr.mxu0 0.0
    %2986 = vmatpush2.msra.mxu0 0.0
    %2987 = vmatprep.subr.mxu0 0.0
    %2988 = vmatpush2.msra.mxu0 0.0
    %2989 = vmatprep.subr.mxu0 0.0
    %2990 = vmatpush2.msra.mxu0 0.0
    %2991 = vmatprep.mubr.f32.mxu0 0.0
    %2992 = vmatmul.mubr.f32.gmra.mxu0 %v2925
    %v2993 = vpop.f32.mrf.mxu0
    %v2994 = vadd.f32 0.0, %v2993
    %v2995 = vpop.f32.mrf.mxu0
    %2996 = vdwg.mxu0
    %v2997 = vmul.f32 %v2994, 0.125
    %v2998 = vmul.f32 %v2839, %v2920
    %v3000 = vsel %vm564, %v2998, 0
    %3002 = vmatprep.subr.mxu0 0.0
    %3003 = vmatpush1.msra.mxu0 0.0
    %3004 = vmatprep.subr.mxu0 0.0
    %3005 = vmatpush1.msra.mxu0 0.0
    %3006 = vmatprep.subr.mxu0 0.0
    %3007 = vmatpush1.msra.mxu0 0.0
    %3008 = vmatprep.subr.mxu0 0.0
    %3009 = vmatpush1.msra.mxu0 0.0
    %3010 = vmatprep.subr.mxu0 0.0
    %3011 = vmatpush1.msra.mxu0 0.0
    %3012 = vmatprep.subr.mxu0 0.0
    %3013 = vmatpush1.msra.mxu0 0.0
    %3014 = vmatprep.subr.mxu0 0.0
    %3015 = vmatpush1.msra.mxu0 0.0
    %3016 = vmatprep.subr.mxu0 0.0
    %3017 = vmatpush1.msra.mxu0 0.0
    %3018 = vmatprep.subr.mxu0 0.0
    %3019 = vmatpush1.msra.mxu0 0.0
    %3020 = vmatprep.subr.mxu0 0.0
    %3021 = vmatpush1.msra.mxu0 0.0
    %3022 = vmatprep.subr.mxu0 0.0
    %3023 = vmatpush1.msra.mxu0 0.0
    %3024 = vmatprep.subr.mxu0 0.0
    %3025 = vmatpush1.msra.mxu0 0.0
    %3026 = vmatprep.subr.mxu0 0.0
    %3027 = vmatpush1.msra.mxu0 %v1155
    %3028 = vmatprep.subr.mxu0 0.0
    %3029 = vmatpush1.msra.mxu0 %v1154
    %3030 = vmatprep.subr.mxu0 0.0
    %3031 = vmatpush1.msra.mxu0 %v1153
    %3032 = vmatprep.subr.mxu0 0.0
    %3033 = vmatpush1.msra.mxu0 %v1152
    %3034 = vmatprep.subr.mxu0 0.0
    %3035 = vmatpush2.msra.mxu0 0.0
    %3036 = vmatprep.subr.mxu0 0.0
    %3037 = vmatpush2.msra.mxu0 0.0
    %3038 = vmatprep.subr.mxu0 0.0
    %3039 = vmatpush2.msra.mxu0 0.0
    %3040 = vmatprep.subr.mxu0 0.0
    %3041 = vmatpush2.msra.mxu0 0.0
    %3042 = vmatprep.subr.mxu0 0.0
    %3043 = vmatpush2.msra.mxu0 0.0
    %3044 = vmatprep.subr.mxu0 0.0
    %3045 = vmatpush2.msra.mxu0 0.0
    %3046 = vmatprep.subr.mxu0 0.0
    %3047 = vmatpush2.msra.mxu0 0.0
    %3048 = vmatprep.subr.mxu0 0.0
    %3049 = vmatpush2.msra.mxu0 0.0
    %3050 = vmatprep.subr.mxu0 0.0
    %3051 = vmatpush2.msra.mxu0 0.0
    %3052 = vmatprep.subr.mxu0 0.0
    %3053 = vmatpush2.msra.mxu0 0.0
    %3054 = vmatprep.subr.mxu0 0.0
    %3055 = vmatpush2.msra.mxu0 0.0
    %3056 = vmatprep.subr.mxu0 0.0
    %3057 = vmatpush2.msra.mxu0 0.0
    %3058 = vmatprep.subr.mxu0 0.0
    %3059 = vmatpush2.msra.mxu0 0.0
    %3060 = vmatprep.subr.mxu0 0.0
    %3061 = vmatpush2.msra.mxu0 0.0
    %3062 = vmatprep.subr.mxu0 0.0
    %3063 = vmatpush2.msra.mxu0 0.0
    %3064 = vmatprep.subr.mxu0 0.0
    %3065 = vmatpush2.msra.mxu0 0.0
    %3066 = vmatprep.mubr.f32.mxu0 0.0
    %3067 = vmatmul.mubr.f32.gmra.mxu0 %v3000
    %v3068 = vpop.f32.mrf.mxu0
    %v3069 = vadd.f32 0.0, %v3068
    %v3070 = vpop.f32.mrf.mxu0
    %3071 = vdwg.mxu0
    %v3072 = vmul.f32 %v3069, 0.125
    %v3073 = vmax.f32 %v2997, %v3072
    %v3074 = vsub.f32 %v2997, %v3073
    %v3075 = vmul.f32 %v3074, 1.442695
    %v3076 = vpow.pop %v3075
    %v3077 = vsub.f32 %v3072, %v3073
    %v3078 = vmul.f32 %v3077, 1.442695
    %v3079 = vpow.pop %v3078
    %3081 = vrot.lane.b32.xlu0 %v2915, 96
    %v3082 = vpop.permute.xlu0 %3081
    %v3084 = vmul.f32 %v3076, %v3082
    %3086 = vrot.lane.b32.xlu0 %v2920, 96
    %v3087 = vpop.permute.xlu0 %3086
    %v3089 = vmul.f32 %v3079, %v3087
    %v3090 = vadd.f32 %v3084, %v3089
    %v3091 = vadd.f32 %v3076, %v3079
    %v3092 = vrcp.pop %v3091
    %v3093 = vmul.f32 %v3090, %v3092
    %v3095 = vsel %vm564, %v3093, 0
    %3097 = vmatprep.subr.mxu0 0.0
    %3098 = vmatpush1.msra.mxu0 0.0
    %3099 = vmatprep.subr.mxu0 0.0
    %3100 = vmatpush1.msra.mxu0 0.0
    %3101 = vmatprep.subr.mxu0 0.0
    %3102 = vmatpush1.msra.mxu0 0.0
    %3103 = vmatprep.subr.mxu0 0.0
    %3104 = vmatpush1.msra.mxu0 0.0
    %3105 = vmatprep.subr.mxu0 0.0
    %3106 = vmatpush1.msra.mxu0 0.0
    %3107 = vmatprep.subr.mxu0 0.0
    %3108 = vmatpush1.msra.mxu0 0.0
    %3109 = vmatprep.subr.mxu0 0.0
    %3110 = vmatpush1.msra.mxu0 0.0
    %3111 = vmatprep.subr.mxu0 0.0
    %3112 = vmatpush1.msra.mxu0 0.0
    %3113 = vmatprep.subr.mxu0 0.0
    %3114 = vmatpush1.msra.mxu0 0.0
    %3115 = vmatprep.subr.mxu0 0.0
    %3116 = vmatpush1.msra.mxu0 0.0
    %3117 = vmatprep.subr.mxu0 0.0
    %3118 = vmatpush1.msra.mxu0 0.0
    %3119 = vmatprep.subr.mxu0 0.0
    %3120 = vmatpush1.msra.mxu0 0.0
    %3121 = vmatprep.subr.mxu0 0.0
    %3122 = vmatpush1.msra.mxu0 %v1150
    %3123 = vmatprep.subr.mxu0 0.0
    %3124 = vmatpush1.msra.mxu0 %v1149
    %3125 = vmatprep.subr.mxu0 0.0
    %3126 = vmatpush1.msra.mxu0 %v1148
    %3127 = vmatprep.subr.mxu0 0.0
    %3128 = vmatpush1.msra.mxu0 %v1147
    %3129 = vmatprep.subr.mxu0 0.0
    %3130 = vmatpush2.msra.mxu0 0.0
    %3131 = vmatprep.subr.mxu0 0.0
    %3132 = vmatpush2.msra.mxu0 0.0
    %3133 = vmatprep.subr.mxu0 0.0
    %3134 = vmatpush2.msra.mxu0 0.0
    %3135 = vmatprep.subr.mxu0 0.0
    %3136 = vmatpush2.msra.mxu0 0.0
    %3137 = vmatprep.subr.mxu0 0.0
    %3138 = vmatpush2.msra.mxu0 0.0
    %3139 = vmatprep.subr.mxu0 0.0
    %3140 = vmatpush2.msra.mxu0 0.0
    %3141 = vmatprep.subr.mxu0 0.0
    %3142 = vmatpush2.msra.mxu0 0.0
    %3143 = vmatprep.subr.mxu0 0.0
    %3144 = vmatpush2.msra.mxu0 0.0
    %3145 = vmatprep.subr.mxu0 0.0
    %3146 = vmatpush2.msra.mxu0 0.0
    %3147 = vmatprep.subr.mxu0 0.0
    %3148 = vmatpush2.msra.mxu0 0.0
    %3149 = vmatprep.subr.mxu0 0.0
    %3150 = vmatpush2.msra.mxu0 0.0
    %3151 = vmatprep.subr.mxu0 0.0
    %3152 = vmatpush2.msra.mxu0 0.0
    %3153 = vmatprep.subr.mxu0 0.0
    %3154 = vmatpush2.msra.mxu0 0.0
    %3155 = vmatprep.subr.mxu0 0.0
    %3156 = vmatpush2.msra.mxu0 0.0
    %3157 = vmatprep.subr.mxu0 0.0
    %3158 = vmatpush2.msra.mxu0 0.0
    %3159 = vmatprep.subr.mxu0 0.0
    %3160 = vmatpush2.msra.mxu0 0.0
    %3161 = vmatprep.mubr.f32.mxu0 0.0
    %3162 = vmatmul.mubr.f32.gmra.mxu0 %v3095
    %v3163 = vpop.f32.mrf.mxu0
    %v3164 = vadd.f32 %v1892, %v3163
    %v3165 = vpop.f32.mrf.mxu0
    %3166 = vdwg.mxu0
    %v3168 = vsel %vm564, %v3164, 0
    %3170 = vmatprep.subr.mxu0 0.0
    %3171 = vmatpush1.msra.mxu0 0.0
    %3172 = vmatprep.subr.mxu0 0.0
    %3173 = vmatpush1.msra.mxu0 0.0
    %3174 = vmatprep.subr.mxu0 0.0
    %3175 = vmatpush1.msra.mxu0 0.0
    %3176 = vmatprep.subr.mxu0 0.0
    %3177 = vmatpush1.msra.mxu0 0.0
    %3178 = vmatprep.subr.mxu0 0.0
    %3179 = vmatpush1.msra.mxu0 0.0
    %3180 = vmatprep.subr.mxu0 0.0
    %3181 = vmatpush1.msra.mxu0 0.0
    %3182 = vmatprep.subr.mxu0 0.0
    %3183 = vmatpush1.msra.mxu0 0.0
    %3184 = vmatprep.subr.mxu0 0.0
    %3185 = vmatpush1.msra.mxu0 0.0
    %3186 = vmatprep.subr.mxu0 0.0
    %3187 = vmatpush1.msra.mxu0 0.0
    %3188 = vmatprep.subr.mxu0 0.0
    %3189 = vmatpush1.msra.mxu0 0.0
    %3190 = vmatprep.subr.mxu0 0.0
    %3191 = vmatpush1.msra.mxu0 0.0
    %3192 = vmatprep.subr.mxu0 0.0
    %3193 = vmatpush1.msra.mxu0 0.0
    %3194 = vmatprep.subr.mxu0 0.0
    %3195 = vmatpush1.msra.mxu0 %v1159
    %3196 = vmatprep.subr.mxu0 0.0
    %3197 = vmatpush1.msra.mxu0 %v1158
    %3198 = vmatprep.subr.mxu0 0.0
    %3199 = vmatpush1.msra.mxu0 %v1157
    %3200 = vmatprep.subr.mxu0 0.0
    %3201 = vmatpush1.msra.mxu0 %v1156
    %3202 = vmatprep.subr.mxu0 0.0
    %3203 = vmatpush2.msra.mxu0 0.0
    %3204 = vmatprep.subr.mxu0 0.0
    %3205 = vmatpush2.msra.mxu0 0.0
    %3206 = vmatprep.subr.mxu0 0.0
    %3207 = vmatpush2.msra.mxu0 0.0
    %3208 = vmatprep.subr.mxu0 0.0
    %3209 = vmatpush2.msra.mxu0 0.0
    %3210 = vmatprep.subr.mxu0 0.0
    %3211 = vmatpush2.msra.mxu0 0.0
    %3212 = vmatprep.subr.mxu0 0.0
    %3213 = vmatpush2.msra.mxu0 0.0
    %3214 = vmatprep.subr.mxu0 0.0
    %3215 = vmatpush2.msra.mxu0 0.0
    %3216 = vmatprep.subr.mxu0 0.0
    %3217 = vmatpush2.msra.mxu0 0.0
    %3218 = vmatprep.subr.mxu0 0.0
    %3219 = vmatpush2.msra.mxu0 0.0
    %3220 = vmatprep.subr.mxu0 0.0
    %3221 = vmatpush2.msra.mxu0 0.0
    %3222 = vmatprep.subr.mxu0 0.0
    %3223 = vmatpush2.msra.mxu0 0.0
    %3224 = vmatprep.subr.mxu0 0.0
    %3225 = vmatpush2.msra.mxu0 0.0
    %3226 = vmatprep.subr.mxu0 0.0
    %3227 = vmatpush2.msra.mxu0 0.0
    %3228 = vmatprep.subr.mxu0 0.0
    %3229 = vmatpush2.msra.mxu0 0.0
    %3230 = vmatprep.subr.mxu0 0.0
    %3231 = vmatpush2.msra.mxu0 0.0
    %3232 = vmatprep.subr.mxu0 0.0
    %3233 = vmatpush2.msra.mxu0 0.0
    %3234 = vmatprep.mubr.f32.mxu0 0.0
    %3235 = vmatmul.mubr.f32.gmra.mxu0 %v3168
    %v3236 = vpop.f32.mrf.mxu0
    %v3237 = vadd.f32 %v1971, %v3236
    %v3238 = vpop.f32.mrf.mxu0
    %3239 = vdwg.mxu0
    %3240 = vmatprep.subr.mxu0 0.0
    %3241 = vmatpush1.msra.mxu0 0.0
    %3242 = vmatprep.subr.mxu0 0.0
    %3243 = vmatpush1.msra.mxu0 0.0
    %3244 = vmatprep.subr.mxu0 0.0
    %3245 = vmatpush1.msra.mxu0 0.0
    %3246 = vmatprep.subr.mxu0 0.0
    %3247 = vmatpush1.msra.mxu0 0.0
    %3248 = vmatprep.subr.mxu0 0.0
    %3249 = vmatpush1.msra.mxu0 0.0
    %3250 = vmatprep.subr.mxu0 0.0
    %3251 = vmatpush1.msra.mxu0 0.0
    %3252 = vmatprep.subr.mxu0 0.0
    %3253 = vmatpush1.msra.mxu0 0.0
    %3254 = vmatprep.subr.mxu0 0.0
    %3255 = vmatpush1.msra.mxu0 0.0
    %3256 = vmatprep.subr.mxu0 0.0
    %3257 = vmatpush1.msra.mxu0 0.0
    %3258 = vmatprep.subr.mxu0 0.0
    %3259 = vmatpush1.msra.mxu0 0.0
    %3260 = vmatprep.subr.mxu0 0.0
    %3261 = vmatpush1.msra.mxu0 0.0
    %3262 = vmatprep.subr.mxu0 0.0
    %3263 = vmatpush1.msra.mxu0 0.0
    %3264 = vmatprep.subr.mxu0 0.0
    %3265 = vmatpush1.msra.mxu0 %v1163
    %3266 = vmatprep.subr.mxu0 0.0
    %3267 = vmatpush1.msra.mxu0 %v1162
    %3268 = vmatprep.subr.mxu0 0.0
    %3269 = vmatpush1.msra.mxu0 %v1161
    %3270 = vmatprep.subr.mxu0 0.0
    %3271 = vmatpush1.msra.mxu0 %v1160
    %3272 = vmatprep.subr.mxu0 0.0
    %3273 = vmatpush2.msra.mxu0 0.0
    %3274 = vmatprep.subr.mxu0 0.0
    %3275 = vmatpush2.msra.mxu0 0.0
    %3276 = vmatprep.subr.mxu0 0.0
    %3277 = vmatpush2.msra.mxu0 0.0
    %3278 = vmatprep.subr.mxu0 0.0
    %3279 = vmatpush2.msra.mxu0 0.0
    %3280 = vmatprep.subr.mxu0 0.0
    %3281 = vmatpush2.msra.mxu0 0.0
    %3282 = vmatprep.subr.mxu0 0.0
    %3283 = vmatpush2.msra.mxu0 0.0
    %3284 = vmatprep.subr.mxu0 0.0
    %3285 = vmatpush2.msra.mxu0 0.0
    %3286 = vmatprep.subr.mxu0 0.0
    %3287 = vmatpush2.msra.mxu0 0.0
    %3288 = vmatprep.subr.mxu0 0.0
    %3289 = vmatpush2.msra.mxu0 0.0
    %3290 = vmatprep.subr.mxu0 0.0
    %3291 = vmatpush2.msra.mxu0 0.0
    %3292 = vmatprep.subr.mxu0 0.0
    %3293 = vmatpush2.msra.mxu0 0.0
    %3294 = vmatprep.subr.mxu0 0.0
    %3295 = vmatpush2.msra.mxu0 0.0
    %3296 = vmatprep.subr.mxu0 0.0
    %3297 = vmatpush2.msra.mxu0 0.0
    %3298 = vmatprep.subr.mxu0 0.0
    %3299 = vmatpush2.msra.mxu0 0.0
    %3300 = vmatprep.subr.mxu0 0.0
    %3301 = vmatpush2.msra.mxu0 0.0
    %3302 = vmatprep.subr.mxu0 0.0
    %3303 = vmatpush2.msra.mxu0 0.0
    %3304 = vmatprep.mubr.f32.mxu0 0.0
    %3305 = vmatmul.mubr.f32.gmra.mxu0 %v2770
    %v3306 = vpop.f32.mrf.mxu0
    %v3307 = vadd.f32 %v2050, %v3306
    %v3308 = vpop.f32.mrf.mxu0
    %3309 = vdwg.mxu0
    %v3310 = vadd.f32 %v3237, %v3307
    %v3311 = vxor.u32 %v3310, 2147483648
    %v3312 = vmul.f32 %v3311, 1.442695
    %v3313 = vpow.pop %v3312
    %v3314 = vadd.f32 %v3313, 1.0
    %v3315 = vrcp.pop %v3314
    %v3316 = vmul.f32 1.0, %v3315
    %3318 = vrot.lane.b32.xlu0 %v3307, 64
    %v3319 = vpop.permute.xlu0 %3318
    %v3321 = vmul.f32 %v3316, %v3319
    %3323 = vrot.lane.b32.xlu0 %v3321, 64
    %v3324 = vpop.permute.xlu0 %3323
    %v3326 = vadd.f32 %v3237, %v3324
    %v3327 = vtanh.pop %v3326
    %v3328 = vsub.f32 1.0, %v3316
    %3330 = vrot.lane.b32.xlu0 %v3327, 96
    %v3331 = vpop.permute.xlu0 %3330
    %v3333 = vmul.f32 %v3328, %v3331
    %v3334 = vmul.f32 %v3316, %v2150
    %v3335 = vadd.f32 %v3333, %v3334
    %v3337 = vsel %vm564, %v2698, 0
    %v3340 = vsel %vm564, %v2699, 0
    %3342 = vmatprep.subr.mxu0 0.0
    %3343 = vmatpush1.msra.mxu0 0.0
    %3344 = vmatprep.subr.mxu0 0.0
    %3345 = vmatpush1.msra.mxu0 0.0
    %3346 = vmatprep.subr.mxu0 0.0
    %3347 = vmatpush1.msra.mxu0 0.0
    %3348 = vmatprep.subr.mxu0 0.0
    %3349 = vmatpush1.msra.mxu0 0.0
    %3350 = vmatprep.subr.mxu0 0.0
    %3351 = vmatpush1.msra.mxu0 0.0
    %3352 = vmatprep.subr.mxu0 0.0
    %3353 = vmatpush1.msra.mxu0 0.0
    %3354 = vmatprep.subr.mxu0 0.0
    %3355 = vmatpush1.msra.mxu0 0.0
    %3356 = vmatprep.subr.mxu0 0.0
    %3357 = vmatpush1.msra.mxu0 0.0
    %3358 = vmatprep.subr.mxu0 0.0
    %3359 = vmatpush1.msra.mxu0 0.0
    %3360 = vmatprep.subr.mxu0 0.0
    %3361 = vmatpush1.msra.mxu0 0.0
    %3362 = vmatprep.subr.mxu0 0.0
    %3363 = vmatpush1.msra.mxu0 0.0
    %3364 = vmatprep.subr.mxu0 0.0
    %3365 = vmatpush1.msra.mxu0 0.0
    %3366 = vmatprep.subr.mxu0 0.0
    %3367 = vmatpush1.msra.mxu0 %v1169
    %3368 = vmatprep.subr.mxu0 0.0
    %3369 = vmatpush1.msra.mxu0 %v1168
    %3370 = vmatprep.subr.mxu0 0.0
    %3371 = vmatpush1.msra.mxu0 %v1167
    %3372 = vmatprep.subr.mxu0 0.0
    %3373 = vmatpush1.msra.mxu0 %v1166
    %3374 = vmatprep.subr.mxu0 0.0
    %3375 = vmatpush2.msra.mxu0 0.0
    %3376 = vmatprep.subr.mxu0 0.0
    %3377 = vmatpush2.msra.mxu0 0.0
    %3378 = vmatprep.subr.mxu0 0.0
    %3379 = vmatpush2.msra.mxu0 0.0
    %3380 = vmatprep.subr.mxu0 0.0
    %3381 = vmatpush2.msra.mxu0 0.0
    %3382 = vmatprep.subr.mxu0 0.0
    %3383 = vmatpush2.msra.mxu0 0.0
    %3384 = vmatprep.subr.mxu0 0.0
    %3385 = vmatpush2.msra.mxu0 0.0
    %3386 = vmatprep.subr.mxu0 0.0
    %3387 = vmatpush2.msra.mxu0 0.0
    %3388 = vmatprep.subr.mxu0 0.0
    %3389 = vmatpush2.msra.mxu0 0.0
    %3390 = vmatprep.subr.mxu0 0.0
    %3391 = vmatpush2.msra.mxu0 0.0
    %3392 = vmatprep.subr.mxu0 0.0
    %3393 = vmatpush2.msra.mxu0 0.0
    %3394 = vmatprep.subr.mxu0 0.0
    %3395 = vmatpush2.msra.mxu0 0.0
    %3396 = vmatprep.subr.mxu0 0.0
    %3397 = vmatpush2.msra.mxu0 0.0
    %3398 = vmatprep.subr.mxu0 0.0
    %3399 = vmatpush2.msra.mxu0 0.0
    %3400 = vmatprep.subr.mxu0 0.0
    %3401 = vmatpush2.msra.mxu0 0.0
    %3402 = vmatprep.subr.mxu0 0.0
    %3403 = vmatpush2.msra.mxu0 0.0
    %3404 = vmatprep.subr.mxu0 0.0
    %3405 = vmatpush2.msra.mxu0 0.0
    %3406 = vmatprep.mubr.f32.mxu0 0.0
    %3407 = vmatmul.mubr.f32.gmra.mxu0 %v3337
    %v3408 = vpop.f32.mrf.mxu0
    %v3409 = vadd.f32 %v2155, %v3408
    %v3410 = vpop.f32.mrf.mxu0
    %3411 = vmatprep.mubr.f32.mxu0 0.0
    %3412 = vmatmul.mubr.f32.gmra.mxu0 %v3340
    %v3413 = vpop.f32.mrf.mxu0
    %v3414 = vadd.f32 %v2155, %v3413
    %v3415 = vpop.f32.mrf.mxu0
    %3416 = vdwg.mxu0
    %v3417 = vsel %vm564, %v2535, 0
    %v3419 = vsel %vm564, %v2537, 0
    %3421 = vmatprep.subr.mxu0 0.0
    %3422 = vmatpush1.msra.mxu0 0.0
    %3423 = vmatprep.subr.mxu0 0.0
    %3424 = vmatpush1.msra.mxu0 0.0
    %3425 = vmatprep.subr.mxu0 0.0
    %3426 = vmatpush1.msra.mxu0 0.0
    %3427 = vmatprep.subr.mxu0 0.0
    %3428 = vmatpush1.msra.mxu0 0.0
    %3429 = vmatprep.subr.mxu0 0.0
    %3430 = vmatpush1.msra.mxu0 0.0
    %3431 = vmatprep.subr.mxu0 0.0
    %3432 = vmatpush1.msra.mxu0 0.0
    %3433 = vmatprep.subr.mxu0 0.0
    %3434 = vmatpush1.msra.mxu0 0.0
    %3435 = vmatprep.subr.mxu0 0.0
    %3436 = vmatpush1.msra.mxu0 0.0
    %3437 = vmatprep.subr.mxu0 0.0
    %3438 = vmatpush1.msra.mxu0 0.0
    %3439 = vmatprep.subr.mxu0 0.0
    %3440 = vmatpush1.msra.mxu0 0.0
    %3441 = vmatprep.subr.mxu0 0.0
    %3442 = vmatpush1.msra.mxu0 0.0
    %3443 = vmatprep.subr.mxu0 0.0
    %3444 = vmatpush1.msra.mxu0 0.0
    %3445 = vmatprep.subr.mxu0 0.0
    %3446 = vmatpush1.msra.mxu0 %v1173
    %3447 = vmatprep.subr.mxu0 0.0
    %3448 = vmatpush1.msra.mxu0 %v1172
    %3449 = vmatprep.subr.mxu0 0.0
    %3450 = vmatpush1.msra.mxu0 %v1171
    %3451 = vmatprep.subr.mxu0 0.0
    %3452 = vmatpush1.msra.mxu0 %v1170
    %3453 = vmatprep.subr.mxu0 0.0
    %3454 = vmatpush2.msra.mxu0 0.0
    %3455 = vmatprep.subr.mxu0 0.0
    %3456 = vmatpush2.msra.mxu0 0.0
    %3457 = vmatprep.subr.mxu0 0.0
    %3458 = vmatpush2.msra.mxu0 0.0
    %3459 = vmatprep.subr.mxu0 0.0
    %3460 = vmatpush2.msra.mxu0 0.0
    %3461 = vmatprep.subr.mxu0 0.0
    %3462 = vmatpush2.msra.mxu0 0.0
    %3463 = vmatprep.subr.mxu0 0.0
    %3464 = vmatpush2.msra.mxu0 0.0
    %3465 = vmatprep.subr.mxu0 0.0
    %3466 = vmatpush2.msra.mxu0 0.0
    %3467 = vmatprep.subr.mxu0 0.0
    %3468 = vmatpush2.msra.mxu0 0.0
    %3469 = vmatprep.subr.mxu0 0.0
    %3470 = vmatpush2.msra.mxu0 0.0
    %3471 = vmatprep.subr.mxu0 0.0
    %3472 = vmatpush2.msra.mxu0 0.0
    %3473 = vmatprep.subr.mxu0 0.0
    %3474 = vmatpush2.msra.mxu0 0.0
    %3475 = vmatprep.subr.mxu0 0.0
    %3476 = vmatpush2.msra.mxu0 0.0
    %3477 = vmatprep.subr.mxu0 0.0
    %3478 = vmatpush2.msra.mxu0 0.0
    %3479 = vmatprep.subr.mxu0 0.0
    %3480 = vmatpush2.msra.mxu0 0.0
    %3481 = vmatprep.subr.mxu0 0.0
    %3482 = vmatpush2.msra.mxu0 0.0
    %3483 = vmatprep.subr.mxu0 0.0
    %3484 = vmatpush2.msra.mxu0 0.0
    %3485 = vmatprep.mubr.f32.mxu0 0.0
    %3486 = vmatmul.mubr.f32.gmra.mxu0 %v3417
    %v3487 = vpop.f32.mrf.mxu0
    %v3488 = vadd.f32 %v2242, %v3487
    %v3489 = vpop.f32.mrf.mxu0
    %3490 = vmatprep.mubr.f32.mxu0 0.0
    %3491 = vmatmul.mubr.f32.gmra.mxu0 %v3419
    %v3492 = vpop.f32.mrf.mxu0
    %v3493 = vadd.f32 %v2242, %v3492
    %v3494 = vpop.f32.mrf.mxu0
    %3495 = vdwg.mxu0
    %v3496 = vadd.f32 %v3409, %v3488
    %v3497 = vadd.f32 %v3414, %v3493
    %v3498 = vxor.u32 %v3496, 2147483648
    %v3499 = vxor.u32 %v3497, 2147483648
    %v3500 = vmul.f32 %v3498, 1.442695
    %v3501 = vpow.pop %v3500
    %v3502 = vmul.f32 %v3499, 1.442695
    %v3503 = vpow.pop %v3502
    %v3504 = vadd.f32 %v3501, 1.0
    %v3505 = vadd.f32 %v3503, 1.0
    %v3506 = vrcp.pop %v3504
    %v3507 = vmul.f32 1.0, %v3506
    %v3508 = vrcp.pop %v3505
    %v3509 = vmul.f32 1.0, %v3508
    %3512 = vrot.lane.b32.xlu0 %v3488, 64
    %v3513 = vpop.permute.xlu0 %3512
    %3514 = vrot.lane.b32.xlu0 %v3493, 64
    %v3515 = vpop.permute.xlu0 %3514
    %v3518 = vmul.f32 %v3507, %v3513
    %v3519 = vmul.f32 %v3509, %v3515
    %3522 = vrot.lane.b32.xlu0 %v3518, 64
    %v3523 = vpop.permute.xlu0 %3522
    %3524 = vrot.lane.b32.xlu0 %v3519, 64
    %v3525 = vpop.permute.xlu0 %3524
    %v3528 = vadd.f32 %v3409, %v3523
    %v3529 = vadd.f32 %v3414, %v3525
    %v3530 = vtanh.pop %v3528
    %v3531 = vtanh.pop %v3529
    %v3532 = vsub.f32 1.0, %v3507
    %v3533 = vsub.f32 1.0, %v3509
    %3536 = vrot.lane.b32.xlu0 %v3530, 96
    %v3537 = vpop.permute.xlu0 %3536
    %3538 = vrot.lane.b32.xlu0 %v3531, 96
    %v3539 = vpop.permute.xlu0 %3538
    %v3542 = vmul.f32 %v3532, %v3537
    %v3543 = vmul.f32 %v3533, %v3539
    %v3544 = vmul.f32 %v3507, %v2381
    %v3545 = vmul.f32 %v3509, %v2382
    %v3546 = vadd.f32 %v3542, %v3544
    %v3547 = vadd.f32 %v3543, %v3545
    %v3548 = vld [vmem:[#allocation7] sm:$0x1]
    %vm3549 = vcmask 523520
    %v3550 = vsel %vm3549, %v3546, 0.0
    %v3551 = vsel %vm3549, %v3547, 0.0
    %v3552 = vadd.f32 %v3550, %v3551
    %v3553 = vrot.slane %v3552, 4
    %v3554 = vadd.f32 %v3552, %v3553
    %v3555 = vrot.slane %v3554, 2
    %v3556 = vadd.f32 %v3554, %v3555
    %v3557 = vrot.slane %v3556, 1
    %v3558 = vadd.f32 %v3556, %v3557
    %v3559 = vsel %vm3549, %v3546, -inf
    %v3560 = vsel %vm3549, %v3547, -inf
    %v3561 = vmax.f32 %v3559, %v3560
    %v3562 = vrot.slane %v3561, 4
    %v3563 = vmax.f32 %v3561, %v3562
    %v3564 = vrot.slane %v3563, 2
    %v3565 = vmax.f32 %v3563, %v3564
    %v3566 = vrot.slane %v3565, 1
    %v3567 = vmax.f32 %v3565, %v3566
    %3569 = vrot.lane.b32.xlu0 %v3558, 96
    %v3570 = vpop.permute.xlu0 %3569
    %v3573 = vlaneseq
    %v3574 = vshrl.u32 %v3573, 7
    %v3575 = vsub.s32 0, %v3574
    %v3576 = vrot.slane %v3548, %v3575
    %3577 = vrot.lane.b32.xlu0 %v3576, 64
    %v3578 = vpop.permute.xlu0 %3577
    %v3580 = vsel %vm564, %v3570, %v3567
    %vm3581 = vcmask 523264
    %v3582 = vsel %vm3581, %v3580, %v3578
    %v3583 = vsel %vm3549, %v3335, 0.0
    %v3584 = vrot.slane %v3583, 4
    %v3585 = vadd.f32 %v3583, %v3584
    %v3586 = vrot.slane %v3585, 2
    %v3587 = vadd.f32 %v3585, %v3586
    %v3588 = vrot.slane %v3587, 1
    %v3589 = vadd.f32 %v3587, %v3588
    %v3590 = vsel %vm3549, %v3335, -inf
    %v3591 = vrot.slane %v3590, 4
    %v3592 = vmax.f32 %v3590, %v3591
    %v3593 = vrot.slane %v3592, 2
    %v3594 = vmax.f32 %v3592, %v3593
    %v3595 = vrot.slane %v3594, 1
    %v3596 = vmax.f32 %v3594, %v3595
    %3598 = vrot.lane.b32.xlu0 %v3589, 96
    %v3599 = vpop.permute.xlu0 %3598
    %v3601 = vsel %vm564, %v3599, %v3596
    %v3602 = vsel %vm3581, %v3601, %v3578
    %v3603 = vlaneseq
    %v3604 = vshrl.u32 %v3603, 7
    %vm3605 = vcmp.eq.s32.totalorder %v3604, 0
    %v3606 = vsel %vm3605, 1, 0
    %vm3607 = vcmp.eq.s32.totalorder %v3606, 1
    %v3608 = vlaneseq
    %v3609 = vshrl.u32 %v3608, 7
    %v3610 = vsub.s32 0, %v3609
    %v3611 = vrot.slane %v3582, %v3610
    %v3612 = vlaneseq
    %v3613 = vshrl.u32 %v3612, 7
    %v3614 = vsub.s32 0, %v3613
    %v3615 = vrot.slane %v3602, %v3614
    %v3616 = vsel %vm3607, %v3611, %v3615
    %v3617 = vld [vmem:[%s67] sm:$0xff]
    %v3618 = vld [vmem:[%s67 + $0x8] sm:$0xff]
    %v3619 = vld [vmem:[%s67 + $0x10] sm:$0xff]
    %v3620 = vld [vmem:[%s67 + $0x18] sm:$0xff]
    %v3621 = vld [vmem:[%s67 + $0x20] sm:$0xff]
    %v3622 = vld [vmem:[%s67 + $0x28] sm:$0xff]
    %v3623 = vld [vmem:[%s67 + $0x30] sm:$0xff]
    %v3624 = vld [vmem:[%s67 + $0x38] sm:$0xff]
    %v3625 = vld [vmem:[%s67 + $0x40] sm:$0xff]
    %v3626 = vld [vmem:[%s69] sm:$0x1]
    %v3628 = vlaneseq
    %v3629 = vshrl.u32 %v3628, 7
    %v3630 = vsub.s32 0, %v3629
    %v3631 = vrot.slane %v3626, %v3630
    %vm3633 = vcmask 588800
    %v3635 = vsel %vm3633, %v3616, 0
    %3637 = vmatprep.subr.mxu0 0.0
    %3638 = vmatpush1.msra.mxu0 0.0
    %3639 = vmatprep.subr.mxu0 0.0
    %3640 = vmatpush1.msra.mxu0 0.0
    %3641 = vmatprep.subr.mxu0 0.0
    %3642 = vmatpush1.msra.mxu0 0.0
    %3643 = vmatprep.subr.mxu0 0.0
    %3644 = vmatpush1.msra.mxu0 0.0
    %3645 = vmatprep.subr.mxu0 0.0
    %3646 = vmatpush1.msra.mxu0 0.0
    %3647 = vmatprep.subr.mxu0 0.0
    %3648 = vmatpush1.msra.mxu0 0.0
    %3649 = vmatprep.subr.mxu0 0.0
    %3650 = vmatpush1.msra.mxu0 0.0
    %3651 = vmatprep.subr.mxu0 0.0
    %3652 = vmatpush1.msra.mxu0 %v3625
    %3653 = vmatprep.subr.mxu0 0.0
    %3654 = vmatpush1.msra.mxu0 %v3624
    %3655 = vmatprep.subr.mxu0 0.0
    %3656 = vmatpush1.msra.mxu0 %v3623
    %3657 = vmatprep.subr.mxu0 0.0
    %3658 = vmatpush1.msra.mxu0 %v3622
    %3659 = vmatprep.subr.mxu0 0.0
    %3660 = vmatpush1.msra.mxu0 %v3621
    %3661 = vmatprep.subr.mxu0 0.0
    %3662 = vmatpush1.msra.mxu0 %v3620
    %3663 = vmatprep.subr.mxu0 0.0
    %3664 = vmatpush1.msra.mxu0 %v3619
    %3665 = vmatprep.subr.mxu0 0.0
    %3666 = vmatpush1.msra.mxu0 %v3618
    %3667 = vmatprep.subr.mxu0 0.0
    %3668 = vmatpush1.msra.mxu0 %v3617
    %3669 = vmatprep.subr.mxu0 0.0
    %3670 = vmatpush2.msra.mxu0 0.0
    %3671 = vmatprep.subr.mxu0 0.0
    %3672 = vmatpush2.msra.mxu0 0.0
    %3673 = vmatprep.subr.mxu0 0.0
    %3674 = vmatpush2.msra.mxu0 0.0
    %3675 = vmatprep.subr.mxu0 0.0
    %3676 = vmatpush2.msra.mxu0 0.0
    %3677 = vmatprep.subr.mxu0 0.0
    %3678 = vmatpush2.msra.mxu0 0.0
    %3679 = vmatprep.subr.mxu0 0.0
    %3680 = vmatpush2.msra.mxu0 0.0
    %3681 = vmatprep.subr.mxu0 0.0
    %3682 = vmatpush2.msra.mxu0 0.0
    %3683 = vmatprep.subr.mxu0 0.0
    %3684 = vmatpush2.msra.mxu0 0.0
    %3685 = vmatprep.subr.mxu0 0.0
    %3686 = vmatpush2.msra.mxu0 0.0
    %3687 = vmatprep.subr.mxu0 0.0
    %3688 = vmatpush2.msra.mxu0 0.0
    %3689 = vmatprep.subr.mxu0 0.0
    %3690 = vmatpush2.msra.mxu0 0.0
    %3691 = vmatprep.subr.mxu0 0.0
    %3692 = vmatpush2.msra.mxu0 0.0
    %3693 = vmatprep.subr.mxu0 0.0
    %3694 = vmatpush2.msra.mxu0 0.0
    %3695 = vmatprep.subr.mxu0 0.0
    %3696 = vmatpush2.msra.mxu0 0.0
    %3697 = vmatprep.subr.mxu0 0.0
    %3698 = vmatpush2.msra.mxu0 0.0
    %3699 = vmatprep.subr.mxu0 0.0
    %3700 = vmatpush2.msra.mxu0 0.0
    %3701 = vmatprep.mubr.f32.mxu0 0.0
    %3702 = vmatmul.mubr.f32.gmra.mxu0 %v3635
    %v3703 = vpop.f32.mrf.mxu0
    %v3704 = vadd.f32 %v3631, %v3703
    %v3705 = vpop.f32.mrf.mxu0
    %3706 = vdwg.mxu0
    %v3707 = vmax.f32 %v3704, 0.0
    %v3708 = vld [vmem:[%s71] sm:$0xff]
    %v3709 = vld [vmem:[%s71 + $0x8] sm:$0xff]
    %v3710 = vld [vmem:[%s71 + $0x10] sm:$0xff]
    %v3711 = vld [vmem:[%s71 + $0x18] sm:$0xff]
    %v3712 = vld [vmem:[%s73] sm:$0x1]
    %v3714 = vlaneseq
    %v3715 = vshrl.u32 %v3714, 7
    %v3716 = vsub.s32 0, %v3715
    %v3717 = vrot.slane %v3712, %v3716
    %v3720 = vsel %vm564, %v3707, 0
    %3722 = vmatprep.subr.mxu0 0.0
    %3723 = vmatpush1.msra.mxu0 0.0
    %3724 = vmatprep.subr.mxu0 0.0
    %3725 = vmatpush1.msra.mxu0 0.0
    %3726 = vmatprep.subr.mxu0 0.0
    %3727 = vmatpush1.msra.mxu0 0.0
    %3728 = vmatprep.subr.mxu0 0.0
    %3729 = vmatpush1.msra.mxu0 0.0
    %3730 = vmatprep.subr.mxu0 0.0
    %3731 = vmatpush1.msra.mxu0 0.0
    %3732 = vmatprep.subr.mxu0 0.0
    %3733 = vmatpush1.msra.mxu0 0.0
    %3734 = vmatprep.subr.mxu0 0.0
    %3735 = vmatpush1.msra.mxu0 0.0
    %3736 = vmatprep.subr.mxu0 0.0
    %3737 = vmatpush1.msra.mxu0 0.0
    %3738 = vmatprep.subr.mxu0 0.0
    %3739 = vmatpush1.msra.mxu0 0.0
    %3740 = vmatprep.subr.mxu0 0.0
    %3741 = vmatpush1.msra.mxu0 0.0
    %3742 = vmatprep.subr.mxu0 0.0
    %3743 = vmatpush1.msra.mxu0 0.0
    %3744 = vmatprep.subr.mxu0 0.0
    %3745 = vmatpush1.msra.mxu0 0.0
    %3746 = vmatprep.subr.mxu0 0.0
    %3747 = vmatpush1.msra.mxu0 %v3711
    %3748 = vmatprep.subr.mxu0 0.0
    %3749 = vmatpush1.msra.mxu0 %v3710
    %3750 = vmatprep.subr.mxu0 0.0
    %3751 = vmatpush1.msra.mxu0 %v3709
    %3752 = vmatprep.subr.mxu0 0.0
    %3753 = vmatpush1.msra.mxu0 %v3708
    %3754 = vmatprep.subr.mxu0 0.0
    %3755 = vmatpush2.msra.mxu0 0.0
    %3756 = vmatprep.subr.mxu0 0.0
    %3757 = vmatpush2.msra.mxu0 0.0
    %3758 = vmatprep.subr.mxu0 0.0
    %3759 = vmatpush2.msra.mxu0 0.0
    %3760 = vmatprep.subr.mxu0 0.0
    %3761 = vmatpush2.msra.mxu0 0.0
    %3762 = vmatprep.subr.mxu0 0.0
    %3763 = vmatpush2.msra.mxu0 0.0
    %3764 = vmatprep.subr.mxu0 0.0
    %3765 = vmatpush2.msra.mxu0 0.0
    %3766 = vmatprep.subr.mxu0 0.0
    %3767 = vmatpush2.msra.mxu0 0.0
    %3768 = vmatprep.subr.mxu0 0.0
    %3769 = vmatpush2.msra.mxu0 0.0
    %3770 = vmatprep.subr.mxu0 0.0
    %3771 = vmatpush2.msra.mxu0 0.0
    %3772 = vmatprep.subr.mxu0 0.0
    %3773 = vmatpush2.msra.mxu0 0.0
    %3774 = vmatprep.subr.mxu0 0.0
    %3775 = vmatpush2.msra.mxu0 0.0
    %3776 = vmatprep.subr.mxu0 0.0
    %3777 = vmatpush2.msra.mxu0 0.0
    %3778 = vmatprep.subr.mxu0 0.0
    %3779 = vmatpush2.msra.mxu0 0.0
    %3780 = vmatprep.subr.mxu0 0.0
    %3781 = vmatpush2.msra.mxu0 0.0
    %3782 = vmatprep.subr.mxu0 0.0
    %3783 = vmatpush2.msra.mxu0 0.0
    %3784 = vmatprep.subr.mxu0 0.0
    %3785 = vmatpush2.msra.mxu0 0.0
    %3786 = vmatprep.mubr.f32.mxu0 0.0
    %3787 = vmatmul.mubr.f32.gmra.mxu0 %v3720
    %v3788 = vpop.f32.mrf.mxu0
    %v3789 = vadd.f32 %v3717, %v3788
    %v3790 = vpop.f32.mrf.mxu0
    %3791 = vdwg.mxu0
    %v3792 = vld [vmem:[%s75] sm:$0xf]
    %vm3793 = vcmask 31744
    %v3795 = vsel %vm3793, %v3789, 0
    %v3798 = vsel %vm662, %v3792, 0
    %3800 = vmatprep.subr.mxu0 0.0
    %3801 = vmatpush1.msra.mxu0 0.0
    %3802 = vmatprep.subr.mxu0 0.0
    %3803 = vmatpush1.msra.mxu0 0.0
    %3804 = vmatprep.subr.mxu0 0.0
    %3805 = vmatpush1.msra.mxu0 0.0
    %3806 = vmatprep.subr.mxu0 0.0
    %3807 = vmatpush1.msra.mxu0 0.0
    %3808 = vmatprep.subr.mxu0 0.0
    %3809 = vmatpush1.msra.mxu0 0.0
    %3810 = vmatprep.subr.mxu0 0.0
    %3811 = vmatpush1.msra.mxu0 0.0
    %3812 = vmatprep.subr.mxu0 0.0
    %3813 = vmatpush1.msra.mxu0 0.0
    %3814 = vmatprep.subr.mxu0 0.0
    %3815 = vmatpush1.msra.mxu0 0.0
    %3816 = vmatprep.subr.mxu0 0.0
    %3817 = vmatpush1.msra.mxu0 0.0
    %3818 = vmatprep.subr.mxu0 0.0
    %3819 = vmatpush1.msra.mxu0 0.0
    %3820 = vmatprep.subr.mxu0 0.0
    %3821 = vmatpush1.msra.mxu0 0.0
    %3822 = vmatprep.subr.mxu0 0.0
    %3823 = vmatpush1.msra.mxu0 0.0
    %3824 = vmatprep.subr.mxu0 0.0
    %3825 = vmatpush1.msra.mxu0 0.0
    %3826 = vmatprep.subr.mxu0 0.0
    %3827 = vmatpush1.msra.mxu0 0.0
    %3828 = vmatprep.subr.mxu0 0.0
    %3829 = vmatpush1.msra.mxu0 0.0
    %3830 = vmatprep.subr.mxu0 0.0
    %3831 = vmatpush1.msra.mxu0 %v3798
    %3832 = vmatprep.subr.mxu0 0.0
    %3833 = vmatpush2.msra.mxu0 0.0
    %3834 = vmatprep.subr.mxu0 0.0
    %3835 = vmatpush2.msra.mxu0 0.0
    %3836 = vmatprep.subr.mxu0 0.0
    %3837 = vmatpush2.msra.mxu0 0.0
    %3838 = vmatprep.subr.mxu0 0.0
    %3839 = vmatpush2.msra.mxu0 0.0
    %3840 = vmatprep.subr.mxu0 0.0
    %3841 = vmatpush2.msra.mxu0 0.0
    %3842 = vmatprep.subr.mxu0 0.0
    %3843 = vmatpush2.msra.mxu0 0.0
    %3844 = vmatprep.subr.mxu0 0.0
    %3845 = vmatpush2.msra.mxu0 0.0
    %3846 = vmatprep.subr.mxu0 0.0
    %3847 = vmatpush2.msra.mxu0 0.0
    %3848 = vmatprep.subr.mxu0 0.0
    %3849 = vmatpush2.msra.mxu0 0.0
    %3850 = vmatprep.subr.mxu0 0.0
    %3851 = vmatpush2.msra.mxu0 0.0
    %3852 = vmatprep.subr.mxu0 0.0
    %3853 = vmatpush2.msra.mxu0 0.0
    %3854 = vmatprep.subr.mxu0 0.0
    %3855 = vmatpush2.msra.mxu0 0.0
    %3856 = vmatprep.subr.mxu0 0.0
    %3857 = vmatpush2.msra.mxu0 0.0
    %3858 = vmatprep.subr.mxu0 0.0
    %3859 = vmatpush2.msra.mxu0 0.0
    %3860 = vmatprep.subr.mxu0 0.0
    %3861 = vmatpush2.msra.mxu0 0.0
    %3862 = vmatprep.subr.mxu0 0.0
    %3863 = vmatpush2.msra.mxu0 0.0
    %3864 = vmatprep.mubr.f32.mxu0 0.0
    %3865 = vmatmul.mubr.f32.gmra.mxu0 %v3795
    %v3866 = vpop.f32.mrf.mxu0
    %v3867 = vadd.f32 0.0, %v3866
    %v3868 = vpop.f32.mrf.mxu0
    %3869 = vdwg.mxu0
    %vm3870 = vcmask 25600
    %3871 = vst.msk [vmem:[#allocation40] sm:$0x3] %vm3870, %v3867
    // Predicated region
    $region250: #{tpu_custom_call.1} parent=1 // pred_check
      _
    $region251: #{tpu_custom_call.1} parent=1 // pred_check_branch
      %3873 = sbr.rel (0) target = $region253
    $region252: #{tpu_custom_call.1} parent=1 // pred_region
      %s3875 = ssub.s32 32, 32
      %3876 = vsyncadd [#allocation4], %s3875
      %s3878 = sshll.u32 [#allocation40], 4
      %s3879 = int_to_ptr.vmem [resolvable:$true] %s3878
      %3881 = dma.vmem_to_hbm [thread:$0]  %s3879, 32, %s77, [#allocation4]
    $region253: #{tpu_custom_call.1} parent=1 // pred_fallthru
      _
    // Predicated region
    $region254: #{tpu_custom_call.1} parent=1 // pred_check
      _
    $region255: #{tpu_custom_call.1} parent=1 // pred_check_branch
      %3883 = sbr.rel (0) target = $region257
    $region256: #{tpu_custom_call.1} parent=1 // pred_region
      %3884 = dma.done [#allocation4], 32
    $region257: #{tpu_custom_call.1} parent=1 // pred_fallthru
      _
    %3885 = vsyncpa [#allocation3], 1
    %3886 = vsyncpa [#allocation6], 1
    %3887 = vsyncpa [#allocation9], 1
    %3888 = vsyncpa [#allocation12], 1
    %3889 = vsyncpa [#allocation15], 1
    %3890 = vsyncpa [#allocation18], 1
    %3891 = vsyncpa [#allocation21], 1
    %3892 = vsyncpa [#allocation24], 1
    %3893 = vsyncpa [#allocation27], 1
    %3894 = vsyncpa [#allocation30], 1
    %3895 = vsyncpa [#allocation33], 1
    %3896 = vsyncpa [#allocation36], 1
    %3897 = vsyncpa [#allocation39], 1
    %3898 = vsyncpa [#allocation4], 1

</llo_original>
